<compile_context>
chip_gen: v5e
topology: v5e:2x2
jax: 0.10.0
libtpu: 0.0.40
codegen_flags: <defaults>
</compile_context>

<pallas_src>
import jax
import jax.numpy as jnp
import numpy as np
from jax.experimental import pallas as pl
from jax.experimental.pallas import tpu as pltpu

N, C, H, W = 1, 176, 14, 14
KH, KW = 3, 3
EPS = 1e-5

CP = 256               # channels padded to 2 full lane groups (lane-dense I/O)
WP = W + 2             # padded width = 16 (sublane aligned)
NROWS = H * WP         # 224 rows of the flattened output slab (multiple of 8)
NPAD = (H + 2) * WP    # 256 rows of the flattened padded input
CH = 32                # row-chunk height for register blocking (8 f32 vregs)
NCHUNK = NROWS // CH   # 7

# Wrap-safety of the per-chunk kw roll: the roll moves the chunk's first kw
# rows to its tail; because CH % WP == 0 those tail rows always sit in the
# padded columns w in [W, WP), which are excluded from the BN statistics and
# stripped by the wrapper.  A future W / WP / CH change must keep this true.
assert CH % WP == 0 and (KW - 1) <= (WP - W) and NROWS % CH == 0


def fused_dwconv_bn_pwconv_kernel(xflat_ref, wdw_ref, gamma_ref, beta_ref,
                                  wpw_ref, out_ref, y_scr, yn_scr):
    # xflat_ref : (NPAD, CP)  zero-padded input, flattened (H+2, W+2) rows, f32
    # wdw_ref   : (9, CP)     depthwise 3x3 weights, tap-major, f32
    # gamma_ref : (1, CP)     BN scale (zero in padded channels), f32
    # beta_ref  : (1, CP)     BN shift (zero in padded channels), f32
    # wpw_ref   : (CP, CP)    pointwise weights [c_in, c_out], bf16, zero padded
    # out_ref   : (NROWS, CP) output rows (H x WP grid; padded-w rows are junk)
    # y_scr     : (NROWS, CP) f32   un-normalized depthwise output (scratch)
    # yn_scr    : (NROWS, CP) bf16  normalized matmul lhs (scratch)

    wdw = wdw_ref[...]                                        # (9, CP), hoisted

    # Padding-column mask for the BN statistics; identical for every chunk
    # because CH is a multiple of WP.  Built once, ~4 passes over 8 vregs.
    ridx = jax.lax.broadcasted_iota(jnp.int32, (CH, CP), 0)
    colmask = (jnp.bitwise_and(ridx, WP - 1) < W).astype(jnp.float32)

    s1 = jnp.zeros((1, CP), jnp.float32)
    s2 = jnp.zeros((1, CP), jnp.float32)

    # --- phase 1: register-blocked depthwise 3x3 conv + BN partial sums ------
    for c in range(NCHUNK):
        r0 = c * CH                                           # static, aligned
        acc = None
        for kh in range(KH):
            # one aligned load per (chunk, kh); reused for all three kw taps
            slab = xflat_ref[r0 + kh * WP:r0 + kh * WP + CH, :]   # (CH, CP)
            for kw in range(KW):
                # kw shift = XLU roll of the in-register slab; wrapped rows
                # land only in the masked padding columns (see assert above).
                sh = slab if kw == 0 else pltpu.roll(slab, shift=CH - kw, axis=0)
                wk = wdw[kh * KW + kw:kh * KW + kw + 1, :]        # (1, CP)
                t = sh * wk
                acc = t if acc is None else acc + t               # init w/ 1st tap
        y_scr[r0:r0 + CH, :] = acc          # junk rows kept; wrapper strips them
        ym = acc * colmask                  # mask only for the statistics
        s1 = s1 + jnp.sum(ym, axis=0, keepdims=True)
        s2 = s2 + jnp.sum(ym * ym, axis=0, keepdims=True)

    # --- BatchNorm2d (training-mode batch stats) folded into scale/shift -----
    # One-pass E[x^2]-E[x]^2 in f32, guarded by max(.,0): fine for 196 samples
    # of ~unit-scale activations.
    cnt = jnp.float32(H * W)                                  # 196 real pixels
    mean = s1 / cnt
    var = jnp.maximum(s2 / cnt - mean * mean, 0.0)            # biased variance
    inv_std = jax.lax.rsqrt(var + EPS)
    scale = gamma_ref[...] * inv_std                          # (1, CP)
    shift = beta_ref[...] - mean * scale                      # (1, CP)
    # padded channels: gamma==0 -> scale==0, beta==0 -> shift==0 (and wpw rows
    # are zero too), so the 1/sqrt(eps) blow-up there never leaks into the out.

    # --- phase 2: chunked normalize -> bf16 matmul operand --------------------
    for c in range(NCHUNK):
        r0 = c * CH
        y = y_scr[r0:r0 + CH, :]
        yn_scr[r0:r0 + CH, :] = (y * scale + shift).astype(jnp.bfloat16)

    # --- pointwise 1x1 conv: one (224,256)@(256,256) bf16 MXU matmul ----------
    out_ref[...] = jnp.dot(yn_scr[...], wpw_ref[...],
                           preferred_element_type=jnp.float32)


def module_forward(x_nchw, w_dw, gamma, beta, w_pw):
    """x_nchw: (1,C,H,W); w_dw: (C,1,3,3); gamma/beta: (C,); w_pw: (C,C,1,1)."""
    # TODO(synk): at ~1-2us kernel scale these NCHW<->padded-slab relayouts are
    # comparable to the kernel itself; when composing several fused layers keep
    # activations channels-last / padded between them instead of re-laying out.
    x_hwc = jnp.transpose(x_nchw[0], (1, 2, 0))                   # (H, W, C)
    x_pad = jnp.pad(x_hwc, ((1, 1), (1, 1), (0, CP - C)))         # (16, 16, CP)
    x_flat = x_pad.reshape(NPAD, CP)                              # (256, CP)

    wdw = jnp.transpose(w_dw[:, 0, :, :], (1, 2, 0)).reshape(KH * KW, C)
    wdw = jnp.pad(wdw, ((0, 0), (0, CP - C)))                     # (9, CP)
    g = jnp.pad(gamma, (0, CP - C)).reshape(1, CP)                # zero-padded
    b = jnp.pad(beta, (0, CP - C)).reshape(1, CP)                 # zero-padded
    wpw = jnp.transpose(w_pw[:, :, 0, 0], (1, 0))                 # (C_in, C_out)
    wpw = jnp.pad(wpw, ((0, CP - C), (0, CP - C))).astype(jnp.bfloat16)

    vmem_spec = pl.BlockSpec(memory_space=pltpu.MemorySpace.VMEM)
    cost = pl.CostEstimate(
        flops=2 * H * W * C * C + 2 * KH * KW * H * W * C,
        transcendentals=C,
        bytes_accessed=(NPAD * CP * 4 + KH * KW * CP * 4 + 2 * CP * 4
                        + CP * CP * 2 + NROWS * CP * 4))
    out = pl.pallas_call(
        fused_dwconv_bn_pwconv_kernel,
        out_shape=jax.ShapeDtypeStruct((NROWS, CP), jnp.float32),
        in_specs=[vmem_spec] * 5,
        out_specs=vmem_spec,
        scratch_shapes=[pltpu.VMEM((NROWS, CP), jnp.float32),
                        pltpu.VMEM((NROWS, CP), jnp.bfloat16)],
        cost_estimate=cost,
    )(x_flat, wdw, g, b, wpw)

    # strip width/channel padding, back to NCHW
    out = out.reshape(H, WP, CP)[:, :W, :C]                       # (H, W, C)
    return jnp.transpose(out, (2, 0, 1))[None, ...]


module_forward = jax.jit(module_forward)


def reference_forward(x_nchw, w_dw, gamma, beta, w_pw):
    """Pure-JAX f32 reference with identical semantics (sanity check)."""
    x_hwc = jnp.transpose(x_nchw[0], (1, 2, 0))
    x_pad = jnp.pad(x_hwc, ((1, 1), (1, 1), (0, 0)))
    acc = jnp.zeros((H, W, C), jnp.float32)
    for kh in range(KH):
        for kw in range(KW):
            acc = acc + x_pad[kh:kh + H, kw:kw + W, :] * w_dw[:, 0, kh, kw]
    y = acc.reshape(H * W, C)
    mean = jnp.mean(y, axis=0, keepdims=True)
    var = jnp.mean((y - mean) ** 2, axis=0, keepdims=True)
    yn = (y - mean) / jnp.sqrt(var + EPS) * gamma + beta
    out = yn @ w_pw[:, :, 0, 0].T
    return jnp.transpose(out.reshape(H, W, C), (2, 0, 1))[None, ...]


if __name__ == "__main__":
    key = jax.random.PRNGKey(0)
    k_x, k_dw, k_pw, k_g, k_b = jax.random.split(key, 5)

    x = jax.random.normal(k_x, (N, C, H, W), dtype=jnp.float32)
    w_dw = jax.random.normal(k_dw, (C, 1, KH, KW), dtype=jnp.float32) * 0.1
    w_pw = jax.random.normal(k_pw, (C, C, 1, 1), dtype=jnp.float32) * 0.05
    gamma = 1.0 + 0.1 * jax.random.normal(k_g, (C,), dtype=jnp.float32)
    beta = 0.1 * jax.random.normal(k_b, (C,), dtype=jnp.float32)

    out = module_forward(x, w_dw, gamma, beta, w_pw)
    out = jax.block_until_ready(out)

    ref = reference_forward(x, w_dw, gamma, beta, w_pw)
    assert out.shape == (N, C, H, W)
    # tolerance loosened because the 1x1-conv matmul runs in bf16 on the MXU
    np.testing.assert_allclose(np.asarray(out), np.asarray(ref),
                               rtol=2e-2, atol=2e-2)
    print("KERNEL_OK")
</pallas_src>

<mosaic_0001>
module attributes {stable_mosaic.version = 11 : i64} {
  func.func @fused_dwconv_bn_pwconv_kernel(%arg0: memref<256x256xf32, #tpu.memory_space<vmem>>, %arg1: memref<9x256xf32, #tpu.memory_space<vmem>>, %arg2: memref<1x256xf32, #tpu.memory_space<vmem>>, %arg3: memref<1x256xf32, #tpu.memory_space<vmem>>, %arg4: memref<256x256xbf16, #tpu.memory_space<vmem>>, %arg5: memref<224x256xf32, #tpu.memory_space<vmem>>, %arg6: memref<224x256xf32, #tpu.memory_space<vmem>>, %arg7: memref<224x256xbf16, #tpu.memory_space<vmem>>) attributes {dimension_semantics = [], scalar_prefetch = 0 : i64, scratch_operands = 2 : i64, tpu.core_type = #tpu.core_type<tc>} {
    %c0 = arith.constant 0 : index
    %c0_0 = arith.constant 0 : index
    %0 = vector.load %arg1[%c0, %c0_0] : memref<9x256xf32, #tpu.memory_space<vmem>>, vector<9x256xf32>
    %1 = tpu.iota {dimensions = array<i32: 0>} : vector<32x256xi32>
    %c15_i32 = arith.constant 15 : i32
    %2 = vector.broadcast %c15_i32 : i32 to vector<32x256xi32>
    %3 = arith.andi %1, %2 : vector<32x256xi32>
    %c14_i32 = arith.constant 14 : i32
    %4 = vector.broadcast %c14_i32 : i32 to vector<32x256xi32>
    %5 = arith.cmpi slt, %3, %4 : vector<32x256xi32>
    %6 = arith.extui %5 : vector<32x256xi1> to vector<32x256xi32>
    %7 = arith.sitofp %6 : vector<32x256xi32> to vector<32x256xf32>
    %cst = arith.constant 0.000000e+00 : f32
    %8 = vector.broadcast %cst : f32 to vector<1x256xf32>
    %cst_1 = arith.constant 0.000000e+00 : f32
    %9 = vector.broadcast %cst_1 : f32 to vector<1x256xf32>
    %c0_2 = arith.constant 0 : index
    %c0_3 = arith.constant 0 : index
    %10 = vector.load %arg0[%c0_2, %c0_3] : memref<256x256xf32, #tpu.memory_space<vmem>>, vector<32x256xf32>
    %11 = vector.extract_strided_slice %0 {offsets = [0, 0], sizes = [1, 256], strides = [1, 1]} : vector<9x256xf32> to vector<1x256xf32>
    %12 = vector.broadcast %11 : vector<1x256xf32> to vector<32x256xf32>
    %13 = arith.mulf %10, %12 : vector<32x256xf32>
    %c31_i32 = arith.constant 31 : i32
    %14 = tpu.dynamic_rotate %10 by %c31_i32 dim 0 : vector<32x256xf32>, i32 -> vector<32x256xf32>
    %15 = vector.extract_strided_slice %0 {offsets = [1, 0], sizes = [1, 256], strides = [1, 1]} : vector<9x256xf32> to vector<1x256xf32>
    %16 = vector.broadcast %15 : vector<1x256xf32> to vector<32x256xf32>
    %17 = arith.mulf %14, %16 : vector<32x256xf32>
    %18 = arith.addf %13, %17 : vector<32x256xf32>
    %c30_i32 = arith.constant 30 : i32
    %19 = tpu.dynamic_rotate %10 by %c30_i32 dim 0 : vector<32x256xf32>, i32 -> vector<32x256xf32>
    %20 = vector.extract_strided_slice %0 {offsets = [2, 0], sizes = [1, 256], strides = [1, 1]} : vector<9x256xf32> to vector<1x256xf32>
    %21 = vector.broadcast %20 : vector<1x256xf32> to vector<32x256xf32>
    %22 = arith.mulf %19, %21 : vector<32x256xf32>
    %23 = arith.addf %18, %22 : vector<32x256xf32>
    %c16 = arith.constant 16 : index
    %c0_4 = arith.constant 0 : index
    %24 = vector.load %arg0[%c16, %c0_4] : memref<256x256xf32, #tpu.memory_space<vmem>>, vector<32x256xf32>
    %25 = vector.extract_strided_slice %0 {offsets = [3, 0], sizes = [1, 256], strides = [1, 1]} : vector<9x256xf32> to vector<1x256xf32>
    %26 = vector.broadcast %25 : vector<1x256xf32> to vector<32x256xf32>
    %27 = arith.mulf %24, %26 : vector<32x256xf32>
    %28 = arith.addf %23, %27 : vector<32x256xf32>
    %c31_i32_5 = arith.constant 31 : i32
    %29 = tpu.dynamic_rotate %24 by %c31_i32_5 dim 0 : vector<32x256xf32>, i32 -> vector<32x256xf32>
    %30 = vector.extract_strided_slice %0 {offsets = [4, 0], sizes = [1, 256], strides = [1, 1]} : vector<9x256xf32> to vector<1x256xf32>
    %31 = vector.broadcast %30 : vector<1x256xf32> to vector<32x256xf32>
    %32 = arith.mulf %29, %31 : vector<32x256xf32>
    %33 = arith.addf %28, %32 : vector<32x256xf32>
    %c30_i32_6 = arith.constant 30 : i32
    %34 = tpu.dynamic_rotate %24 by %c30_i32_6 dim 0 : vector<32x256xf32>, i32 -> vector<32x256xf32>
    %35 = vector.extract_strided_slice %0 {offsets = [5, 0], sizes = [1, 256], strides = [1, 1]} : vector<9x256xf32> to vector<1x256xf32>
    %36 = vector.broadcast %35 : vector<1x256xf32> to vector<32x256xf32>
    %37 = arith.mulf %34, %36 : vector<32x256xf32>
    %38 = arith.addf %33, %37 : vector<32x256xf32>
    %c32 = arith.constant 32 : index
    %c0_7 = arith.constant 0 : index
    %39 = vector.load %arg0[%c32, %c0_7] : memref<256x256xf32, #tpu.memory_space<vmem>>, vector<32x256xf32>
    %40 = vector.extract_strided_slice %0 {offsets = [6, 0], sizes = [1, 256], strides = [1, 1]} : vector<9x256xf32> to vector<1x256xf32>
    %41 = vector.broadcast %40 : vector<1x256xf32> to vector<32x256xf32>
    %42 = arith.mulf %39, %41 : vector<32x256xf32>
    %43 = arith.addf %38, %42 : vector<32x256xf32>
    %c31_i32_8 = arith.constant 31 : i32
    %44 = tpu.dynamic_rotate %39 by %c31_i32_8 dim 0 : vector<32x256xf32>, i32 -> vector<32x256xf32>
    %45 = vector.extract_strided_slice %0 {offsets = [7, 0], sizes = [1, 256], strides = [1, 1]} : vector<9x256xf32> to vector<1x256xf32>
    %46 = vector.broadcast %45 : vector<1x256xf32> to vector<32x256xf32>
    %47 = arith.mulf %44, %46 : vector<32x256xf32>
    %48 = arith.addf %43, %47 : vector<32x256xf32>
    %c30_i32_9 = arith.constant 30 : i32
    %49 = tpu.dynamic_rotate %39 by %c30_i32_9 dim 0 : vector<32x256xf32>, i32 -> vector<32x256xf32>
    %50 = vector.extract_strided_slice %0 {offsets = [8, 0], sizes = [1, 256], strides = [1, 1]} : vector<9x256xf32> to vector<1x256xf32>
    %51 = vector.broadcast %50 : vector<1x256xf32> to vector<32x256xf32>
    %52 = arith.mulf %49, %51 : vector<32x256xf32>
    %53 = arith.addf %48, %52 : vector<32x256xf32>
    %c0_10 = arith.constant 0 : index
    %c0_11 = arith.constant 0 : index
    %54 = vector.load %arg6[%c0_10, %c0_11] : memref<224x256xf32, #tpu.memory_space<vmem>>, vector<32x256xf32>
    tpu.vector_store %arg6[%c0_10, %c0_11], %53 {strides = array<i32>} : memref<224x256xf32, #tpu.memory_space<vmem>>, vector<32x256xf32>,
    %55 = arith.mulf %53, %7 : vector<32x256xf32>
    %cst_12 = arith.constant dense<0.000000e+00> : vector<256xf32>
    %56 = vector.multi_reduction <add>, %55, %cst_12 [0] : vector<32x256xf32> to vector<256xf32>
    %57 = vector.shape_cast %56 : vector<256xf32> to vector<1x256xf32>
    %58 = arith.addf %8, %57 : vector<1x256xf32>
    %59 = arith.mulf %55, %55 : vector<32x256xf32>
    %cst_13 = arith.constant dense<0.000000e+00> : vector<256xf32>
    %60 = vector.multi_reduction <add>, %59, %cst_13 [0] : vector<32x256xf32> to vector<256xf32>
    %61 = vector.shape_cast %60 : vector<256xf32> to vector<1x256xf32>
    %62 = arith.addf %9, %61 : vector<1x256xf32>
    %c32_14 = arith.constant 32 : index
    %c0_15 = arith.constant 0 : index
    %63 = vector.load %arg0[%c32_14, %c0_15] : memref<256x256xf32, #tpu.memory_space<vmem>>, vector<32x256xf32>
    %64 = vector.extract_strided_slice %0 {offsets = [0, 0], sizes = [1, 256], strides = [1, 1]} : vector<9x256xf32> to vector<1x256xf32>
    %65 = vector.broadcast %64 : vector<1x256xf32> to vector<32x256xf32>
    %66 = arith.mulf %63, %65 : vector<32x256xf32>
    %c31_i32_16 = arith.constant 31 : i32
    %67 = tpu.dynamic_rotate %63 by %c31_i32_16 dim 0 : vector<32x256xf32>, i32 -> vector<32x256xf32>
    %68 = vector.extract_strided_slice %0 {offsets = [1, 0], sizes = [1, 256], strides = [1, 1]} : vector<9x256xf32> to vector<1x256xf32>
    %69 = vector.broadcast %68 : vector<1x256xf32> to vector<32x256xf32>
    %70 = arith.mulf %67, %69 : vector<32x256xf32>
    %71 = arith.addf %66, %70 : vector<32x256xf32>
    %c30_i32_17 = arith.constant 30 : i32
    %72 = tpu.dynamic_rotate %63 by %c30_i32_17 dim 0 : vector<32x256xf32>, i32 -> vector<32x256xf32>
    %73 = vector.extract_strided_slice %0 {offsets = [2, 0], sizes = [1, 256], strides = [1, 1]} : vector<9x256xf32> to vector<1x256xf32>
    %74 = vector.broadcast %73 : vector<1x256xf32> to vector<32x256xf32>
    %75 = arith.mulf %72, %74 : vector<32x256xf32>
    %76 = arith.addf %71, %75 : vector<32x256xf32>
    %c48 = arith.constant 48 : index
    %c0_18 = arith.constant 0 : index
    %77 = vector.load %arg0[%c48, %c0_18] : memref<256x256xf32, #tpu.memory_space<vmem>>, vector<32x256xf32>
    %78 = vector.extract_strided_slice %0 {offsets = [3, 0], sizes = [1, 256], strides = [1, 1]} : vector<9x256xf32> to vector<1x256xf32>
    %79 = vector.broadcast %78 : vector<1x256xf32> to vector<32x256xf32>
    %80 = arith.mulf %77, %79 : vector<32x256xf32>
    %81 = arith.addf %76, %80 : vector<32x256xf32>
    %c31_i32_19 = arith.constant 31 : i32
    %82 = tpu.dynamic_rotate %77 by %c31_i32_19 dim 0 : vector<32x256xf32>, i32 -> vector<32x256xf32>
    %83 = vector.extract_strided_slice %0 {offsets = [4, 0], sizes = [1, 256], strides = [1, 1]} : vector<9x256xf32> to vector<1x256xf32>
    %84 = vector.broadcast %83 : vector<1x256xf32> to vector<32x256xf32>
    %85 = arith.mulf %82, %84 : vector<32x256xf32>
    %86 = arith.addf %81, %85 : vector<32x256xf32>
    %c30_i32_20 = arith.constant 30 : i32
    %87 = tpu.dynamic_rotate %77 by %c30_i32_20 dim 0 : vector<32x256xf32>, i32 -> vector<32x256xf32>
    %88 = vector.extract_strided_slice %0 {offsets = [5, 0], sizes = [1, 256], strides = [1, 1]} : vector<9x256xf32> to vector<1x256xf32>
    %89 = vector.broadcast %88 : vector<1x256xf32> to vector<32x256xf32>
    %90 = arith.mulf %87, %89 : vector<32x256xf32>
    %91 = arith.addf %86, %90 : vector<32x256xf32>
    %c64 = arith.constant 64 : index
    %c0_21 = arith.constant 0 : index
    %92 = vector.load %arg0[%c64, %c0_21] : memref<256x256xf32, #tpu.memory_space<vmem>>, vector<32x256xf32>
    %93 = vector.extract_strided_slice %0 {offsets = [6, 0], sizes = [1, 256], strides = [1, 1]} : vector<9x256xf32> to vector<1x256xf32>
    %94 = vector.broadcast %93 : vector<1x256xf32> to vector<32x256xf32>
    %95 = arith.mulf %92, %94 : vector<32x256xf32>
    %96 = arith.addf %91, %95 : vector<32x256xf32>
    %c31_i32_22 = arith.constant 31 : i32
    %97 = tpu.dynamic_rotate %92 by %c31_i32_22 dim 0 : vector<32x256xf32>, i32 -> vector<32x256xf32>
    %98 = vector.extract_strided_slice %0 {offsets = [7, 0], sizes = [1, 256], strides = [1, 1]} : vector<9x256xf32> to vector<1x256xf32>
    %99 = vector.broadcast %98 : vector<1x256xf32> to vector<32x256xf32>
    %100 = arith.mulf %97, %99 : vector<32x256xf32>
    %101 = arith.addf %96, %100 : vector<32x256xf32>
    %c30_i32_23 = arith.constant 30 : i32
    %102 = tpu.dynamic_rotate %92 by %c30_i32_23 dim 0 : vector<32x256xf32>, i32 -> vector<32x256xf32>
    %103 = vector.extract_strided_slice %0 {offsets = [8, 0], sizes = [1, 256], strides = [1, 1]} : vector<9x256xf32> to vector<1x256xf32>
    %104 = vector.broadcast %103 : vector<1x256xf32> to vector<32x256xf32>
    %105 = arith.mulf %102, %104 : vector<32x256xf32>
    %106 = arith.addf %101, %105 : vector<32x256xf32>
    %c32_24 = arith.constant 32 : index
    %c0_25 = arith.constant 0 : index
    %107 = vector.load %arg6[%c32_24, %c0_25] : memref<224x256xf32, #tpu.memory_space<vmem>>, vector<32x256xf32>
    tpu.vector_store %arg6[%c32_24, %c0_25], %106 {strides = array<i32>} : memref<224x256xf32, #tpu.memory_space<vmem>>, vector<32x256xf32>,
    %108 = arith.mulf %106, %7 : vector<32x256xf32>
    %cst_26 = arith.constant dense<0.000000e+00> : vector<256xf32>
    %109 = vector.multi_reduction <add>, %108, %cst_26 [0] : vector<32x256xf32> to vector<256xf32>
    %110 = vector.shape_cast %109 : vector<256xf32> to vector<1x256xf32>
    %111 = arith.addf %58, %110 : vector<1x256xf32>
    %112 = arith.mulf %108, %108 : vector<32x256xf32>
    %cst_27 = arith.constant dense<0.000000e+00> : vector<256xf32>
    %113 = vector.multi_reduction <add>, %112, %cst_27 [0] : vector<32x256xf32> to vector<256xf32>
    %114 = vector.shape_cast %113 : vector<256xf32> to vector<1x256xf32>
    %115 = arith.addf %62, %114 : vector<1x256xf32>
    %c64_28 = arith.constant 64 : index
    %c0_29 = arith.constant 0 : index
    %116 = vector.load %arg0[%c64_28, %c0_29] : memref<256x256xf32, #tpu.memory_space<vmem>>, vector<32x256xf32>
    %117 = vector.extract_strided_slice %0 {offsets = [0, 0], sizes = [1, 256], strides = [1, 1]} : vector<9x256xf32> to vector<1x256xf32>
    %118 = vector.broadcast %117 : vector<1x256xf32> to vector<32x256xf32>
    %119 = arith.mulf %116, %118 : vector<32x256xf32>
    %c31_i32_30 = arith.constant 31 : i32
    %120 = tpu.dynamic_rotate %116 by %c31_i32_30 dim 0 : vector<32x256xf32>, i32 -> vector<32x256xf32>
    %121 = vector.extract_strided_slice %0 {offsets = [1, 0], sizes = [1, 256], strides = [1, 1]} : vector<9x256xf32> to vector<1x256xf32>
    %122 = vector.broadcast %121 : vector<1x256xf32> to vector<32x256xf32>
    %123 = arith.mulf %120, %122 : vector<32x256xf32>
    %124 = arith.addf %119, %123 : vector<32x256xf32>
    %c30_i32_31 = arith.constant 30 : i32
    %125 = tpu.dynamic_rotate %116 by %c30_i32_31 dim 0 : vector<32x256xf32>, i32 -> vector<32x256xf32>
    %126 = vector.extract_strided_slice %0 {offsets = [2, 0], sizes = [1, 256], strides = [1, 1]} : vector<9x256xf32> to vector<1x256xf32>
    %127 = vector.broadcast %126 : vector<1x256xf32> to vector<32x256xf32>
    %128 = arith.mulf %125, %127 : vector<32x256xf32>
    %129 = arith.addf %124, %128 : vector<32x256xf32>
    %c80 = arith.constant 80 : index
    %c0_32 = arith.constant 0 : index
    %130 = vector.load %arg0[%c80, %c0_32] : memref<256x256xf32, #tpu.memory_space<vmem>>, vector<32x256xf32>
    %131 = vector.extract_strided_slice %0 {offsets = [3, 0], sizes = [1, 256], strides = [1, 1]} : vector<9x256xf32> to vector<1x256xf32>
    %132 = vector.broadcast %131 : vector<1x256xf32> to vector<32x256xf32>
    %133 = arith.mulf %130, %132 : vector<32x256xf32>
    %134 = arith.addf %129, %133 : vector<32x256xf32>
    %c31_i32_33 = arith.constant 31 : i32
    %135 = tpu.dynamic_rotate %130 by %c31_i32_33 dim 0 : vector<32x256xf32>, i32 -> vector<32x256xf32>
    %136 = vector.extract_strided_slice %0 {offsets = [4, 0], sizes = [1, 256], strides = [1, 1]} : vector<9x256xf32> to vector<1x256xf32>
    %137 = vector.broadcast %136 : vector<1x256xf32> to vector<32x256xf32>
    %138 = arith.mulf %135, %137 : vector<32x256xf32>
    %139 = arith.addf %134, %138 : vector<32x256xf32>
    %c30_i32_34 = arith.constant 30 : i32
    %140 = tpu.dynamic_rotate %130 by %c30_i32_34 dim 0 : vector<32x256xf32>, i32 -> vector<32x256xf32>
    %141 = vector.extract_strided_slice %0 {offsets = [5, 0], sizes = [1, 256], strides = [1, 1]} : vector<9x256xf32> to vector<1x256xf32>
    %142 = vector.broadcast %141 : vector<1x256xf32> to vector<32x256xf32>
    %143 = arith.mulf %140, %142 : vector<32x256xf32>
    %144 = arith.addf %139, %143 : vector<32x256xf32>
    %c96 = arith.constant 96 : index
    %c0_35 = arith.constant 0 : index
    %145 = vector.load %arg0[%c96, %c0_35] : memref<256x256xf32, #tpu.memory_space<vmem>>, vector<32x256xf32>
    %146 = vector.extract_strided_slice %0 {offsets = [6, 0], sizes = [1, 256], strides = [1, 1]} : vector<9x256xf32> to vector<1x256xf32>
    %147 = vector.broadcast %146 : vector<1x256xf32> to vector<32x256xf32>
    %148 = arith.mulf %145, %147 : vector<32x256xf32>
    %149 = arith.addf %144, %148 : vector<32x256xf32>
    %c31_i32_36 = arith.constant 31 : i32
    %150 = tpu.dynamic_rotate %145 by %c31_i32_36 dim 0 : vector<32x256xf32>, i32 -> vector<32x256xf32>
    %151 = vector.extract_strided_slice %0 {offsets = [7, 0], sizes = [1, 256], strides = [1, 1]} : vector<9x256xf32> to vector<1x256xf32>
    %152 = vector.broadcast %151 : vector<1x256xf32> to vector<32x256xf32>
    %153 = arith.mulf %150, %152 : vector<32x256xf32>
    %154 = arith.addf %149, %153 : vector<32x256xf32>
    %c30_i32_37 = arith.constant 30 : i32
    %155 = tpu.dynamic_rotate %145 by %c30_i32_37 dim 0 : vector<32x256xf32>, i32 -> vector<32x256xf32>
    %156 = vector.extract_strided_slice %0 {offsets = [8, 0], sizes = [1, 256], strides = [1, 1]} : vector<9x256xf32> to vector<1x256xf32>
    %157 = vector.broadcast %156 : vector<1x256xf32> to vector<32x256xf32>
    %158 = arith.mulf %155, %157 : vector<32x256xf32>
    %159 = arith.addf %154, %158 : vector<32x256xf32>
    %c64_38 = arith.constant 64 : index
    %c0_39 = arith.constant 0 : index
    %160 = vector.load %arg6[%c64_38, %c0_39] : memref<224x256xf32, #tpu.memory_space<vmem>>, vector<32x256xf32>
    tpu.vector_store %arg6[%c64_38, %c0_39], %159 {strides = array<i32>} : memref<224x256xf32, #tpu.memory_space<vmem>>, vector<32x256xf32>,
    %161 = arith.mulf %159, %7 : vector<32x256xf32>
    %cst_40 = arith.constant dense<0.000000e+00> : vector<256xf32>
    %162 = vector.multi_reduction <add>, %161, %cst_40 [0] : vector<32x256xf32> to vector<256xf32>
    %163 = vector.shape_cast %162 : vector<256xf32> to vector<1x256xf32>
    %164 = arith.addf %111, %163 : vector<1x256xf32>
    %165 = arith.mulf %161, %161 : vector<32x256xf32>
    %cst_41 = arith.constant dense<0.000000e+00> : vector<256xf32>
    %166 = vector.multi_reduction <add>, %165, %cst_41 [0] : vector<32x256xf32> to vector<256xf32>
    %167 = vector.shape_cast %166 : vector<256xf32> to vector<1x256xf32>
    %168 = arith.addf %115, %167 : vector<1x256xf32>
    %c96_42 = arith.constant 96 : index
    %c0_43 = arith.constant 0 : index
    %169 = vector.load %arg0[%c96_42, %c0_43] : memref<256x256xf32, #tpu.memory_space<vmem>>, vector<32x256xf32>
    %170 = vector.extract_strided_slice %0 {offsets = [0, 0], sizes = [1, 256], strides = [1, 1]} : vector<9x256xf32> to vector<1x256xf32>
    %171 = vector.broadcast %170 : vector<1x256xf32> to vector<32x256xf32>
    %172 = arith.mulf %169, %171 : vector<32x256xf32>
    %c31_i32_44 = arith.constant 31 : i32
    %173 = tpu.dynamic_rotate %169 by %c31_i32_44 dim 0 : vector<32x256xf32>, i32 -> vector<32x256xf32>
    %174 = vector.extract_strided_slice %0 {offsets = [1, 0], sizes = [1, 256], strides = [1, 1]} : vector<9x256xf32> to vector<1x256xf32>
    %175 = vector.broadcast %174 : vector<1x256xf32> to vector<32x256xf32>
    %176 = arith.mulf %173, %175 : vector<32x256xf32>
    %177 = arith.addf %172, %176 : vector<32x256xf32>
    %c30_i32_45 = arith.constant 30 : i32
    %178 = tpu.dynamic_rotate %169 by %c30_i32_45 dim 0 : vector<32x256xf32>, i32 -> vector<32x256xf32>
    %179 = vector.extract_strided_slice %0 {offsets = [2, 0], sizes = [1, 256], strides = [1, 1]} : vector<9x256xf32> to vector<1x256xf32>
    %180 = vector.broadcast %179 : vector<1x256xf32> to vector<32x256xf32>
    %181 = arith.mulf %178, %180 : vector<32x256xf32>
    %182 = arith.addf %177, %181 : vector<32x256xf32>
    %c112 = arith.constant 112 : index
    %c0_46 = arith.constant 0 : index
    %183 = vector.load %arg0[%c112, %c0_46] : memref<256x256xf32, #tpu.memory_space<vmem>>, vector<32x256xf32>
    %184 = vector.extract_strided_slice %0 {offsets = [3, 0], sizes = [1, 256], strides = [1, 1]} : vector<9x256xf32> to vector<1x256xf32>
    %185 = vector.broadcast %184 : vector<1x256xf32> to vector<32x256xf32>
    %186 = arith.mulf %183, %185 : vector<32x256xf32>
    %187 = arith.addf %182, %186 : vector<32x256xf32>
    %c31_i32_47 = arith.constant 31 : i32
    %188 = tpu.dynamic_rotate %183 by %c31_i32_47 dim 0 : vector<32x256xf32>, i32 -> vector<32x256xf32>
    %189 = vector.extract_strided_slice %0 {offsets = [4, 0], sizes = [1, 256], strides = [1, 1]} : vector<9x256xf32> to vector<1x256xf32>
    %190 = vector.broadcast %189 : vector<1x256xf32> to vector<32x256xf32>
    %191 = arith.mulf %188, %190 : vector<32x256xf32>
    %192 = arith.addf %187, %191 : vector<32x256xf32>
    %c30_i32_48 = arith.constant 30 : i32
    %193 = tpu.dynamic_rotate %183 by %c30_i32_48 dim 0 : vector<32x256xf32>, i32 -> vector<32x256xf32>
    %194 = vector.extract_strided_slice %0 {offsets = [5, 0], sizes = [1, 256], strides = [1, 1]} : vector<9x256xf32> to vector<1x256xf32>
    %195 = vector.broadcast %194 : vector<1x256xf32> to vector<32x256xf32>
    %196 = arith.mulf %193, %195 : vector<32x256xf32>
    %197 = arith.addf %192, %196 : vector<32x256xf32>
    %c128 = arith.constant 128 : index
    %c0_49 = arith.constant 0 : index
    %198 = vector.load %arg0[%c128, %c0_49] : memref<256x256xf32, #tpu.memory_space<vmem>>, vector<32x256xf32>
    %199 = vector.extract_strided_slice %0 {offsets = [6, 0], sizes = [1, 256], strides = [1, 1]} : vector<9x256xf32> to vector<1x256xf32>
    %200 = vector.broadcast %199 : vector<1x256xf32> to vector<32x256xf32>
    %201 = arith.mulf %198, %200 : vector<32x256xf32>
    %202 = arith.addf %197, %201 : vector<32x256xf32>
    %c31_i32_50 = arith.constant 31 : i32
    %203 = tpu.dynamic_rotate %198 by %c31_i32_50 dim 0 : vector<32x256xf32>, i32 -> vector<32x256xf32>
    %204 = vector.extract_strided_slice %0 {offsets = [7, 0], sizes = [1, 256], strides = [1, 1]} : vector<9x256xf32> to vector<1x256xf32>
    %205 = vector.broadcast %204 : vector<1x256xf32> to vector<32x256xf32>
    %206 = arith.mulf %203, %205 : vector<32x256xf32>
    %207 = arith.addf %202, %206 : vector<32x256xf32>
    %c30_i32_51 = arith.constant 30 : i32
    %208 = tpu.dynamic_rotate %198 by %c30_i32_51 dim 0 : vector<32x256xf32>, i32 -> vector<32x256xf32>
    %209 = vector.extract_strided_slice %0 {offsets = [8, 0], sizes = [1, 256], strides = [1, 1]} : vector<9x256xf32> to vector<1x256xf32>
    %210 = vector.broadcast %209 : vector<1x256xf32> to vector<32x256xf32>
    %211 = arith.mulf %208, %210 : vector<32x256xf32>
    %212 = arith.addf %207, %211 : vector<32x256xf32>
    %c96_52 = arith.constant 96 : index
    %c0_53 = arith.constant 0 : index
    %213 = vector.load %arg6[%c96_52, %c0_53] : memref<224x256xf32, #tpu.memory_space<vmem>>, vector<32x256xf32>
    tpu.vector_store %arg6[%c96_52, %c0_53], %212 {strides = array<i32>} : memref<224x256xf32, #tpu.memory_space<vmem>>, vector<32x256xf32>,
    %214 = arith.mulf %212, %7 : vector<32x256xf32>
    %cst_54 = arith.constant dense<0.000000e+00> : vector<256xf32>
    %215 = vector.multi_reduction <add>, %214, %cst_54 [0] : vector<32x256xf32> to vector<256xf32>
    %216 = vector.shape_cast %215 : vector<256xf32> to vector<1x256xf32>
    %217 = arith.addf %164, %216 : vector<1x256xf32>
    %218 = arith.mulf %214, %214 : vector<32x256xf32>
    %cst_55 = arith.constant dense<0.000000e+00> : vector<256xf32>
    %219 = vector.multi_reduction <add>, %218, %cst_55 [0] : vector<32x256xf32> to vector<256xf32>
    %220 = vector.shape_cast %219 : vector<256xf32> to vector<1x256xf32>
    %221 = arith.addf %168, %220 : vector<1x256xf32>
    %c128_56 = arith.constant 128 : index
    %c0_57 = arith.constant 0 : index
    %222 = vector.load %arg0[%c128_56, %c0_57] : memref<256x256xf32, #tpu.memory_space<vmem>>, vector<32x256xf32>
    %223 = vector.extract_strided_slice %0 {offsets = [0, 0], sizes = [1, 256], strides = [1, 1]} : vector<9x256xf32> to vector<1x256xf32>
    %224 = vector.broadcast %223 : vector<1x256xf32> to vector<32x256xf32>
    %225 = arith.mulf %222, %224 : vector<32x256xf32>
    %c31_i32_58 = arith.constant 31 : i32
    %226 = tpu.dynamic_rotate %222 by %c31_i32_58 dim 0 : vector<32x256xf32>, i32 -> vector<32x256xf32>
    %227 = vector.extract_strided_slice %0 {offsets = [1, 0], sizes = [1, 256], strides = [1, 1]} : vector<9x256xf32> to vector<1x256xf32>
    %228 = vector.broadcast %227 : vector<1x256xf32> to vector<32x256xf32>
    %229 = arith.mulf %226, %228 : vector<32x256xf32>
    %230 = arith.addf %225, %229 : vector<32x256xf32>
    %c30_i32_59 = arith.constant 30 : i32
    %231 = tpu.dynamic_rotate %222 by %c30_i32_59 dim 0 : vector<32x256xf32>, i32 -> vector<32x256xf32>
    %232 = vector.extract_strided_slice %0 {offsets = [2, 0], sizes = [1, 256], strides = [1, 1]} : vector<9x256xf32> to vector<1x256xf32>
    %233 = vector.broadcast %232 : vector<1x256xf32> to vector<32x256xf32>
    %234 = arith.mulf %231, %233 : vector<32x256xf32>
    %235 = arith.addf %230, %234 : vector<32x256xf32>
    %c144 = arith.constant 144 : index
    %c0_60 = arith.constant 0 : index
    %236 = vector.load %arg0[%c144, %c0_60] : memref<256x256xf32, #tpu.memory_space<vmem>>, vector<32x256xf32>
    %237 = vector.extract_strided_slice %0 {offsets = [3, 0], sizes = [1, 256], strides = [1, 1]} : vector<9x256xf32> to vector<1x256xf32>
    %238 = vector.broadcast %237 : vector<1x256xf32> to vector<32x256xf32>
    %239 = arith.mulf %236, %238 : vector<32x256xf32>
    %240 = arith.addf %235, %239 : vector<32x256xf32>
    %c31_i32_61 = arith.constant 31 : i32
    %241 = tpu.dynamic_rotate %236 by %c31_i32_61 dim 0 : vector<32x256xf32>, i32 -> vector<32x256xf32>
    %242 = vector.extract_strided_slice %0 {offsets = [4, 0], sizes = [1, 256], strides = [1, 1]} : vector<9x256xf32> to vector<1x256xf32>
    %243 = vector.broadcast %242 : vector<1x256xf32> to vector<32x256xf32>
    %244 = arith.mulf %241, %243 : vector<32x256xf32>
    %245 = arith.addf %240, %244 : vector<32x256xf32>
    %c30_i32_62 = arith.constant 30 : i32
    %246 = tpu.dynamic_rotate %236 by %c30_i32_62 dim 0 : vector<32x256xf32>, i32 -> vector<32x256xf32>
    %247 = vector.extract_strided_slice %0 {offsets = [5, 0], sizes = [1, 256], strides = [1, 1]} : vector<9x256xf32> to vector<1x256xf32>
    %248 = vector.broadcast %247 : vector<1x256xf32> to vector<32x256xf32>
    %249 = arith.mulf %246, %248 : vector<32x256xf32>
    %250 = arith.addf %245, %249 : vector<32x256xf32>
    %c160 = arith.constant 160 : index
    %c0_63 = arith.constant 0 : index
    %251 = vector.load %arg0[%c160, %c0_63] : memref<256x256xf32, #tpu.memory_space<vmem>>, vector<32x256xf32>
    %252 = vector.extract_strided_slice %0 {offsets = [6, 0], sizes = [1, 256], strides = [1, 1]} : vector<9x256xf32> to vector<1x256xf32>
    %253 = vector.broadcast %252 : vector<1x256xf32> to vector<32x256xf32>
    %254 = arith.mulf %251, %253 : vector<32x256xf32>
    %255 = arith.addf %250, %254 : vector<32x256xf32>
    %c31_i32_64 = arith.constant 31 : i32
    %256 = tpu.dynamic_rotate %251 by %c31_i32_64 dim 0 : vector<32x256xf32>, i32 -> vector<32x256xf32>
    %257 = vector.extract_strided_slice %0 {offsets = [7, 0], sizes = [1, 256], strides = [1, 1]} : vector<9x256xf32> to vector<1x256xf32>
    %258 = vector.broadcast %257 : vector<1x256xf32> to vector<32x256xf32>
    %259 = arith.mulf %256, %258 : vector<32x256xf32>
    %260 = arith.addf %255, %259 : vector<32x256xf32>
    %c30_i32_65 = arith.constant 30 : i32
    %261 = tpu.dynamic_rotate %251 by %c30_i32_65 dim 0 : vector<32x256xf32>, i32 -> vector<32x256xf32>
    %262 = vector.extract_strided_slice %0 {offsets = [8, 0], sizes = [1, 256], strides = [1, 1]} : vector<9x256xf32> to vector<1x256xf32>
    %263 = vector.broadcast %262 : vector<1x256xf32> to vector<32x256xf32>
    %264 = arith.mulf %261, %263 : vector<32x256xf32>
    %265 = arith.addf %260, %264 : vector<32x256xf32>
    %c128_66 = arith.constant 128 : index
    %c0_67 = arith.constant 0 : index
    %266 = vector.load %arg6[%c128_66, %c0_67] : memref<224x256xf32, #tpu.memory_space<vmem>>, vector<32x256xf32>
    tpu.vector_store %arg6[%c128_66, %c0_67], %265 {strides = array<i32>} : memref<224x256xf32, #tpu.memory_space<vmem>>, vector<32x256xf32>,
    %267 = arith.mulf %265, %7 : vector<32x256xf32>
    %cst_68 = arith.constant dense<0.000000e+00> : vector<256xf32>
    %268 = vector.multi_reduction <add>, %267, %cst_68 [0] : vector<32x256xf32> to vector<256xf32>
    %269 = vector.shape_cast %268 : vector<256xf32> to vector<1x256xf32>
    %270 = arith.addf %217, %269 : vector<1x256xf32>
    %271 = arith.mulf %267, %267 : vector<32x256xf32>
    %cst_69 = arith.constant dense<0.000000e+00> : vector<256xf32>
    %272 = vector.multi_reduction <add>, %271, %cst_69 [0] : vector<32x256xf32> to vector<256xf32>
    %273 = vector.shape_cast %272 : vector<256xf32> to vector<1x256xf32>
    %274 = arith.addf %221, %273 : vector<1x256xf32>
    %c160_70 = arith.constant 160 : index
    %c0_71 = arith.constant 0 : index
    %275 = vector.load %arg0[%c160_70, %c0_71] : memref<256x256xf32, #tpu.memory_space<vmem>>, vector<32x256xf32>
    %276 = vector.extract_strided_slice %0 {offsets = [0, 0], sizes = [1, 256], strides = [1, 1]} : vector<9x256xf32> to vector<1x256xf32>
    %277 = vector.broadcast %276 : vector<1x256xf32> to vector<32x256xf32>
    %278 = arith.mulf %275, %277 : vector<32x256xf32>
    %c31_i32_72 = arith.constant 31 : i32
    %279 = tpu.dynamic_rotate %275 by %c31_i32_72 dim 0 : vector<32x256xf32>, i32 -> vector<32x256xf32>
    %280 = vector.extract_strided_slice %0 {offsets = [1, 0], sizes = [1, 256], strides = [1, 1]} : vector<9x256xf32> to vector<1x256xf32>
    %281 = vector.broadcast %280 : vector<1x256xf32> to vector<32x256xf32>
    %282 = arith.mulf %279, %281 : vector<32x256xf32>
    %283 = arith.addf %278, %282 : vector<32x256xf32>
    %c30_i32_73 = arith.constant 30 : i32
    %284 = tpu.dynamic_rotate %275 by %c30_i32_73 dim 0 : vector<32x256xf32>, i32 -> vector<32x256xf32>
    %285 = vector.extract_strided_slice %0 {offsets = [2, 0], sizes = [1, 256], strides = [1, 1]} : vector<9x256xf32> to vector<1x256xf32>
    %286 = vector.broadcast %285 : vector<1x256xf32> to vector<32x256xf32>
    %287 = arith.mulf %284, %286 : vector<32x256xf32>
    %288 = arith.addf %283, %287 : vector<32x256xf32>
    %c176 = arith.constant 176 : index
    %c0_74 = arith.constant 0 : index
    %289 = vector.load %arg0[%c176, %c0_74] : memref<256x256xf32, #tpu.memory_space<vmem>>, vector<32x256xf32>
    %290 = vector.extract_strided_slice %0 {offsets = [3, 0], sizes = [1, 256], strides = [1, 1]} : vector<9x256xf32> to vector<1x256xf32>
    %291 = vector.broadcast %290 : vector<1x256xf32> to vector<32x256xf32>
    %292 = arith.mulf %289, %291 : vector<32x256xf32>
    %293 = arith.addf %288, %292 : vector<32x256xf32>
    %c31_i32_75 = arith.constant 31 : i32
    %294 = tpu.dynamic_rotate %289 by %c31_i32_75 dim 0 : vector<32x256xf32>, i32 -> vector<32x256xf32>
    %295 = vector.extract_strided_slice %0 {offsets = [4, 0], sizes = [1, 256], strides = [1, 1]} : vector<9x256xf32> to vector<1x256xf32>
    %296 = vector.broadcast %295 : vector<1x256xf32> to vector<32x256xf32>
    %297 = arith.mulf %294, %296 : vector<32x256xf32>
    %298 = arith.addf %293, %297 : vector<32x256xf32>
    %c30_i32_76 = arith.constant 30 : i32
    %299 = tpu.dynamic_rotate %289 by %c30_i32_76 dim 0 : vector<32x256xf32>, i32 -> vector<32x256xf32>
    %300 = vector.extract_strided_slice %0 {offsets = [5, 0], sizes = [1, 256], strides = [1, 1]} : vector<9x256xf32> to vector<1x256xf32>
    %301 = vector.broadcast %300 : vector<1x256xf32> to vector<32x256xf32>
    %302 = arith.mulf %299, %301 : vector<32x256xf32>
    %303 = arith.addf %298, %302 : vector<32x256xf32>
    %c192 = arith.constant 192 : index
    %c0_77 = arith.constant 0 : index
    %304 = vector.load %arg0[%c192, %c0_77] : memref<256x256xf32, #tpu.memory_space<vmem>>, vector<32x256xf32>
    %305 = vector.extract_strided_slice %0 {offsets = [6, 0], sizes = [1, 256], strides = [1, 1]} : vector<9x256xf32> to vector<1x256xf32>
    %306 = vector.broadcast %305 : vector<1x256xf32> to vector<32x256xf32>
    %307 = arith.mulf %304, %306 : vector<32x256xf32>
    %308 = arith.addf %303, %307 : vector<32x256xf32>
    %c31_i32_78 = arith.constant 31 : i32
    %309 = tpu.dynamic_rotate %304 by %c31_i32_78 dim 0 : vector<32x256xf32>, i32 -> vector<32x256xf32>
    %310 = vector.extract_strided_slice %0 {offsets = [7, 0], sizes = [1, 256], strides = [1, 1]} : vector<9x256xf32> to vector<1x256xf32>
    %311 = vector.broadcast %310 : vector<1x256xf32> to vector<32x256xf32>
    %312 = arith.mulf %309, %311 : vector<32x256xf32>
    %313 = arith.addf %308, %312 : vector<32x256xf32>
    %c30_i32_79 = arith.constant 30 : i32
    %314 = tpu.dynamic_rotate %304 by %c30_i32_79 dim 0 : vector<32x256xf32>, i32 -> vector<32x256xf32>
    %315 = vector.extract_strided_slice %0 {offsets = [8, 0], sizes = [1, 256], strides = [1, 1]} : vector<9x256xf32> to vector<1x256xf32>
    %316 = vector.broadcast %315 : vector<1x256xf32> to vector<32x256xf32>
    %317 = arith.mulf %314, %316 : vector<32x256xf32>
    %318 = arith.addf %313, %317 : vector<32x256xf32>
    %c160_80 = arith.constant 160 : index
    %c0_81 = arith.constant 0 : index
    %319 = vector.load %arg6[%c160_80, %c0_81] : memref<224x256xf32, #tpu.memory_space<vmem>>, vector<32x256xf32>
    tpu.vector_store %arg6[%c160_80, %c0_81], %318 {strides = array<i32>} : memref<224x256xf32, #tpu.memory_space<vmem>>, vector<32x256xf32>,
    %320 = arith.mulf %318, %7 : vector<32x256xf32>
    %cst_82 = arith.constant dense<0.000000e+00> : vector<256xf32>
    %321 = vector.multi_reduction <add>, %320, %cst_82 [0] : vector<32x256xf32> to vector<256xf32>
    %322 = vector.shape_cast %321 : vector<256xf32> to vector<1x256xf32>
    %323 = arith.addf %270, %322 : vector<1x256xf32>
    %324 = arith.mulf %320, %320 : vector<32x256xf32>
    %cst_83 = arith.constant dense<0.000000e+00> : vector<256xf32>
    %325 = vector.multi_reduction <add>, %324, %cst_83 [0] : vector<32x256xf32> to vector<256xf32>
    %326 = vector.shape_cast %325 : vector<256xf32> to vector<1x256xf32>
    %327 = arith.addf %274, %326 : vector<1x256xf32>
    %c192_84 = arith.constant 192 : index
    %c0_85 = arith.constant 0 : index
    %328 = vector.load %arg0[%c192_84, %c0_85] : memref<256x256xf32, #tpu.memory_space<vmem>>, vector<32x256xf32>
    %329 = vector.extract_strided_slice %0 {offsets = [0, 0], sizes = [1, 256], strides = [1, 1]} : vector<9x256xf32> to vector<1x256xf32>
    %330 = vector.broadcast %329 : vector<1x256xf32> to vector<32x256xf32>
    %331 = arith.mulf %328, %330 : vector<32x256xf32>
    %c31_i32_86 = arith.constant 31 : i32
    %332 = tpu.dynamic_rotate %328 by %c31_i32_86 dim 0 : vector<32x256xf32>, i32 -> vector<32x256xf32>
    %333 = vector.extract_strided_slice %0 {offsets = [1, 0], sizes = [1, 256], strides = [1, 1]} : vector<9x256xf32> to vector<1x256xf32>
    %334 = vector.broadcast %333 : vector<1x256xf32> to vector<32x256xf32>
    %335 = arith.mulf %332, %334 : vector<32x256xf32>
    %336 = arith.addf %331, %335 : vector<32x256xf32>
    %c30_i32_87 = arith.constant 30 : i32
    %337 = tpu.dynamic_rotate %328 by %c30_i32_87 dim 0 : vector<32x256xf32>, i32 -> vector<32x256xf32>
    %338 = vector.extract_strided_slice %0 {offsets = [2, 0], sizes = [1, 256], strides = [1, 1]} : vector<9x256xf32> to vector<1x256xf32>
    %339 = vector.broadcast %338 : vector<1x256xf32> to vector<32x256xf32>
    %340 = arith.mulf %337, %339 : vector<32x256xf32>
    %341 = arith.addf %336, %340 : vector<32x256xf32>
    %c208 = arith.constant 208 : index
    %c0_88 = arith.constant 0 : index
    %342 = vector.load %arg0[%c208, %c0_88] : memref<256x256xf32, #tpu.memory_space<vmem>>, vector<32x256xf32>
    %343 = vector.extract_strided_slice %0 {offsets = [3, 0], sizes = [1, 256], strides = [1, 1]} : vector<9x256xf32> to vector<1x256xf32>
    %344 = vector.broadcast %343 : vector<1x256xf32> to vector<32x256xf32>
    %345 = arith.mulf %342, %344 : vector<32x256xf32>
    %346 = arith.addf %341, %345 : vector<32x256xf32>
    %c31_i32_89 = arith.constant 31 : i32
    %347 = tpu.dynamic_rotate %342 by %c31_i32_89 dim 0 : vector<32x256xf32>, i32 -> vector<32x256xf32>
    %348 = vector.extract_strided_slice %0 {offsets = [4, 0], sizes = [1, 256], strides = [1, 1]} : vector<9x256xf32> to vector<1x256xf32>
    %349 = vector.broadcast %348 : vector<1x256xf32> to vector<32x256xf32>
    %350 = arith.mulf %347, %349 : vector<32x256xf32>
    %351 = arith.addf %346, %350 : vector<32x256xf32>
    %c30_i32_90 = arith.constant 30 : i32
    %352 = tpu.dynamic_rotate %342 by %c30_i32_90 dim 0 : vector<32x256xf32>, i32 -> vector<32x256xf32>
    %353 = vector.extract_strided_slice %0 {offsets = [5, 0], sizes = [1, 256], strides = [1, 1]} : vector<9x256xf32> to vector<1x256xf32>
    %354 = vector.broadcast %353 : vector<1x256xf32> to vector<32x256xf32>
    %355 = arith.mulf %352, %354 : vector<32x256xf32>
    %356 = arith.addf %351, %355 : vector<32x256xf32>
    %c224 = arith.constant 224 : index
    %c0_91 = arith.constant 0 : index
    %357 = vector.load %arg0[%c224, %c0_91] : memref<256x256xf32, #tpu.memory_space<vmem>>, vector<32x256xf32>
    %358 = vector.extract_strided_slice %0 {offsets = [6, 0], sizes = [1, 256], strides = [1, 1]} : vector<9x256xf32> to vector<1x256xf32>
    %359 = vector.broadcast %358 : vector<1x256xf32> to vector<32x256xf32>
    %360 = arith.mulf %357, %359 : vector<32x256xf32>
    %361 = arith.addf %356, %360 : vector<32x256xf32>
    %c31_i32_92 = arith.constant 31 : i32
    %362 = tpu.dynamic_rotate %357 by %c31_i32_92 dim 0 : vector<32x256xf32>, i32 -> vector<32x256xf32>
    %363 = vector.extract_strided_slice %0 {offsets = [7, 0], sizes = [1, 256], strides = [1, 1]} : vector<9x256xf32> to vector<1x256xf32>
    %364 = vector.broadcast %363 : vector<1x256xf32> to vector<32x256xf32>
    %365 = arith.mulf %362, %364 : vector<32x256xf32>
    %366 = arith.addf %361, %365 : vector<32x256xf32>
    %c30_i32_93 = arith.constant 30 : i32
    %367 = tpu.dynamic_rotate %357 by %c30_i32_93 dim 0 : vector<32x256xf32>, i32 -> vector<32x256xf32>
    %368 = vector.extract_strided_slice %0 {offsets = [8, 0], sizes = [1, 256], strides = [1, 1]} : vector<9x256xf32> to vector<1x256xf32>
    %369 = vector.broadcast %368 : vector<1x256xf32> to vector<32x256xf32>
    %370 = arith.mulf %367, %369 : vector<32x256xf32>
    %371 = arith.addf %366, %370 : vector<32x256xf32>
    %c192_94 = arith.constant 192 : index
    %c0_95 = arith.constant 0 : index
    %372 = vector.load %arg6[%c192_94, %c0_95] : memref<224x256xf32, #tpu.memory_space<vmem>>, vector<32x256xf32>
    tpu.vector_store %arg6[%c192_94, %c0_95], %371 {strides = array<i32>} : memref<224x256xf32, #tpu.memory_space<vmem>>, vector<32x256xf32>,
    %373 = arith.mulf %371, %7 : vector<32x256xf32>
    %cst_96 = arith.constant dense<0.000000e+00> : vector<256xf32>
    %374 = vector.multi_reduction <add>, %373, %cst_96 [0] : vector<32x256xf32> to vector<256xf32>
    %375 = vector.shape_cast %374 : vector<256xf32> to vector<1x256xf32>
    %376 = arith.addf %323, %375 : vector<1x256xf32>
    %377 = arith.mulf %373, %373 : vector<32x256xf32>
    %cst_97 = arith.constant dense<0.000000e+00> : vector<256xf32>
    %378 = vector.multi_reduction <add>, %377, %cst_97 [0] : vector<32x256xf32> to vector<256xf32>
    %379 = vector.shape_cast %378 : vector<256xf32> to vector<1x256xf32>
    %380 = arith.addf %327, %379 : vector<1x256xf32>
    %cst_98 = arith.constant 1.960000e+02 : f32
    %381 = vector.broadcast %cst_98 : f32 to vector<1x256xf32>
    %382 = arith.divf %376, %381 : vector<1x256xf32>
    %cst_99 = arith.constant 1.960000e+02 : f32
    %383 = vector.broadcast %cst_99 : f32 to vector<1x256xf32>
    %384 = arith.divf %380, %383 : vector<1x256xf32>
    %385 = arith.mulf %382, %382 : vector<1x256xf32>
    %386 = arith.subf %384, %385 : vector<1x256xf32>
    %cst_100 = arith.constant 0.000000e+00 : f32
    %387 = vector.broadcast %cst_100 : f32 to vector<1x256xf32>
    %388 = arith.maximumf %386, %387 : vector<1x256xf32>
    %cst_101 = arith.constant 9.99999974E-6 : f32
    %389 = vector.broadcast %cst_101 : f32 to vector<1x256xf32>
    %390 = arith.addf %388, %389 : vector<1x256xf32>
    %391 = math.rsqrt %390 : vector<1x256xf32>
    %c0_102 = arith.constant 0 : index
    %c0_103 = arith.constant 0 : index
    %392 = vector.load %arg2[%c0_102, %c0_103] : memref<1x256xf32, #tpu.memory_space<vmem>>, vector<1x256xf32>
    %393 = arith.mulf %392, %391 : vector<1x256xf32>
    %c0_104 = arith.constant 0 : index
    %c0_105 = arith.constant 0 : index
    %394 = vector.load %arg3[%c0_104, %c0_105] : memref<1x256xf32, #tpu.memory_space<vmem>>, vector<1x256xf32>
    %395 = arith.mulf %382, %393 : vector<1x256xf32>
    %396 = arith.subf %394, %395 : vector<1x256xf32>
    %c0_106 = arith.constant 0 : index
    %c0_107 = arith.constant 0 : index
    %397 = vector.load %arg6[%c0_106, %c0_107] : memref<224x256xf32, #tpu.memory_space<vmem>>, vector<32x256xf32>
    %398 = vector.broadcast %393 : vector<1x256xf32> to vector<32x256xf32>
    %399 = arith.mulf %397, %398 : vector<32x256xf32>
    %400 = vector.broadcast %396 : vector<1x256xf32> to vector<32x256xf32>
    %401 = arith.addf %399, %400 : vector<32x256xf32>
    %402 = arith.truncf %401 : vector<32x256xf32> to vector<32x256xbf16>
    %c0_108 = arith.constant 0 : index
    %c0_109 = arith.constant 0 : index
    %403 = vector.load %arg7[%c0_108, %c0_109] : memref<224x256xbf16, #tpu.memory_space<vmem>>, vector<32x256xbf16>
    tpu.vector_store %arg7[%c0_108, %c0_109], %402 {strides = array<i32>} : memref<224x256xbf16, #tpu.memory_space<vmem>>, vector<32x256xbf16>,
    %c32_110 = arith.constant 32 : index
    %c0_111 = arith.constant 0 : index
    %404 = vector.load %arg6[%c32_110, %c0_111] : memref<224x256xf32, #tpu.memory_space<vmem>>, vector<32x256xf32>
    %405 = vector.broadcast %393 : vector<1x256xf32> to vector<32x256xf32>
    %406 = arith.mulf %404, %405 : vector<32x256xf32>
    %407 = vector.broadcast %396 : vector<1x256xf32> to vector<32x256xf32>
    %408 = arith.addf %406, %407 : vector<32x256xf32>
    %409 = arith.truncf %408 : vector<32x256xf32> to vector<32x256xbf16>
    %c32_112 = arith.constant 32 : index
    %c0_113 = arith.constant 0 : index
    %410 = vector.load %arg7[%c32_112, %c0_113] : memref<224x256xbf16, #tpu.memory_space<vmem>>, vector<32x256xbf16>
    tpu.vector_store %arg7[%c32_112, %c0_113], %409 {strides = array<i32>} : memref<224x256xbf16, #tpu.memory_space<vmem>>, vector<32x256xbf16>,
    %c64_114 = arith.constant 64 : index
    %c0_115 = arith.constant 0 : index
    %411 = vector.load %arg6[%c64_114, %c0_115] : memref<224x256xf32, #tpu.memory_space<vmem>>, vector<32x256xf32>
    %412 = vector.broadcast %393 : vector<1x256xf32> to vector<32x256xf32>
    %413 = arith.mulf %411, %412 : vector<32x256xf32>
    %414 = vector.broadcast %396 : vector<1x256xf32> to vector<32x256xf32>
    %415 = arith.addf %413, %414 : vector<32x256xf32>
    %416 = arith.truncf %415 : vector<32x256xf32> to vector<32x256xbf16>
    %c64_116 = arith.constant 64 : index
    %c0_117 = arith.constant 0 : index
    %417 = vector.load %arg7[%c64_116, %c0_117] : memref<224x256xbf16, #tpu.memory_space<vmem>>, vector<32x256xbf16>
    tpu.vector_store %arg7[%c64_116, %c0_117], %416 {strides = array<i32>} : memref<224x256xbf16, #tpu.memory_space<vmem>>, vector<32x256xbf16>,
    %c96_118 = arith.constant 96 : index
    %c0_119 = arith.constant 0 : index
    %418 = vector.load %arg6[%c96_118, %c0_119] : memref<224x256xf32, #tpu.memory_space<vmem>>, vector<32x256xf32>
    %419 = vector.broadcast %393 : vector<1x256xf32> to vector<32x256xf32>
    %420 = arith.mulf %418, %419 : vector<32x256xf32>
    %421 = vector.broadcast %396 : vector<1x256xf32> to vector<32x256xf32>
    %422 = arith.addf %420, %421 : vector<32x256xf32>
    %423 = arith.truncf %422 : vector<32x256xf32> to vector<32x256xbf16>
    %c96_120 = arith.constant 96 : index
    %c0_121 = arith.constant 0 : index
    %424 = vector.load %arg7[%c96_120, %c0_121] : memref<224x256xbf16, #tpu.memory_space<vmem>>, vector<32x256xbf16>
    tpu.vector_store %arg7[%c96_120, %c0_121], %423 {strides = array<i32>} : memref<224x256xbf16, #tpu.memory_space<vmem>>, vector<32x256xbf16>,
    %c128_122 = arith.constant 128 : index
    %c0_123 = arith.constant 0 : index
    %425 = vector.load %arg6[%c128_122, %c0_123] : memref<224x256xf32, #tpu.memory_space<vmem>>, vector<32x256xf32>
    %426 = vector.broadcast %393 : vector<1x256xf32> to vector<32x256xf32>
    %427 = arith.mulf %425, %426 : vector<32x256xf32>
    %428 = vector.broadcast %396 : vector<1x256xf32> to vector<32x256xf32>
    %429 = arith.addf %427, %428 : vector<32x256xf32>
    %430 = arith.truncf %429 : vector<32x256xf32> to vector<32x256xbf16>
    %c128_124 = arith.constant 128 : index
    %c0_125 = arith.constant 0 : index
    %431 = vector.load %arg7[%c128_124, %c0_125] : memref<224x256xbf16, #tpu.memory_space<vmem>>, vector<32x256xbf16>
    tpu.vector_store %arg7[%c128_124, %c0_125], %430 {strides = array<i32>} : memref<224x256xbf16, #tpu.memory_space<vmem>>, vector<32x256xbf16>,
    %c160_126 = arith.constant 160 : index
    %c0_127 = arith.constant 0 : index
    %432 = vector.load %arg6[%c160_126, %c0_127] : memref<224x256xf32, #tpu.memory_space<vmem>>, vector<32x256xf32>
    %433 = vector.broadcast %393 : vector<1x256xf32> to vector<32x256xf32>
    %434 = arith.mulf %432, %433 : vector<32x256xf32>
    %435 = vector.broadcast %396 : vector<1x256xf32> to vector<32x256xf32>
    %436 = arith.addf %434, %435 : vector<32x256xf32>
    %437 = arith.truncf %436 : vector<32x256xf32> to vector<32x256xbf16>
    %c160_128 = arith.constant 160 : index
    %c0_129 = arith.constant 0 : index
    %438 = vector.load %arg7[%c160_128, %c0_129] : memref<224x256xbf16, #tpu.memory_space<vmem>>, vector<32x256xbf16>
    tpu.vector_store %arg7[%c160_128, %c0_129], %437 {strides = array<i32>} : memref<224x256xbf16, #tpu.memory_space<vmem>>, vector<32x256xbf16>,
    %c192_130 = arith.constant 192 : index
    %c0_131 = arith.constant 0 : index
    %439 = vector.load %arg6[%c192_130, %c0_131] : memref<224x256xf32, #tpu.memory_space<vmem>>, vector<32x256xf32>
    %440 = vector.broadcast %393 : vector<1x256xf32> to vector<32x256xf32>
    %441 = arith.mulf %439, %440 : vector<32x256xf32>
    %442 = vector.broadcast %396 : vector<1x256xf32> to vector<32x256xf32>
    %443 = arith.addf %441, %442 : vector<32x256xf32>
    %444 = arith.truncf %443 : vector<32x256xf32> to vector<32x256xbf16>
    %c192_132 = arith.constant 192 : index
    %c0_133 = arith.constant 0 : index
    %445 = vector.load %arg7[%c192_132, %c0_133] : memref<224x256xbf16, #tpu.memory_space<vmem>>, vector<32x256xbf16>
    tpu.vector_store %arg7[%c192_132, %c0_133], %444 {strides = array<i32>} : memref<224x256xbf16, #tpu.memory_space<vmem>>, vector<32x256xbf16>,
    %c0_134 = arith.constant 0 : index
    %c0_135 = arith.constant 0 : index
    %446 = vector.load %arg7[%c0_134, %c0_135] : memref<224x256xbf16, #tpu.memory_space<vmem>>, vector<224x256xbf16>
    %c0_136 = arith.constant 0 : index
    %c0_137 = arith.constant 0 : index
    %447 = vector.load %arg4[%c0_136, %c0_137] : memref<256x256xbf16, #tpu.memory_space<vmem>>, vector<256x256xbf16>
    %cst_138 = arith.constant dense<0.000000e+00> : vector<224x256xf32>
    %448 = tpu.matmul %446, %447, %cst_138 {dimension_numbers = #tpu.dot_dimension_numbers<[1], [0], [0], [1], [0, 0, 1, 1], [], []>} : vector<224x256xbf16>, vector<256x256xbf16>, vector<224x256xf32> -> vector<224x256xf32>
    %c0_139 = arith.constant 0 : index
    %c0_140 = arith.constant 0 : index
    %449 = vector.load %arg5[%c0_139, %c0_140] : memref<224x256xf32, #tpu.memory_space<vmem>>, vector<224x256xf32>
    tpu.vector_store %arg5[%c0_139, %c0_140], %448 {strides = array<i32>} : memref<224x256xf32, #tpu.memory_space<vmem>>, vector<224x256xf32>,
    return
  }
}

</mosaic_0001>

<llo_original>
// kernel: module_forward.1
$region0: #{module_forward.1}
  #allocation0 [shape = 'u32[]', space=smem, size = 0x4, offset = 0x4, fixed_abs, tag = 'smem constant byte address 0x4 - core index']
  #allocation1 [shape = 'u32[72,128]{1,0:T(1,128)}', space=vmem, size = 0x9000, scoped, tag = 'internal scratch']
  #allocation2 [shape = 'f32[224,256]{1,0:T(8,128)}', space=vmem, size = 0x38000, scoped, tag = 'scratch operand']
  #allocation3 [shape = 'bf16[224,256]{1,0:T(8,128)(2,1)}', space=vmem, size = 0x1c000, scoped, tag = 'scratch operand']
  %s0 = inlined_call_operand.vmem [shape: f32[256,256], index: 0, kind: input, shape index: {}]
  %s1 = inlined_call_operand.vmem [shape: f32[9,256], index: 1, kind: input, shape index: {}]
  %s2 = inlined_call_operand.vmem [shape: f32[1,256], index: 2, kind: input, shape index: {}]
  %s3 = inlined_call_operand.vmem [shape: f32[1,256], index: 3, kind: input, shape index: {}]
  %s4 = inlined_call_operand.vmem [shape: bf16[256,256], index: 4, kind: input, shape index: {}]
  %s5 = inlined_call_operand.vmem [shape: f32[224,256], index: 5, kind: output, shape index: {}]
  %s6 = sld [smem:[#allocation0]]
  $region30: #{module_forward.1} parent=0
    _
  %s8 = ssub.s32 1, %s6
  %s9 = scalar_select 0, %s8, %s6
  // Predicated region
  $region2: #{module_forward.1} parent=0 // pred_check
    _
  $region3: #{module_forward.1} parent=0 // pred_check_branch
    %11 = sbr.rel (0) target = $region5
  $region4: #{module_forward.1} parent=0 // pred_region
    _
  $region5: #{module_forward.1} parent=0 // pred_fallthru
    _
  // Predicated region
  $region6: #{module_forward.1} parent=0 // pred_check
    _
  $region7: #{module_forward.1} parent=0 // pred_check_branch
    %13 = sbr.rel (0) target = $region9
  $region8: #{module_forward.1} parent=0 // pred_region
    _
  $region9: #{module_forward.1} parent=0 // pred_fallthru
    _
  // Predicated region
  $region10: #{module_forward.1} parent=0 // pred_check
    _
  $region11: #{module_forward.1} parent=0 // pred_check_branch
    %15 = sbr.rel (0) target = $region13
  $region12: #{module_forward.1} parent=0 // pred_region
    _
  $region13: #{module_forward.1} parent=0 // pred_fallthru
    _
  // Predicated region
  $region14: #{module_forward.1} parent=0 // pred_check
    _
  $region15: #{module_forward.1} parent=0 // pred_check_branch
    %17 = sbr.rel (0) target = $region17
  $region16: #{module_forward.1} parent=0 // pred_region
    _
  $region17: #{module_forward.1} parent=0 // pred_fallthru
    _
  // Predicated region
  $region18: #{module_forward.1} parent=0 // pred_check
    _
  $region19: #{module_forward.1} parent=0 // pred_check_branch
    %19 = sbr.rel (0) target = $region21
  $region20: #{module_forward.1} parent=0 // pred_region
    _
  $region21: #{module_forward.1} parent=0 // pred_fallthru
    _
  %v20 = vld [vmem:[%s1] sm:$0xff]
  %v21 = vld [vmem:[%s1 + $0x8] sm:$0xff]
  %v22 = vld [vmem:[%s1 + $0x10] sm:$0x1]
  %v23 = vld [vmem:[%s1 + $0x18] sm:$0x1]
  %v24 = vlaneseq
  %v25 = vshrl.u32 %v24, 7
  %v26 = vadd.s32 %v25, 8
  %v27 = vadd.s32 %v25, 16
  %v28 = vadd.s32 %v25, 24
  %v29 = vand.u32 %v25, 15
  %v30 = vand.u32 %v26, 15
  %v31 = vand.u32 %v27, 15
  %v32 = vand.u32 %v28, 15
  %vm33 = vcmp.lt.s32.totalorder %v29, 14
  %vm34 = vcmp.lt.s32.totalorder %v30, 14
  %vm35 = vcmp.lt.s32.totalorder %v31, 14
  %vm36 = vcmp.lt.s32.totalorder %v32, 14
  %v37 = vsel %vm33, 1, 0
  %v38 = vsel %vm34, 1, 0
  %v39 = vsel %vm35, 1, 0
  %v40 = vsel %vm36, 1, 0
  %v41 = vcvt.s32.f32 %v37
  %v42 = vcvt.s32.f32 %v38
  %v43 = vcvt.s32.f32 %v39
  %v44 = vcvt.s32.f32 %v40
  %v45 = vld [vmem:[%s0] sm:$0xff]
  %v46 = vld [vmem:[%s0 + $0x8] sm:$0xff]
  %v47 = vld [vmem:[%s0 + $0x10] sm:$0xff]
  %v48 = vld [vmem:[%s0 + $0x18] sm:$0xff]
  %v49 = vld [vmem:[%s0 + $0x20] sm:$0xff]
  %v50 = vld [vmem:[%s0 + $0x28] sm:$0xff]
  %v51 = vld [vmem:[%s0 + $0x30] sm:$0xff]
  %v52 = vld [vmem:[%s0 + $0x38] sm:$0xff]
  %v53 = vperm.slane %v20, 0
  %v54 = vperm.slane %v21, 0
  %v55 = vmul.f32 %v45, %v53
  %v56 = vmul.f32 %v46, %v54
  %v57 = vmul.f32 %v47, %v53
  %v58 = vmul.f32 %v48, %v54
  %v59 = vmul.f32 %v49, %v53
  %v60 = vmul.f32 %v50, %v54
  %v61 = vmul.f32 %v51, %v53
  %v62 = vmul.f32 %v52, %v54
  %v63 = vrot.slane %v45, 1
  %v64 = vrot.slane %v46, 1
  %v65 = vrot.slane %v47, 1
  %v66 = vrot.slane %v48, 1
  %v67 = vrot.slane %v49, 1
  %v68 = vrot.slane %v50, 1
  %v69 = vrot.slane %v51, 1
  %v70 = vrot.slane %v52, 1
  %vm71 = vcmp.lt.s32.totalorder %v25, 7
  %v72 = vsel %vm71, %v67, %v69
  %v73 = vsel %vm71, %v68, %v70
  %v74 = vsel %vm71, %v65, %v67
  %v75 = vsel %vm71, %v66, %v68
  %v76 = vsel %vm71, %v63, %v65
  %v77 = vsel %vm71, %v64, %v66
  %v78 = vsel %vm71, %v69, %v63
  %v79 = vsel %vm71, %v70, %v64
  %v80 = vperm.slane %v20, 1
  %v81 = vperm.slane %v21, 1
  %v82 = vmul.f32 %v76, %v80
  %v83 = vmul.f32 %v77, %v81
  %v84 = vmul.f32 %v74, %v80
  %v85 = vmul.f32 %v75, %v81
  %v86 = vmul.f32 %v72, %v80
  %v87 = vmul.f32 %v73, %v81
  %v88 = vmul.f32 %v78, %v80
  %v89 = vmul.f32 %v79, %v81
  %v90 = vadd.f32 %v55, %v82
  %v91 = vadd.f32 %v56, %v83
  %v92 = vadd.f32 %v57, %v84
  %v93 = vadd.f32 %v58, %v85
  %v94 = vadd.f32 %v59, %v86
  %v95 = vadd.f32 %v60, %v87
  %v96 = vadd.f32 %v61, %v88
  %v97 = vadd.f32 %v62, %v89
  %v98 = vrot.slane %v45, 2
  %v99 = vrot.slane %v46, 2
  %v100 = vrot.slane %v47, 2
  %v101 = vrot.slane %v48, 2
  %v102 = vrot.slane %v49, 2
  %v103 = vrot.slane %v50, 2
  %v104 = vrot.slane %v51, 2
  %v105 = vrot.slane %v52, 2
  %vm106 = vcmp.lt.s32.totalorder %v25, 6
  %v107 = vsel %vm106, %v102, %v104
  %v108 = vsel %vm106, %v103, %v105
  %v109 = vsel %vm106, %v100, %v102
  %v110 = vsel %vm106, %v101, %v103
  %v111 = vsel %vm106, %v98, %v100
  %v112 = vsel %vm106, %v99, %v101
  %v113 = vsel %vm106, %v104, %v98
  %v114 = vsel %vm106, %v105, %v99
  %v115 = vperm.slane %v20, 2
  %v116 = vperm.slane %v21, 2
  %v117 = vmul.f32 %v111, %v115
  %v118 = vmul.f32 %v112, %v116
  %v119 = vmul.f32 %v109, %v115
  %v120 = vmul.f32 %v110, %v116
  %v121 = vmul.f32 %v107, %v115
  %v122 = vmul.f32 %v108, %v116
  %v123 = vmul.f32 %v113, %v115
  %v124 = vmul.f32 %v114, %v116
  %v125 = vadd.f32 %v90, %v117
  %v126 = vadd.f32 %v91, %v118
  %v127 = vadd.f32 %v92, %v119
  %v128 = vadd.f32 %v93, %v120
  %v129 = vadd.f32 %v94, %v121
  %v130 = vadd.f32 %v95, %v122
  %v131 = vadd.f32 %v96, %v123
  %v132 = vadd.f32 %v97, %v124
  %v133 = vld [vmem:[%s0 + $0x40] sm:$0xff]
  %v134 = vld [vmem:[%s0 + $0x48] sm:$0xff]
  %v135 = vld [vmem:[%s0 + $0x50] sm:$0xff]
  %v136 = vld [vmem:[%s0 + $0x58] sm:$0xff]
  %v137 = vperm.slane %v20, 3
  %v138 = vperm.slane %v21, 3
  %v139 = vmul.f32 %v49, %v137
  %v140 = vmul.f32 %v50, %v138
  %v141 = vmul.f32 %v51, %v137
  %v142 = vmul.f32 %v52, %v138
  %v143 = vmul.f32 %v133, %v137
  %v144 = vmul.f32 %v134, %v138
  %v145 = vmul.f32 %v135, %v137
  %v146 = vmul.f32 %v136, %v138
  %v147 = vadd.f32 %v125, %v139
  %v148 = vadd.f32 %v126, %v140
  %v149 = vadd.f32 %v127, %v141
  %v150 = vadd.f32 %v128, %v142
  %v151 = vadd.f32 %v129, %v143
  %v152 = vadd.f32 %v130, %v144
  %v153 = vadd.f32 %v131, %v145
  %v154 = vadd.f32 %v132, %v146
  %v155 = vrot.slane %v133, 1
  %v156 = vrot.slane %v134, 1
  %v157 = vrot.slane %v135, 1
  %v158 = vrot.slane %v136, 1
  %v159 = vsel %vm71, %v155, %v157
  %v160 = vsel %vm71, %v156, %v158
  %v161 = vsel %vm71, %v69, %v155
  %v162 = vsel %vm71, %v70, %v156
  %v163 = vsel %vm71, %v157, %v67
  %v164 = vsel %vm71, %v158, %v68
  %v165 = vperm.slane %v20, 4
  %v166 = vperm.slane %v21, 4
  %v167 = vmul.f32 %v72, %v165
  %v168 = vmul.f32 %v73, %v166
  %v169 = vmul.f32 %v161, %v165
  %v170 = vmul.f32 %v162, %v166
  %v171 = vmul.f32 %v159, %v165
  %v172 = vmul.f32 %v160, %v166
  %v173 = vmul.f32 %v163, %v165
  %v174 = vmul.f32 %v164, %v166
  %v175 = vadd.f32 %v147, %v167
  %v176 = vadd.f32 %v148, %v168
  %v177 = vadd.f32 %v149, %v169
  %v178 = vadd.f32 %v150, %v170
  %v179 = vadd.f32 %v151, %v171
  %v180 = vadd.f32 %v152, %v172
  %v181 = vadd.f32 %v153, %v173
  %v182 = vadd.f32 %v154, %v174
  %v183 = vrot.slane %v133, 2
  %v184 = vrot.slane %v134, 2
  %v185 = vrot.slane %v135, 2
  %v186 = vrot.slane %v136, 2
  %v187 = vsel %vm106, %v183, %v185
  %v188 = vsel %vm106, %v184, %v186
  %v189 = vsel %vm106, %v104, %v183
  %v190 = vsel %vm106, %v105, %v184
  %v191 = vsel %vm106, %v185, %v102
  %v192 = vsel %vm106, %v186, %v103
  %v193 = vperm.slane %v20, 5
  %v194 = vperm.slane %v21, 5
  %v195 = vmul.f32 %v107, %v193
  %v196 = vmul.f32 %v108, %v194
  %v197 = vmul.f32 %v189, %v193
  %v198 = vmul.f32 %v190, %v194
  %v199 = vmul.f32 %v187, %v193
  %v200 = vmul.f32 %v188, %v194
  %v201 = vmul.f32 %v191, %v193
  %v202 = vmul.f32 %v192, %v194
  %v203 = vadd.f32 %v175, %v195
  %v204 = vadd.f32 %v176, %v196
  %v205 = vadd.f32 %v177, %v197
  %v206 = vadd.f32 %v178, %v198
  %v207 = vadd.f32 %v179, %v199
  %v208 = vadd.f32 %v180, %v200
  %v209 = vadd.f32 %v181, %v201
  %v210 = vadd.f32 %v182, %v202
  %v211 = vld [vmem:[%s0 + $0x60] sm:$0xff]
  %v212 = vld [vmem:[%s0 + $0x68] sm:$0xff]
  %v213 = vld [vmem:[%s0 + $0x70] sm:$0xff]
  %v214 = vld [vmem:[%s0 + $0x78] sm:$0xff]
  %v215 = vperm.slane %v20, 6
  %v216 = vperm.slane %v21, 6
  %v217 = vmul.f32 %v133, %v215
  %v218 = vmul.f32 %v134, %v216
  %v219 = vmul.f32 %v135, %v215
  %v220 = vmul.f32 %v136, %v216
  %v221 = vmul.f32 %v211, %v215
  %v222 = vmul.f32 %v212, %v216
  %v223 = vmul.f32 %v213, %v215
  %v224 = vmul.f32 %v214, %v216
  %v225 = vadd.f32 %v203, %v217
  %v226 = vadd.f32 %v204, %v218
  %v227 = vadd.f32 %v205, %v219
  %v228 = vadd.f32 %v206, %v220
  %v229 = vadd.f32 %v207, %v221
  %v230 = vadd.f32 %v208, %v222
  %v231 = vadd.f32 %v209, %v223
  %v232 = vadd.f32 %v210, %v224
  %v233 = vrot.slane %v211, 1
  %v234 = vrot.slane %v212, 1
  %v235 = vrot.slane %v213, 1
  %v236 = vrot.slane %v214, 1
  %v237 = vsel %vm71, %v233, %v235
  %v238 = vsel %vm71, %v234, %v236
  %v239 = vsel %vm71, %v157, %v233
  %v240 = vsel %vm71, %v158, %v234
  %v241 = vsel %vm71, %v235, %v155
  %v242 = vsel %vm71, %v236, %v156
  %v243 = vperm.slane %v20, 7
  %v244 = vperm.slane %v21, 7
  %v245 = vmul.f32 %v159, %v243
  %v246 = vmul.f32 %v160, %v244
  %v247 = vmul.f32 %v239, %v243
  %v248 = vmul.f32 %v240, %v244
  %v249 = vmul.f32 %v237, %v243
  %v250 = vmul.f32 %v238, %v244
  %v251 = vmul.f32 %v241, %v243
  %v252 = vmul.f32 %v242, %v244
  %v253 = vadd.f32 %v225, %v245
  %v254 = vadd.f32 %v226, %v246
  %v255 = vadd.f32 %v227, %v247
  %v256 = vadd.f32 %v228, %v248
  %v257 = vadd.f32 %v229, %v249
  %v258 = vadd.f32 %v230, %v250
  %v259 = vadd.f32 %v231, %v251
  %v260 = vadd.f32 %v232, %v252
  %v261 = vrot.slane %v211, 2
  %v262 = vrot.slane %v212, 2
  %v263 = vrot.slane %v213, 2
  %v264 = vrot.slane %v214, 2
  %v265 = vsel %vm106, %v261, %v263
  %v266 = vsel %vm106, %v262, %v264
  %v267 = vsel %vm106, %v185, %v261
  %v268 = vsel %vm106, %v186, %v262
  %v269 = vsel %vm106, %v263, %v183
  %v270 = vsel %vm106, %v264, %v184
  %v271 = vperm.slane %v22, 0
  %v272 = vperm.slane %v23, 0
  %v273 = vmul.f32 %v187, %v271
  %v274 = vmul.f32 %v188, %v272
  %v275 = vmul.f32 %v267, %v271
  %v276 = vmul.f32 %v268, %v272
  %v277 = vmul.f32 %v265, %v271
  %v278 = vmul.f32 %v266, %v272
  %v279 = vmul.f32 %v269, %v271
  %v280 = vmul.f32 %v270, %v272
  %v281 = vadd.f32 %v253, %v273
  %v282 = vadd.f32 %v254, %v274
  %v283 = vadd.f32 %v255, %v275
  %v284 = vadd.f32 %v256, %v276
  %v285 = vadd.f32 %v257, %v277
  %v286 = vadd.f32 %v258, %v278
  %v287 = vadd.f32 %v259, %v279
  %v288 = vadd.f32 %v260, %v280
  %289 = vst [vmem:[#allocation2] sm:$0xff] %v281
  %290 = vst [vmem:[#allocation2 + $0x8] sm:$0xff] %v282
  %291 = vst [vmem:[#allocation2 + $0x10] sm:$0xff] %v283
  %292 = vst [vmem:[#allocation2 + $0x18] sm:$0xff] %v284
  %293 = vst [vmem:[#allocation2 + $0x20] sm:$0xff] %v285
  %294 = vst [vmem:[#allocation2 + $0x28] sm:$0xff] %v286
  %295 = vst [vmem:[#allocation2 + $0x30] sm:$0xff] %v287
  %296 = vst [vmem:[#allocation2 + $0x38] sm:$0xff] %v288
  %v297 = vmul.f32 %v281, %v41
  %v298 = vmul.f32 %v282, %v41
  %v299 = vmul.f32 %v283, %v42
  %v300 = vmul.f32 %v284, %v42
  %v301 = vmul.f32 %v285, %v43
  %v302 = vmul.f32 %v286, %v43
  %v303 = vmul.f32 %v287, %v44
  %v304 = vmul.f32 %v288, %v44
  %v305 = vadd.f32 %v297, %v299
  %v306 = vadd.f32 %v305, %v301
  %v307 = vadd.f32 %v306, %v303
  %v308 = vrot.slane %v307, 4
  %v309 = vadd.f32 %v307, %v308
  %v310 = vrot.slane %v309, 2
  %v311 = vadd.f32 %v309, %v310
  %v312 = vrot.slane %v311, 1
  %v313 = vadd.f32 %v311, %v312
  %v314 = vadd.f32 %v298, %v300
  %v315 = vadd.f32 %v314, %v302
  %v316 = vadd.f32 %v315, %v304
  %v317 = vrot.slane %v316, 4
  %v318 = vadd.f32 %v316, %v317
  %v319 = vrot.slane %v318, 2
  %v320 = vadd.f32 %v318, %v319
  %v321 = vrot.slane %v320, 1
  %v322 = vadd.f32 %v320, %v321
  %v323 = vadd.f32 %v313, 0.0
  %v324 = vadd.f32 %v322, 0.0
  %v325 = vmul.f32 %v297, %v297
  %v326 = vmul.f32 %v298, %v298
  %v327 = vmul.f32 %v299, %v299
  %v328 = vmul.f32 %v300, %v300
  %v329 = vmul.f32 %v301, %v301
  %v330 = vmul.f32 %v302, %v302
  %v331 = vmul.f32 %v303, %v303
  %v332 = vmul.f32 %v304, %v304
  %v333 = vadd.f32 %v325, %v327
  %v334 = vadd.f32 %v333, %v329
  %v335 = vadd.f32 %v334, %v331
  %v336 = vrot.slane %v335, 4
  %v337 = vadd.f32 %v335, %v336
  %v338 = vrot.slane %v337, 2
  %v339 = vadd.f32 %v337, %v338
  %v340 = vrot.slane %v339, 1
  %v341 = vadd.f32 %v339, %v340
  %v342 = vadd.f32 %v326, %v328
  %v343 = vadd.f32 %v342, %v330
  %v344 = vadd.f32 %v343, %v332
  %v345 = vrot.slane %v344, 4
  %v346 = vadd.f32 %v344, %v345
  %v347 = vrot.slane %v346, 2
  %v348 = vadd.f32 %v346, %v347
  %v349 = vrot.slane %v348, 1
  %v350 = vadd.f32 %v348, %v349
  %v351 = vadd.f32 %v341, 0.0
  %v352 = vadd.f32 %v350, 0.0
  %v353 = vld [vmem:[%s0 + $0x40] sm:$0xff]
  %v354 = vld [vmem:[%s0 + $0x48] sm:$0xff]
  %v355 = vld [vmem:[%s0 + $0x50] sm:$0xff]
  %v356 = vld [vmem:[%s0 + $0x58] sm:$0xff]
  %v357 = vld [vmem:[%s0 + $0x60] sm:$0xff]
  %v358 = vld [vmem:[%s0 + $0x68] sm:$0xff]
  %v359 = vld [vmem:[%s0 + $0x70] sm:$0xff]
  %v360 = vld [vmem:[%s0 + $0x78] sm:$0xff]
  %v361 = vmul.f32 %v353, %v53
  %v362 = vmul.f32 %v354, %v54
  %v363 = vmul.f32 %v355, %v53
  %v364 = vmul.f32 %v356, %v54
  %v365 = vmul.f32 %v357, %v53
  %v366 = vmul.f32 %v358, %v54
  %v367 = vmul.f32 %v359, %v53
  %v368 = vmul.f32 %v360, %v54
  %v369 = vrot.slane %v353, 1
  %v370 = vrot.slane %v354, 1
  %v371 = vrot.slane %v355, 1
  %v372 = vrot.slane %v356, 1
  %v373 = vrot.slane %v357, 1
  %v374 = vrot.slane %v358, 1
  %v375 = vrot.slane %v359, 1
  %v376 = vrot.slane %v360, 1
  %v377 = vsel %vm71, %v373, %v375
  %v378 = vsel %vm71, %v374, %v376
  %v379 = vsel %vm71, %v371, %v373
  %v380 = vsel %vm71, %v372, %v374
  %v381 = vsel %vm71, %v369, %v371
  %v382 = vsel %vm71, %v370, %v372
  %v383 = vsel %vm71, %v375, %v369
  %v384 = vsel %vm71, %v376, %v370
  %v385 = vmul.f32 %v381, %v80
  %v386 = vmul.f32 %v382, %v81
  %v387 = vmul.f32 %v379, %v80
  %v388 = vmul.f32 %v380, %v81
  %v389 = vmul.f32 %v377, %v80
  %v390 = vmul.f32 %v378, %v81
  %v391 = vmul.f32 %v383, %v80
  %v392 = vmul.f32 %v384, %v81
  %v393 = vadd.f32 %v361, %v385
  %v394 = vadd.f32 %v362, %v386
  %v395 = vadd.f32 %v363, %v387
  %v396 = vadd.f32 %v364, %v388
  %v397 = vadd.f32 %v365, %v389
  %v398 = vadd.f32 %v366, %v390
  %v399 = vadd.f32 %v367, %v391
  %v400 = vadd.f32 %v368, %v392
  %v401 = vrot.slane %v353, 2
  %v402 = vrot.slane %v354, 2
  %v403 = vrot.slane %v355, 2
  %v404 = vrot.slane %v356, 2
  %v405 = vrot.slane %v357, 2
  %v406 = vrot.slane %v358, 2
  %v407 = vrot.slane %v359, 2
  %v408 = vrot.slane %v360, 2
  %v409 = vsel %vm106, %v405, %v407
  %v410 = vsel %vm106, %v406, %v408
  %v411 = vsel %vm106, %v403, %v405
  %v412 = vsel %vm106, %v404, %v406
  %v413 = vsel %vm106, %v401, %v403
  %v414 = vsel %vm106, %v402, %v404
  %v415 = vsel %vm106, %v407, %v401
  %v416 = vsel %vm106, %v408, %v402
  %v417 = vmul.f32 %v413, %v115
  %v418 = vmul.f32 %v414, %v116
  %v419 = vmul.f32 %v411, %v115
  %v420 = vmul.f32 %v412, %v116
  %v421 = vmul.f32 %v409, %v115
  %v422 = vmul.f32 %v410, %v116
  %v423 = vmul.f32 %v415, %v115
  %v424 = vmul.f32 %v416, %v116
  %v425 = vadd.f32 %v393, %v417
  %v426 = vadd.f32 %v394, %v418
  %v427 = vadd.f32 %v395, %v419
  %v428 = vadd.f32 %v396, %v420
  %v429 = vadd.f32 %v397, %v421
  %v430 = vadd.f32 %v398, %v422
  %v431 = vadd.f32 %v399, %v423
  %v432 = vadd.f32 %v400, %v424
  %v433 = vld [vmem:[%s0 + $0x80] sm:$0xff]
  %v434 = vld [vmem:[%s0 + $0x88] sm:$0xff]
  %v435 = vld [vmem:[%s0 + $0x90] sm:$0xff]
  %v436 = vld [vmem:[%s0 + $0x98] sm:$0xff]
  %v437 = vmul.f32 %v357, %v137
  %v438 = vmul.f32 %v358, %v138
  %v439 = vmul.f32 %v359, %v137
  %v440 = vmul.f32 %v360, %v138
  %v441 = vmul.f32 %v433, %v137
  %v442 = vmul.f32 %v434, %v138
  %v443 = vmul.f32 %v435, %v137
  %v444 = vmul.f32 %v436, %v138
  %v445 = vadd.f32 %v425, %v437
  %v446 = vadd.f32 %v426, %v438
  %v447 = vadd.f32 %v427, %v439
  %v448 = vadd.f32 %v428, %v440
  %v449 = vadd.f32 %v429, %v441
  %v450 = vadd.f32 %v430, %v442
  %v451 = vadd.f32 %v431, %v443
  %v452 = vadd.f32 %v432, %v444
  %v453 = vrot.slane %v433, 1
  %v454 = vrot.slane %v434, 1
  %v455 = vrot.slane %v435, 1
  %v456 = vrot.slane %v436, 1
  %v457 = vsel %vm71, %v453, %v455
  %v458 = vsel %vm71, %v454, %v456
  %v459 = vsel %vm71, %v375, %v453
  %v460 = vsel %vm71, %v376, %v454
  %v461 = vsel %vm71, %v455, %v373
  %v462 = vsel %vm71, %v456, %v374
  %v463 = vmul.f32 %v377, %v165
  %v464 = vmul.f32 %v378, %v166
  %v465 = vmul.f32 %v459, %v165
  %v466 = vmul.f32 %v460, %v166
  %v467 = vmul.f32 %v457, %v165
  %v468 = vmul.f32 %v458, %v166
  %v469 = vmul.f32 %v461, %v165
  %v470 = vmul.f32 %v462, %v166
  %v471 = vadd.f32 %v445, %v463
  %v472 = vadd.f32 %v446, %v464
  %v473 = vadd.f32 %v447, %v465
  %v474 = vadd.f32 %v448, %v466
  %v475 = vadd.f32 %v449, %v467
  %v476 = vadd.f32 %v450, %v468
  %v477 = vadd.f32 %v451, %v469
  %v478 = vadd.f32 %v452, %v470
  %v479 = vrot.slane %v433, 2
  %v480 = vrot.slane %v434, 2
  %v481 = vrot.slane %v435, 2
  %v482 = vrot.slane %v436, 2
  %v483 = vsel %vm106, %v479, %v481
  %v484 = vsel %vm106, %v480, %v482
  %v485 = vsel %vm106, %v407, %v479
  %v486 = vsel %vm106, %v408, %v480
  %v487 = vsel %vm106, %v481, %v405
  %v488 = vsel %vm106, %v482, %v406
  %v489 = vmul.f32 %v409, %v193
  %v490 = vmul.f32 %v410, %v194
  %v491 = vmul.f32 %v485, %v193
  %v492 = vmul.f32 %v486, %v194
  %v493 = vmul.f32 %v483, %v193
  %v494 = vmul.f32 %v484, %v194
  %v495 = vmul.f32 %v487, %v193
  %v496 = vmul.f32 %v488, %v194
  %v497 = vadd.f32 %v471, %v489
  %v498 = vadd.f32 %v472, %v490
  %v499 = vadd.f32 %v473, %v491
  %v500 = vadd.f32 %v474, %v492
  %v501 = vadd.f32 %v475, %v493
  %v502 = vadd.f32 %v476, %v494
  %v503 = vadd.f32 %v477, %v495
  %v504 = vadd.f32 %v478, %v496
  %v505 = vld [vmem:[%s0 + $0xa0] sm:$0xff]
  %v506 = vld [vmem:[%s0 + $0xa8] sm:$0xff]
  %v507 = vld [vmem:[%s0 + $0xb0] sm:$0xff]
  %v508 = vld [vmem:[%s0 + $0xb8] sm:$0xff]
  %v509 = vmul.f32 %v433, %v215
  %v510 = vmul.f32 %v434, %v216
  %v511 = vmul.f32 %v435, %v215
  %v512 = vmul.f32 %v436, %v216
  %v513 = vmul.f32 %v505, %v215
  %v514 = vmul.f32 %v506, %v216
  %v515 = vmul.f32 %v507, %v215
  %v516 = vmul.f32 %v508, %v216
  %v517 = vadd.f32 %v497, %v509
  %v518 = vadd.f32 %v498, %v510
  %v519 = vadd.f32 %v499, %v511
  %v520 = vadd.f32 %v500, %v512
  %v521 = vadd.f32 %v501, %v513
  %v522 = vadd.f32 %v502, %v514
  %v523 = vadd.f32 %v503, %v515
  %v524 = vadd.f32 %v504, %v516
  %v525 = vrot.slane %v505, 1
  %v526 = vrot.slane %v506, 1
  %v527 = vrot.slane %v507, 1
  %v528 = vrot.slane %v508, 1
  %v529 = vsel %vm71, %v525, %v527
  %v530 = vsel %vm71, %v526, %v528
  %v531 = vsel %vm71, %v455, %v525
  %v532 = vsel %vm71, %v456, %v526
  %v533 = vsel %vm71, %v527, %v453
  %v534 = vsel %vm71, %v528, %v454
  %v535 = vmul.f32 %v457, %v243
  %v536 = vmul.f32 %v458, %v244
  %v537 = vmul.f32 %v531, %v243
  %v538 = vmul.f32 %v532, %v244
  %v539 = vmul.f32 %v529, %v243
  %v540 = vmul.f32 %v530, %v244
  %v541 = vmul.f32 %v533, %v243
  %v542 = vmul.f32 %v534, %v244
  %v543 = vadd.f32 %v517, %v535
  %v544 = vadd.f32 %v518, %v536
  %v545 = vadd.f32 %v519, %v537
  %v546 = vadd.f32 %v520, %v538
  %v547 = vadd.f32 %v521, %v539
  %v548 = vadd.f32 %v522, %v540
  %v549 = vadd.f32 %v523, %v541
  %v550 = vadd.f32 %v524, %v542
  %v551 = vrot.slane %v505, 2
  %v552 = vrot.slane %v506, 2
  %v553 = vrot.slane %v507, 2
  %v554 = vrot.slane %v508, 2
  %v555 = vsel %vm106, %v551, %v553
  %v556 = vsel %vm106, %v552, %v554
  %v557 = vsel %vm106, %v481, %v551
  %v558 = vsel %vm106, %v482, %v552
  %v559 = vsel %vm106, %v553, %v479
  %v560 = vsel %vm106, %v554, %v480
  %v561 = vmul.f32 %v483, %v271
  %v562 = vmul.f32 %v484, %v272
  %v563 = vmul.f32 %v557, %v271
  %v564 = vmul.f32 %v558, %v272
  %v565 = vmul.f32 %v555, %v271
  %v566 = vmul.f32 %v556, %v272
  %v567 = vmul.f32 %v559, %v271
  %v568 = vmul.f32 %v560, %v272
  %v569 = vadd.f32 %v543, %v561
  %v570 = vadd.f32 %v544, %v562
  %v571 = vadd.f32 %v545, %v563
  %v572 = vadd.f32 %v546, %v564
  %v573 = vadd.f32 %v547, %v565
  %v574 = vadd.f32 %v548, %v566
  %v575 = vadd.f32 %v549, %v567
  %v576 = vadd.f32 %v550, %v568
  %577 = vst [vmem:[#allocation2 + $0x40] sm:$0xff] %v569
  %578 = vst [vmem:[#allocation2 + $0x48] sm:$0xff] %v570
  %579 = vst [vmem:[#allocation2 + $0x50] sm:$0xff] %v571
  %580 = vst [vmem:[#allocation2 + $0x58] sm:$0xff] %v572
  %581 = vst [vmem:[#allocation2 + $0x60] sm:$0xff] %v573
  %582 = vst [vmem:[#allocation2 + $0x68] sm:$0xff] %v574
  %583 = vst [vmem:[#allocation2 + $0x70] sm:$0xff] %v575
  %584 = vst [vmem:[#allocation2 + $0x78] sm:$0xff] %v576
  %v585 = vmul.f32 %v569, %v41
  %v586 = vmul.f32 %v570, %v41
  %v587 = vmul.f32 %v571, %v42
  %v588 = vmul.f32 %v572, %v42
  %v589 = vmul.f32 %v573, %v43
  %v590 = vmul.f32 %v574, %v43
  %v591 = vmul.f32 %v575, %v44
  %v592 = vmul.f32 %v576, %v44
  %v593 = vadd.f32 %v585, %v587
  %v594 = vadd.f32 %v593, %v589
  %v595 = vadd.f32 %v594, %v591
  %v596 = vrot.slane %v595, 4
  %v597 = vadd.f32 %v595, %v596
  %v598 = vrot.slane %v597, 2
  %v599 = vadd.f32 %v597, %v598
  %v600 = vrot.slane %v599, 1
  %v601 = vadd.f32 %v599, %v600
  %v602 = vadd.f32 %v586, %v588
  %v603 = vadd.f32 %v602, %v590
  %v604 = vadd.f32 %v603, %v592
  %v605 = vrot.slane %v604, 4
  %v606 = vadd.f32 %v604, %v605
  %v607 = vrot.slane %v606, 2
  %v608 = vadd.f32 %v606, %v607
  %v609 = vrot.slane %v608, 1
  %v610 = vadd.f32 %v608, %v609
  %v611 = vadd.f32 %v323, %v601
  %v612 = vadd.f32 %v324, %v610
  %v613 = vmul.f32 %v585, %v585
  %v614 = vmul.f32 %v586, %v586
  %v615 = vmul.f32 %v587, %v587
  %v616 = vmul.f32 %v588, %v588
  %v617 = vmul.f32 %v589, %v589
  %v618 = vmul.f32 %v590, %v590
  %v619 = vmul.f32 %v591, %v591
  %v620 = vmul.f32 %v592, %v592
  %v621 = vadd.f32 %v613, %v615
  %v622 = vadd.f32 %v621, %v617
  %v623 = vadd.f32 %v622, %v619
  %v624 = vrot.slane %v623, 4
  %v625 = vadd.f32 %v623, %v624
  %v626 = vrot.slane %v625, 2
  %v627 = vadd.f32 %v625, %v626
  %v628 = vrot.slane %v627, 1
  %v629 = vadd.f32 %v627, %v628
  %v630 = vadd.f32 %v614, %v616
  %v631 = vadd.f32 %v630, %v618
  %v632 = vadd.f32 %v631, %v620
  %v633 = vrot.slane %v632, 4
  %v634 = vadd.f32 %v632, %v633
  %v635 = vrot.slane %v634, 2
  %v636 = vadd.f32 %v634, %v635
  %v637 = vrot.slane %v636, 1
  %v638 = vadd.f32 %v636, %v637
  %v639 = vadd.f32 %v351, %v629
  %v640 = vadd.f32 %v352, %v638
  %v641 = vld [vmem:[%s0 + $0x80] sm:$0xff]
  %v642 = vld [vmem:[%s0 + $0x88] sm:$0xff]
  %v643 = vld [vmem:[%s0 + $0x90] sm:$0xff]
  %v644 = vld [vmem:[%s0 + $0x98] sm:$0xff]
  %v645 = vld [vmem:[%s0 + $0xa0] sm:$0xff]
  %v646 = vld [vmem:[%s0 + $0xa8] sm:$0xff]
  %v647 = vld [vmem:[%s0 + $0xb0] sm:$0xff]
  %v648 = vld [vmem:[%s0 + $0xb8] sm:$0xff]
  %v649 = vmul.f32 %v641, %v53
  %v650 = vmul.f32 %v642, %v54
  %v651 = vmul.f32 %v643, %v53
  %v652 = vmul.f32 %v644, %v54
  %v653 = vmul.f32 %v645, %v53
  %v654 = vmul.f32 %v646, %v54
  %v655 = vmul.f32 %v647, %v53
  %v656 = vmul.f32 %v648, %v54
  %v657 = vrot.slane %v641, 1
  %v658 = vrot.slane %v642, 1
  %v659 = vrot.slane %v643, 1
  %v660 = vrot.slane %v644, 1
  %v661 = vrot.slane %v645, 1
  %v662 = vrot.slane %v646, 1
  %v663 = vrot.slane %v647, 1
  %v664 = vrot.slane %v648, 1
  %v665 = vsel %vm71, %v661, %v663
  %v666 = vsel %vm71, %v662, %v664
  %v667 = vsel %vm71, %v659, %v661
  %v668 = vsel %vm71, %v660, %v662
  %v669 = vsel %vm71, %v657, %v659
  %v670 = vsel %vm71, %v658, %v660
  %v671 = vsel %vm71, %v663, %v657
  %v672 = vsel %vm71, %v664, %v658
  %v673 = vmul.f32 %v669, %v80
  %v674 = vmul.f32 %v670, %v81
  %v675 = vmul.f32 %v667, %v80
  %v676 = vmul.f32 %v668, %v81
  %v677 = vmul.f32 %v665, %v80
  %v678 = vmul.f32 %v666, %v81
  %v679 = vmul.f32 %v671, %v80
  %v680 = vmul.f32 %v672, %v81
  %v681 = vadd.f32 %v649, %v673
  %v682 = vadd.f32 %v650, %v674
  %v683 = vadd.f32 %v651, %v675
  %v684 = vadd.f32 %v652, %v676
  %v685 = vadd.f32 %v653, %v677
  %v686 = vadd.f32 %v654, %v678
  %v687 = vadd.f32 %v655, %v679
  %v688 = vadd.f32 %v656, %v680
  %v689 = vrot.slane %v641, 2
  %v690 = vrot.slane %v642, 2
  %v691 = vrot.slane %v643, 2
  %v692 = vrot.slane %v644, 2
  %v693 = vrot.slane %v645, 2
  %v694 = vrot.slane %v646, 2
  %v695 = vrot.slane %v647, 2
  %v696 = vrot.slane %v648, 2
  %v697 = vsel %vm106, %v693, %v695
  %v698 = vsel %vm106, %v694, %v696
  %v699 = vsel %vm106, %v691, %v693
  %v700 = vsel %vm106, %v692, %v694
  %v701 = vsel %vm106, %v689, %v691
  %v702 = vsel %vm106, %v690, %v692
  %v703 = vsel %vm106, %v695, %v689
  %v704 = vsel %vm106, %v696, %v690
  %v705 = vmul.f32 %v701, %v115
  %v706 = vmul.f32 %v702, %v116
  %v707 = vmul.f32 %v699, %v115
  %v708 = vmul.f32 %v700, %v116
  %v709 = vmul.f32 %v697, %v115
  %v710 = vmul.f32 %v698, %v116
  %v711 = vmul.f32 %v703, %v115
  %v712 = vmul.f32 %v704, %v116
  %v713 = vadd.f32 %v681, %v705
  %v714 = vadd.f32 %v682, %v706
  %v715 = vadd.f32 %v683, %v707
  %v716 = vadd.f32 %v684, %v708
  %v717 = vadd.f32 %v685, %v709
  %v718 = vadd.f32 %v686, %v710
  %v719 = vadd.f32 %v687, %v711
  %v720 = vadd.f32 %v688, %v712
  %v721 = vld [vmem:[%s0 + $0xc0] sm:$0xff]
  %v722 = vld [vmem:[%s0 + $0xc8] sm:$0xff]
  %v723 = vld [vmem:[%s0 + $0xd0] sm:$0xff]
  %v724 = vld [vmem:[%s0 + $0xd8] sm:$0xff]
  %v725 = vmul.f32 %v645, %v137
  %v726 = vmul.f32 %v646, %v138
  %v727 = vmul.f32 %v647, %v137
  %v728 = vmul.f32 %v648, %v138
  %v729 = vmul.f32 %v721, %v137
  %v730 = vmul.f32 %v722, %v138
  %v731 = vmul.f32 %v723, %v137
  %v732 = vmul.f32 %v724, %v138
  %v733 = vadd.f32 %v713, %v725
  %v734 = vadd.f32 %v714, %v726
  %v735 = vadd.f32 %v715, %v727
  %v736 = vadd.f32 %v716, %v728
  %v737 = vadd.f32 %v717, %v729
  %v738 = vadd.f32 %v718, %v730
  %v739 = vadd.f32 %v719, %v731
  %v740 = vadd.f32 %v720, %v732
  %v741 = vrot.slane %v721, 1
  %v742 = vrot.slane %v722, 1
  %v743 = vrot.slane %v723, 1
  %v744 = vrot.slane %v724, 1
  %v745 = vsel %vm71, %v741, %v743
  %v746 = vsel %vm71, %v742, %v744
  %v747 = vsel %vm71, %v663, %v741
  %v748 = vsel %vm71, %v664, %v742
  %v749 = vsel %vm71, %v743, %v661
  %v750 = vsel %vm71, %v744, %v662
  %v751 = vmul.f32 %v665, %v165
  %v752 = vmul.f32 %v666, %v166
  %v753 = vmul.f32 %v747, %v165
  %v754 = vmul.f32 %v748, %v166
  %v755 = vmul.f32 %v745, %v165
  %v756 = vmul.f32 %v746, %v166
  %v757 = vmul.f32 %v749, %v165
  %v758 = vmul.f32 %v750, %v166
  %v759 = vadd.f32 %v733, %v751
  %v760 = vadd.f32 %v734, %v752
  %v761 = vadd.f32 %v735, %v753
  %v762 = vadd.f32 %v736, %v754
  %v763 = vadd.f32 %v737, %v755
  %v764 = vadd.f32 %v738, %v756
  %v765 = vadd.f32 %v739, %v757
  %v766 = vadd.f32 %v740, %v758
  %v767 = vrot.slane %v721, 2
  %v768 = vrot.slane %v722, 2
  %v769 = vrot.slane %v723, 2
  %v770 = vrot.slane %v724, 2
  %v771 = vsel %vm106, %v767, %v769
  %v772 = vsel %vm106, %v768, %v770
  %v773 = vsel %vm106, %v695, %v767
  %v774 = vsel %vm106, %v696, %v768
  %v775 = vsel %vm106, %v769, %v693
  %v776 = vsel %vm106, %v770, %v694
  %v777 = vmul.f32 %v697, %v193
  %v778 = vmul.f32 %v698, %v194
  %v779 = vmul.f32 %v773, %v193
  %v780 = vmul.f32 %v774, %v194
  %v781 = vmul.f32 %v771, %v193
  %v782 = vmul.f32 %v772, %v194
  %v783 = vmul.f32 %v775, %v193
  %v784 = vmul.f32 %v776, %v194
  %v785 = vadd.f32 %v759, %v777
  %v786 = vadd.f32 %v760, %v778
  %v787 = vadd.f32 %v761, %v779
  %v788 = vadd.f32 %v762, %v780
  %v789 = vadd.f32 %v763, %v781
  %v790 = vadd.f32 %v764, %v782
  %v791 = vadd.f32 %v765, %v783
  %v792 = vadd.f32 %v766, %v784
  %v793 = vld [vmem:[%s0 + $0xe0] sm:$0xff]
  %v794 = vld [vmem:[%s0 + $0xe8] sm:$0xff]
  %v795 = vld [vmem:[%s0 + $0xf0] sm:$0xff]
  %v796 = vld [vmem:[%s0 + $0xf8] sm:$0xff]
  %v797 = vmul.f32 %v721, %v215
  %v798 = vmul.f32 %v722, %v216
  %v799 = vmul.f32 %v723, %v215
  %v800 = vmul.f32 %v724, %v216
  %v801 = vmul.f32 %v793, %v215
  %v802 = vmul.f32 %v794, %v216
  %v803 = vmul.f32 %v795, %v215
  %v804 = vmul.f32 %v796, %v216
  %v805 = vadd.f32 %v785, %v797
  %v806 = vadd.f32 %v786, %v798
  %v807 = vadd.f32 %v787, %v799
  %v808 = vadd.f32 %v788, %v800
  %v809 = vadd.f32 %v789, %v801
  %v810 = vadd.f32 %v790, %v802
  %v811 = vadd.f32 %v791, %v803
  %v812 = vadd.f32 %v792, %v804
  %v813 = vrot.slane %v793, 1
  %v814 = vrot.slane %v794, 1
  %v815 = vrot.slane %v795, 1
  %v816 = vrot.slane %v796, 1
  %v817 = vsel %vm71, %v813, %v815
  %v818 = vsel %vm71, %v814, %v816
  %v819 = vsel %vm71, %v743, %v813
  %v820 = vsel %vm71, %v744, %v814
  %v821 = vsel %vm71, %v815, %v741
  %v822 = vsel %vm71, %v816, %v742
  %v823 = vmul.f32 %v745, %v243
  %v824 = vmul.f32 %v746, %v244
  %v825 = vmul.f32 %v819, %v243
  %v826 = vmul.f32 %v820, %v244
  %v827 = vmul.f32 %v817, %v243
  %v828 = vmul.f32 %v818, %v244
  %v829 = vmul.f32 %v821, %v243
  %v830 = vmul.f32 %v822, %v244
  %v831 = vadd.f32 %v805, %v823
  %v832 = vadd.f32 %v806, %v824
  %v833 = vadd.f32 %v807, %v825
  %v834 = vadd.f32 %v808, %v826
  %v835 = vadd.f32 %v809, %v827
  %v836 = vadd.f32 %v810, %v828
  %v837 = vadd.f32 %v811, %v829
  %v838 = vadd.f32 %v812, %v830
  %v839 = vrot.slane %v793, 2
  %v840 = vrot.slane %v794, 2
  %v841 = vrot.slane %v795, 2
  %v842 = vrot.slane %v796, 2
  %v843 = vsel %vm106, %v839, %v841
  %v844 = vsel %vm106, %v840, %v842
  %v845 = vsel %vm106, %v769, %v839
  %v846 = vsel %vm106, %v770, %v840
  %v847 = vsel %vm106, %v841, %v767
  %v848 = vsel %vm106, %v842, %v768
  %v849 = vmul.f32 %v771, %v271
  %v850 = vmul.f32 %v772, %v272
  %v851 = vmul.f32 %v845, %v271
  %v852 = vmul.f32 %v846, %v272
  %v853 = vmul.f32 %v843, %v271
  %v854 = vmul.f32 %v844, %v272
  %v855 = vmul.f32 %v847, %v271
  %v856 = vmul.f32 %v848, %v272
  %v857 = vadd.f32 %v831, %v849
  %v858 = vadd.f32 %v832, %v850
  %v859 = vadd.f32 %v833, %v851
  %v860 = vadd.f32 %v834, %v852
  %v861 = vadd.f32 %v835, %v853
  %v862 = vadd.f32 %v836, %v854
  %v863 = vadd.f32 %v837, %v855
  %v864 = vadd.f32 %v838, %v856
  %865 = vst [vmem:[#allocation2 + $0x80] sm:$0xff] %v857
  %866 = vst [vmem:[#allocation2 + $0x88] sm:$0xff] %v858
  %867 = vst [vmem:[#allocation2 + $0x90] sm:$0xff] %v859
  %868 = vst [vmem:[#allocation2 + $0x98] sm:$0xff] %v860
  %869 = vst [vmem:[#allocation2 + $0xa0] sm:$0xff] %v861
  %870 = vst [vmem:[#allocation2 + $0xa8] sm:$0xff] %v862
  %871 = vst [vmem:[#allocation2 + $0xb0] sm:$0xff] %v863
  %872 = vst [vmem:[#allocation2 + $0xb8] sm:$0xff] %v864
  %v873 = vmul.f32 %v857, %v41
  %v874 = vmul.f32 %v858, %v41
  %v875 = vmul.f32 %v859, %v42
  %v876 = vmul.f32 %v860, %v42
  %v877 = vmul.f32 %v861, %v43
  %v878 = vmul.f32 %v862, %v43
  %v879 = vmul.f32 %v863, %v44
  %v880 = vmul.f32 %v864, %v44
  %v881 = vadd.f32 %v873, %v875
  %v882 = vadd.f32 %v881, %v877
  %v883 = vadd.f32 %v882, %v879
  %v884 = vrot.slane %v883, 4
  %v885 = vadd.f32 %v883, %v884
  %v886 = vrot.slane %v885, 2
  %v887 = vadd.f32 %v885, %v886
  %v888 = vrot.slane %v887, 1
  %v889 = vadd.f32 %v887, %v888
  %v890 = vadd.f32 %v874, %v876
  %v891 = vadd.f32 %v890, %v878
  %v892 = vadd.f32 %v891, %v880
  %v893 = vrot.slane %v892, 4
  %v894 = vadd.f32 %v892, %v893
  %v895 = vrot.slane %v894, 2
  %v896 = vadd.f32 %v894, %v895
  %v897 = vrot.slane %v896, 1
  %v898 = vadd.f32 %v896, %v897
  %v899 = vadd.f32 %v611, %v889
  %v900 = vadd.f32 %v612, %v898
  %v901 = vmul.f32 %v873, %v873
  %v902 = vmul.f32 %v874, %v874
  %v903 = vmul.f32 %v875, %v875
  %v904 = vmul.f32 %v876, %v876
  %v905 = vmul.f32 %v877, %v877
  %v906 = vmul.f32 %v878, %v878
  %v907 = vmul.f32 %v879, %v879
  %v908 = vmul.f32 %v880, %v880
  %v909 = vadd.f32 %v901, %v903
  %v910 = vadd.f32 %v909, %v905
  %v911 = vadd.f32 %v910, %v907
  %v912 = vrot.slane %v911, 4
  %v913 = vadd.f32 %v911, %v912
  %v914 = vrot.slane %v913, 2
  %v915 = vadd.f32 %v913, %v914
  %v916 = vrot.slane %v915, 1
  %v917 = vadd.f32 %v915, %v916
  %v918 = vadd.f32 %v902, %v904
  %v919 = vadd.f32 %v918, %v906
  %v920 = vadd.f32 %v919, %v908
  %v921 = vrot.slane %v920, 4
  %v922 = vadd.f32 %v920, %v921
  %v923 = vrot.slane %v922, 2
  %v924 = vadd.f32 %v922, %v923
  %v925 = vrot.slane %v924, 1
  %v926 = vadd.f32 %v924, %v925
  %v927 = vadd.f32 %v639, %v917
  %v928 = vadd.f32 %v640, %v926
  %v929 = vld [vmem:[%s0 + $0xc0] sm:$0xff]
  %v930 = vld [vmem:[%s0 + $0xc8] sm:$0xff]
  %v931 = vld [vmem:[%s0 + $0xd0] sm:$0xff]
  %v932 = vld [vmem:[%s0 + $0xd8] sm:$0xff]
  %v933 = vld [vmem:[%s0 + $0xe0] sm:$0xff]
  %v934 = vld [vmem:[%s0 + $0xe8] sm:$0xff]
  %v935 = vld [vmem:[%s0 + $0xf0] sm:$0xff]
  %v936 = vld [vmem:[%s0 + $0xf8] sm:$0xff]
  %v937 = vmul.f32 %v929, %v53
  %v938 = vmul.f32 %v930, %v54
  %v939 = vmul.f32 %v931, %v53
  %v940 = vmul.f32 %v932, %v54
  %v941 = vmul.f32 %v933, %v53
  %v942 = vmul.f32 %v934, %v54
  %v943 = vmul.f32 %v935, %v53
  %v944 = vmul.f32 %v936, %v54
  %v945 = vrot.slane %v929, 1
  %v946 = vrot.slane %v930, 1
  %v947 = vrot.slane %v931, 1
  %v948 = vrot.slane %v932, 1
  %v949 = vrot.slane %v933, 1
  %v950 = vrot.slane %v934, 1
  %v951 = vrot.slane %v935, 1
  %v952 = vrot.slane %v936, 1
  %v953 = vsel %vm71, %v949, %v951
  %v954 = vsel %vm71, %v950, %v952
  %v955 = vsel %vm71, %v947, %v949
  %v956 = vsel %vm71, %v948, %v950
  %v957 = vsel %vm71, %v945, %v947
  %v958 = vsel %vm71, %v946, %v948
  %v959 = vsel %vm71, %v951, %v945
  %v960 = vsel %vm71, %v952, %v946
  %v961 = vmul.f32 %v957, %v80
  %v962 = vmul.f32 %v958, %v81
  %v963 = vmul.f32 %v955, %v80
  %v964 = vmul.f32 %v956, %v81
  %v965 = vmul.f32 %v953, %v80
  %v966 = vmul.f32 %v954, %v81
  %v967 = vmul.f32 %v959, %v80
  %v968 = vmul.f32 %v960, %v81
  %v969 = vadd.f32 %v937, %v961
  %v970 = vadd.f32 %v938, %v962
  %v971 = vadd.f32 %v939, %v963
  %v972 = vadd.f32 %v940, %v964
  %v973 = vadd.f32 %v941, %v965
  %v974 = vadd.f32 %v942, %v966
  %v975 = vadd.f32 %v943, %v967
  %v976 = vadd.f32 %v944, %v968
  %v977 = vrot.slane %v929, 2
  %v978 = vrot.slane %v930, 2
  %v979 = vrot.slane %v931, 2
  %v980 = vrot.slane %v932, 2
  %v981 = vrot.slane %v933, 2
  %v982 = vrot.slane %v934, 2
  %v983 = vrot.slane %v935, 2
  %v984 = vrot.slane %v936, 2
  %v985 = vsel %vm106, %v981, %v983
  %v986 = vsel %vm106, %v982, %v984
  %v987 = vsel %vm106, %v979, %v981
  %v988 = vsel %vm106, %v980, %v982
  %v989 = vsel %vm106, %v977, %v979
  %v990 = vsel %vm106, %v978, %v980
  %v991 = vsel %vm106, %v983, %v977
  %v992 = vsel %vm106, %v984, %v978
  %v993 = vmul.f32 %v989, %v115
  %v994 = vmul.f32 %v990, %v116
  %v995 = vmul.f32 %v987, %v115
  %v996 = vmul.f32 %v988, %v116
  %v997 = vmul.f32 %v985, %v115
  %v998 = vmul.f32 %v986, %v116
  %v999 = vmul.f32 %v991, %v115
  %v1000 = vmul.f32 %v992, %v116
  %v1001 = vadd.f32 %v969, %v993
  %v1002 = vadd.f32 %v970, %v994
  %v1003 = vadd.f32 %v971, %v995
  %v1004 = vadd.f32 %v972, %v996
  %v1005 = vadd.f32 %v973, %v997
  %v1006 = vadd.f32 %v974, %v998
  %v1007 = vadd.f32 %v975, %v999
  %v1008 = vadd.f32 %v976, %v1000
  %v1009 = vld [vmem:[%s0 + $0x100] sm:$0xff]
  %v1010 = vld [vmem:[%s0 + $0x108] sm:$0xff]
  %v1011 = vld [vmem:[%s0 + $0x110] sm:$0xff]
  %v1012 = vld [vmem:[%s0 + $0x118] sm:$0xff]
  %v1013 = vmul.f32 %v933, %v137
  %v1014 = vmul.f32 %v934, %v138
  %v1015 = vmul.f32 %v935, %v137
  %v1016 = vmul.f32 %v936, %v138
  %v1017 = vmul.f32 %v1009, %v137
  %v1018 = vmul.f32 %v1010, %v138
  %v1019 = vmul.f32 %v1011, %v137
  %v1020 = vmul.f32 %v1012, %v138
  %v1021 = vadd.f32 %v1001, %v1013
  %v1022 = vadd.f32 %v1002, %v1014
  %v1023 = vadd.f32 %v1003, %v1015
  %v1024 = vadd.f32 %v1004, %v1016
  %v1025 = vadd.f32 %v1005, %v1017
  %v1026 = vadd.f32 %v1006, %v1018
  %v1027 = vadd.f32 %v1007, %v1019
  %v1028 = vadd.f32 %v1008, %v1020
  %v1029 = vrot.slane %v1009, 1
  %v1030 = vrot.slane %v1010, 1
  %v1031 = vrot.slane %v1011, 1
  %v1032 = vrot.slane %v1012, 1
  %v1033 = vsel %vm71, %v1029, %v1031
  %v1034 = vsel %vm71, %v1030, %v1032
  %v1035 = vsel %vm71, %v951, %v1029
  %v1036 = vsel %vm71, %v952, %v1030
  %v1037 = vsel %vm71, %v1031, %v949
  %v1038 = vsel %vm71, %v1032, %v950
  %v1039 = vmul.f32 %v953, %v165
  %v1040 = vmul.f32 %v954, %v166
  %v1041 = vmul.f32 %v1035, %v165
  %v1042 = vmul.f32 %v1036, %v166
  %v1043 = vmul.f32 %v1033, %v165
  %v1044 = vmul.f32 %v1034, %v166
  %v1045 = vmul.f32 %v1037, %v165
  %v1046 = vmul.f32 %v1038, %v166
  %v1047 = vadd.f32 %v1021, %v1039
  %v1048 = vadd.f32 %v1022, %v1040
  %v1049 = vadd.f32 %v1023, %v1041
  %v1050 = vadd.f32 %v1024, %v1042
  %v1051 = vadd.f32 %v1025, %v1043
  %v1052 = vadd.f32 %v1026, %v1044
  %v1053 = vadd.f32 %v1027, %v1045
  %v1054 = vadd.f32 %v1028, %v1046
  %v1055 = vrot.slane %v1009, 2
  %v1056 = vrot.slane %v1010, 2
  %v1057 = vrot.slane %v1011, 2
  %v1058 = vrot.slane %v1012, 2
  %v1059 = vsel %vm106, %v1055, %v1057
  %v1060 = vsel %vm106, %v1056, %v1058
  %v1061 = vsel %vm106, %v983, %v1055
  %v1062 = vsel %vm106, %v984, %v1056
  %v1063 = vsel %vm106, %v1057, %v981
  %v1064 = vsel %vm106, %v1058, %v982
  %v1065 = vmul.f32 %v985, %v193
  %v1066 = vmul.f32 %v986, %v194
  %v1067 = vmul.f32 %v1061, %v193
  %v1068 = vmul.f32 %v1062, %v194
  %v1069 = vmul.f32 %v1059, %v193
  %v1070 = vmul.f32 %v1060, %v194
  %v1071 = vmul.f32 %v1063, %v193
  %v1072 = vmul.f32 %v1064, %v194
  %v1073 = vadd.f32 %v1047, %v1065
  %v1074 = vadd.f32 %v1048, %v1066
  %v1075 = vadd.f32 %v1049, %v1067
  %v1076 = vadd.f32 %v1050, %v1068
  %v1077 = vadd.f32 %v1051, %v1069
  %v1078 = vadd.f32 %v1052, %v1070
  %v1079 = vadd.f32 %v1053, %v1071
  %v1080 = vadd.f32 %v1054, %v1072
  %v1081 = vld [vmem:[%s0 + $0x120] sm:$0xff]
  %v1082 = vld [vmem:[%s0 + $0x128] sm:$0xff]
  %v1083 = vld [vmem:[%s0 + $0x130] sm:$0xff]
  %v1084 = vld [vmem:[%s0 + $0x138] sm:$0xff]
  %v1085 = vmul.f32 %v1009, %v215
  %v1086 = vmul.f32 %v1010, %v216
  %v1087 = vmul.f32 %v1011, %v215
  %v1088 = vmul.f32 %v1012, %v216
  %v1089 = vmul.f32 %v1081, %v215
  %v1090 = vmul.f32 %v1082, %v216
  %v1091 = vmul.f32 %v1083, %v215
  %v1092 = vmul.f32 %v1084, %v216
  %v1093 = vadd.f32 %v1073, %v1085
  %v1094 = vadd.f32 %v1074, %v1086
  %v1095 = vadd.f32 %v1075, %v1087
  %v1096 = vadd.f32 %v1076, %v1088
  %v1097 = vadd.f32 %v1077, %v1089
  %v1098 = vadd.f32 %v1078, %v1090
  %v1099 = vadd.f32 %v1079, %v1091
  %v1100 = vadd.f32 %v1080, %v1092
  %v1101 = vrot.slane %v1081, 1
  %v1102 = vrot.slane %v1082, 1
  %v1103 = vrot.slane %v1083, 1
  %v1104 = vrot.slane %v1084, 1
  %v1105 = vsel %vm71, %v1101, %v1103
  %v1106 = vsel %vm71, %v1102, %v1104
  %v1107 = vsel %vm71, %v1031, %v1101
  %v1108 = vsel %vm71, %v1032, %v1102
  %v1109 = vsel %vm71, %v1103, %v1029
  %v1110 = vsel %vm71, %v1104, %v1030
  %v1111 = vmul.f32 %v1033, %v243
  %v1112 = vmul.f32 %v1034, %v244
  %v1113 = vmul.f32 %v1107, %v243
  %v1114 = vmul.f32 %v1108, %v244
  %v1115 = vmul.f32 %v1105, %v243
  %v1116 = vmul.f32 %v1106, %v244
  %v1117 = vmul.f32 %v1109, %v243
  %v1118 = vmul.f32 %v1110, %v244
  %v1119 = vadd.f32 %v1093, %v1111
  %v1120 = vadd.f32 %v1094, %v1112
  %v1121 = vadd.f32 %v1095, %v1113
  %v1122 = vadd.f32 %v1096, %v1114
  %v1123 = vadd.f32 %v1097, %v1115
  %v1124 = vadd.f32 %v1098, %v1116
  %v1125 = vadd.f32 %v1099, %v1117
  %v1126 = vadd.f32 %v1100, %v1118
  %v1127 = vrot.slane %v1081, 2
  %v1128 = vrot.slane %v1082, 2
  %v1129 = vrot.slane %v1083, 2
  %v1130 = vrot.slane %v1084, 2
  %v1131 = vsel %vm106, %v1127, %v1129
  %v1132 = vsel %vm106, %v1128, %v1130
  %v1133 = vsel %vm106, %v1057, %v1127
  %v1134 = vsel %vm106, %v1058, %v1128
  %v1135 = vsel %vm106, %v1129, %v1055
  %v1136 = vsel %vm106, %v1130, %v1056
  %v1137 = vmul.f32 %v1059, %v271
  %v1138 = vmul.f32 %v1060, %v272
  %v1139 = vmul.f32 %v1133, %v271
  %v1140 = vmul.f32 %v1134, %v272
  %v1141 = vmul.f32 %v1131, %v271
  %v1142 = vmul.f32 %v1132, %v272
  %v1143 = vmul.f32 %v1135, %v271
  %v1144 = vmul.f32 %v1136, %v272
  %v1145 = vadd.f32 %v1119, %v1137
  %v1146 = vadd.f32 %v1120, %v1138
  %v1147 = vadd.f32 %v1121, %v1139
  %v1148 = vadd.f32 %v1122, %v1140
  %v1149 = vadd.f32 %v1123, %v1141
  %v1150 = vadd.f32 %v1124, %v1142
  %v1151 = vadd.f32 %v1125, %v1143
  %v1152 = vadd.f32 %v1126, %v1144
  %1153 = vst [vmem:[#allocation2 + $0xc0] sm:$0xff] %v1145
  %1154 = vst [vmem:[#allocation2 + $0xc8] sm:$0xff] %v1146
  %1155 = vst [vmem:[#allocation2 + $0xd0] sm:$0xff] %v1147
  %1156 = vst [vmem:[#allocation2 + $0xd8] sm:$0xff] %v1148
  %1157 = vst [vmem:[#allocation2 + $0xe0] sm:$0xff] %v1149
  %1158 = vst [vmem:[#allocation2 + $0xe8] sm:$0xff] %v1150
  %1159 = vst [vmem:[#allocation2 + $0xf0] sm:$0xff] %v1151
  %1160 = vst [vmem:[#allocation2 + $0xf8] sm:$0xff] %v1152
  %v1161 = vmul.f32 %v1145, %v41
  %v1162 = vmul.f32 %v1146, %v41
  %v1163 = vmul.f32 %v1147, %v42
  %v1164 = vmul.f32 %v1148, %v42
  %v1165 = vmul.f32 %v1149, %v43
  %v1166 = vmul.f32 %v1150, %v43
  %v1167 = vmul.f32 %v1151, %v44
  %v1168 = vmul.f32 %v1152, %v44
  %v1169 = vadd.f32 %v1161, %v1163
  %v1170 = vadd.f32 %v1169, %v1165
  %v1171 = vadd.f32 %v1170, %v1167
  %v1172 = vrot.slane %v1171, 4
  %v1173 = vadd.f32 %v1171, %v1172
  %v1174 = vrot.slane %v1173, 2
  %v1175 = vadd.f32 %v1173, %v1174
  %v1176 = vrot.slane %v1175, 1
  %v1177 = vadd.f32 %v1175, %v1176
  %v1178 = vadd.f32 %v1162, %v1164
  %v1179 = vadd.f32 %v1178, %v1166
  %v1180 = vadd.f32 %v1179, %v1168
  %v1181 = vrot.slane %v1180, 4
  %v1182 = vadd.f32 %v1180, %v1181
  %v1183 = vrot.slane %v1182, 2
  %v1184 = vadd.f32 %v1182, %v1183
  %v1185 = vrot.slane %v1184, 1
  %v1186 = vadd.f32 %v1184, %v1185
  %v1187 = vadd.f32 %v899, %v1177
  %v1188 = vadd.f32 %v900, %v1186
  %v1189 = vmul.f32 %v1161, %v1161
  %v1190 = vmul.f32 %v1162, %v1162
  %v1191 = vmul.f32 %v1163, %v1163
  %v1192 = vmul.f32 %v1164, %v1164
  %v1193 = vmul.f32 %v1165, %v1165
  %v1194 = vmul.f32 %v1166, %v1166
  %v1195 = vmul.f32 %v1167, %v1167
  %v1196 = vmul.f32 %v1168, %v1168
  %v1197 = vadd.f32 %v1189, %v1191
  %v1198 = vadd.f32 %v1197, %v1193
  %v1199 = vadd.f32 %v1198, %v1195
  %v1200 = vrot.slane %v1199, 4
  %v1201 = vadd.f32 %v1199, %v1200
  %v1202 = vrot.slane %v1201, 2
  %v1203 = vadd.f32 %v1201, %v1202
  %v1204 = vrot.slane %v1203, 1
  %v1205 = vadd.f32 %v1203, %v1204
  %v1206 = vadd.f32 %v1190, %v1192
  %v1207 = vadd.f32 %v1206, %v1194
  %v1208 = vadd.f32 %v1207, %v1196
  %v1209 = vrot.slane %v1208, 4
  %v1210 = vadd.f32 %v1208, %v1209
  %v1211 = vrot.slane %v1210, 2
  %v1212 = vadd.f32 %v1210, %v1211
  %v1213 = vrot.slane %v1212, 1
  %v1214 = vadd.f32 %v1212, %v1213
  %v1215 = vadd.f32 %v927, %v1205
  %v1216 = vadd.f32 %v928, %v1214
  %v1217 = vld [vmem:[%s0 + $0x100] sm:$0xff]
  %v1218 = vld [vmem:[%s0 + $0x108] sm:$0xff]
  %v1219 = vld [vmem:[%s0 + $0x110] sm:$0xff]
  %v1220 = vld [vmem:[%s0 + $0x118] sm:$0xff]
  %v1221 = vld [vmem:[%s0 + $0x120] sm:$0xff]
  %v1222 = vld [vmem:[%s0 + $0x128] sm:$0xff]
  %v1223 = vld [vmem:[%s0 + $0x130] sm:$0xff]
  %v1224 = vld [vmem:[%s0 + $0x138] sm:$0xff]
  %v1225 = vmul.f32 %v1217, %v53
  %v1226 = vmul.f32 %v1218, %v54
  %v1227 = vmul.f32 %v1219, %v53
  %v1228 = vmul.f32 %v1220, %v54
  %v1229 = vmul.f32 %v1221, %v53
  %v1230 = vmul.f32 %v1222, %v54
  %v1231 = vmul.f32 %v1223, %v53
  %v1232 = vmul.f32 %v1224, %v54
  %v1233 = vrot.slane %v1217, 1
  %v1234 = vrot.slane %v1218, 1
  %v1235 = vrot.slane %v1219, 1
  %v1236 = vrot.slane %v1220, 1
  %v1237 = vrot.slane %v1221, 1
  %v1238 = vrot.slane %v1222, 1
  %v1239 = vrot.slane %v1223, 1
  %v1240 = vrot.slane %v1224, 1
  %v1241 = vsel %vm71, %v1237, %v1239
  %v1242 = vsel %vm71, %v1238, %v1240
  %v1243 = vsel %vm71, %v1235, %v1237
  %v1244 = vsel %vm71, %v1236, %v1238
  %v1245 = vsel %vm71, %v1233, %v1235
  %v1246 = vsel %vm71, %v1234, %v1236
  %v1247 = vsel %vm71, %v1239, %v1233
  %v1248 = vsel %vm71, %v1240, %v1234
  %v1249 = vmul.f32 %v1245, %v80
  %v1250 = vmul.f32 %v1246, %v81
  %v1251 = vmul.f32 %v1243, %v80
  %v1252 = vmul.f32 %v1244, %v81
  %v1253 = vmul.f32 %v1241, %v80
  %v1254 = vmul.f32 %v1242, %v81
  %v1255 = vmul.f32 %v1247, %v80
  %v1256 = vmul.f32 %v1248, %v81
  %v1257 = vadd.f32 %v1225, %v1249
  %v1258 = vadd.f32 %v1226, %v1250
  %v1259 = vadd.f32 %v1227, %v1251
  %v1260 = vadd.f32 %v1228, %v1252
  %v1261 = vadd.f32 %v1229, %v1253
  %v1262 = vadd.f32 %v1230, %v1254
  %v1263 = vadd.f32 %v1231, %v1255
  %v1264 = vadd.f32 %v1232, %v1256
  %v1265 = vrot.slane %v1217, 2
  %v1266 = vrot.slane %v1218, 2
  %v1267 = vrot.slane %v1219, 2
  %v1268 = vrot.slane %v1220, 2
  %v1269 = vrot.slane %v1221, 2
  %v1270 = vrot.slane %v1222, 2
  %v1271 = vrot.slane %v1223, 2
  %v1272 = vrot.slane %v1224, 2
  %v1273 = vsel %vm106, %v1269, %v1271
  %v1274 = vsel %vm106, %v1270, %v1272
  %v1275 = vsel %vm106, %v1267, %v1269
  %v1276 = vsel %vm106, %v1268, %v1270
  %v1277 = vsel %vm106, %v1265, %v1267
  %v1278 = vsel %vm106, %v1266, %v1268
  %v1279 = vsel %vm106, %v1271, %v1265
  %v1280 = vsel %vm106, %v1272, %v1266
  %v1281 = vmul.f32 %v1277, %v115
  %v1282 = vmul.f32 %v1278, %v116
  %v1283 = vmul.f32 %v1275, %v115
  %v1284 = vmul.f32 %v1276, %v116
  %v1285 = vmul.f32 %v1273, %v115
  %v1286 = vmul.f32 %v1274, %v116
  %v1287 = vmul.f32 %v1279, %v115
  %v1288 = vmul.f32 %v1280, %v116
  %v1289 = vadd.f32 %v1257, %v1281
  %v1290 = vadd.f32 %v1258, %v1282
  %v1291 = vadd.f32 %v1259, %v1283
  %v1292 = vadd.f32 %v1260, %v1284
  %v1293 = vadd.f32 %v1261, %v1285
  %v1294 = vadd.f32 %v1262, %v1286
  %v1295 = vadd.f32 %v1263, %v1287
  %v1296 = vadd.f32 %v1264, %v1288
  %v1297 = vld [vmem:[%s0 + $0x140] sm:$0xff]
  %v1298 = vld [vmem:[%s0 + $0x148] sm:$0xff]
  %v1299 = vld [vmem:[%s0 + $0x150] sm:$0xff]
  %v1300 = vld [vmem:[%s0 + $0x158] sm:$0xff]
  %v1301 = vmul.f32 %v1221, %v137
  %v1302 = vmul.f32 %v1222, %v138
  %v1303 = vmul.f32 %v1223, %v137
  %v1304 = vmul.f32 %v1224, %v138
  %v1305 = vmul.f32 %v1297, %v137
  %v1306 = vmul.f32 %v1298, %v138
  %v1307 = vmul.f32 %v1299, %v137
  %v1308 = vmul.f32 %v1300, %v138
  %v1309 = vadd.f32 %v1289, %v1301
  %v1310 = vadd.f32 %v1290, %v1302
  %v1311 = vadd.f32 %v1291, %v1303
  %v1312 = vadd.f32 %v1292, %v1304
  %v1313 = vadd.f32 %v1293, %v1305
  %v1314 = vadd.f32 %v1294, %v1306
  %v1315 = vadd.f32 %v1295, %v1307
  %v1316 = vadd.f32 %v1296, %v1308
  %v1317 = vrot.slane %v1297, 1
  %v1318 = vrot.slane %v1298, 1
  %v1319 = vrot.slane %v1299, 1
  %v1320 = vrot.slane %v1300, 1
  %v1321 = vsel %vm71, %v1317, %v1319
  %v1322 = vsel %vm71, %v1318, %v1320
  %v1323 = vsel %vm71, %v1239, %v1317
  %v1324 = vsel %vm71, %v1240, %v1318
  %v1325 = vsel %vm71, %v1319, %v1237
  %v1326 = vsel %vm71, %v1320, %v1238
  %v1327 = vmul.f32 %v1241, %v165
  %v1328 = vmul.f32 %v1242, %v166
  %v1329 = vmul.f32 %v1323, %v165
  %v1330 = vmul.f32 %v1324, %v166
  %v1331 = vmul.f32 %v1321, %v165
  %v1332 = vmul.f32 %v1322, %v166
  %v1333 = vmul.f32 %v1325, %v165
  %v1334 = vmul.f32 %v1326, %v166
  %v1335 = vadd.f32 %v1309, %v1327
  %v1336 = vadd.f32 %v1310, %v1328
  %v1337 = vadd.f32 %v1311, %v1329
  %v1338 = vadd.f32 %v1312, %v1330
  %v1339 = vadd.f32 %v1313, %v1331
  %v1340 = vadd.f32 %v1314, %v1332
  %v1341 = vadd.f32 %v1315, %v1333
  %v1342 = vadd.f32 %v1316, %v1334
  %v1343 = vrot.slane %v1297, 2
  %v1344 = vrot.slane %v1298, 2
  %v1345 = vrot.slane %v1299, 2
  %v1346 = vrot.slane %v1300, 2
  %v1347 = vsel %vm106, %v1343, %v1345
  %v1348 = vsel %vm106, %v1344, %v1346
  %v1349 = vsel %vm106, %v1271, %v1343
  %v1350 = vsel %vm106, %v1272, %v1344
  %v1351 = vsel %vm106, %v1345, %v1269
  %v1352 = vsel %vm106, %v1346, %v1270
  %v1353 = vmul.f32 %v1273, %v193
  %v1354 = vmul.f32 %v1274, %v194
  %v1355 = vmul.f32 %v1349, %v193
  %v1356 = vmul.f32 %v1350, %v194
  %v1357 = vmul.f32 %v1347, %v193
  %v1358 = vmul.f32 %v1348, %v194
  %v1359 = vmul.f32 %v1351, %v193
  %v1360 = vmul.f32 %v1352, %v194
  %v1361 = vadd.f32 %v1335, %v1353
  %v1362 = vadd.f32 %v1336, %v1354
  %v1363 = vadd.f32 %v1337, %v1355
  %v1364 = vadd.f32 %v1338, %v1356
  %v1365 = vadd.f32 %v1339, %v1357
  %v1366 = vadd.f32 %v1340, %v1358
  %v1367 = vadd.f32 %v1341, %v1359
  %v1368 = vadd.f32 %v1342, %v1360
  %v1369 = vld [vmem:[%s0 + $0x160] sm:$0xff]
  %v1370 = vld [vmem:[%s0 + $0x168] sm:$0xff]
  %v1371 = vld [vmem:[%s0 + $0x170] sm:$0xff]
  %v1372 = vld [vmem:[%s0 + $0x178] sm:$0xff]
  %v1373 = vmul.f32 %v1297, %v215
  %v1374 = vmul.f32 %v1298, %v216
  %v1375 = vmul.f32 %v1299, %v215
  %v1376 = vmul.f32 %v1300, %v216
  %v1377 = vmul.f32 %v1369, %v215
  %v1378 = vmul.f32 %v1370, %v216
  %v1379 = vmul.f32 %v1371, %v215
  %v1380 = vmul.f32 %v1372, %v216
  %v1381 = vadd.f32 %v1361, %v1373
  %v1382 = vadd.f32 %v1362, %v1374
  %v1383 = vadd.f32 %v1363, %v1375
  %v1384 = vadd.f32 %v1364, %v1376
  %v1385 = vadd.f32 %v1365, %v1377
  %v1386 = vadd.f32 %v1366, %v1378
  %v1387 = vadd.f32 %v1367, %v1379
  %v1388 = vadd.f32 %v1368, %v1380
  %v1389 = vrot.slane %v1369, 1
  %v1390 = vrot.slane %v1370, 1
  %v1391 = vrot.slane %v1371, 1
  %v1392 = vrot.slane %v1372, 1
  %v1393 = vsel %vm71, %v1389, %v1391
  %v1394 = vsel %vm71, %v1390, %v1392
  %v1395 = vsel %vm71, %v1319, %v1389
  %v1396 = vsel %vm71, %v1320, %v1390
  %v1397 = vsel %vm71, %v1391, %v1317
  %v1398 = vsel %vm71, %v1392, %v1318
  %v1399 = vmul.f32 %v1321, %v243
  %v1400 = vmul.f32 %v1322, %v244
  %v1401 = vmul.f32 %v1395, %v243
  %v1402 = vmul.f32 %v1396, %v244
  %v1403 = vmul.f32 %v1393, %v243
  %v1404 = vmul.f32 %v1394, %v244
  %v1405 = vmul.f32 %v1397, %v243
  %v1406 = vmul.f32 %v1398, %v244
  %v1407 = vadd.f32 %v1381, %v1399
  %v1408 = vadd.f32 %v1382, %v1400
  %v1409 = vadd.f32 %v1383, %v1401
  %v1410 = vadd.f32 %v1384, %v1402
  %v1411 = vadd.f32 %v1385, %v1403
  %v1412 = vadd.f32 %v1386, %v1404
  %v1413 = vadd.f32 %v1387, %v1405
  %v1414 = vadd.f32 %v1388, %v1406
  %v1415 = vrot.slane %v1369, 2
  %v1416 = vrot.slane %v1370, 2
  %v1417 = vrot.slane %v1371, 2
  %v1418 = vrot.slane %v1372, 2
  %v1419 = vsel %vm106, %v1415, %v1417
  %v1420 = vsel %vm106, %v1416, %v1418
  %v1421 = vsel %vm106, %v1345, %v1415
  %v1422 = vsel %vm106, %v1346, %v1416
  %v1423 = vsel %vm106, %v1417, %v1343
  %v1424 = vsel %vm106, %v1418, %v1344
  %v1425 = vmul.f32 %v1347, %v271
  %v1426 = vmul.f32 %v1348, %v272
  %v1427 = vmul.f32 %v1421, %v271
  %v1428 = vmul.f32 %v1422, %v272
  %v1429 = vmul.f32 %v1419, %v271
  %v1430 = vmul.f32 %v1420, %v272
  %v1431 = vmul.f32 %v1423, %v271
  %v1432 = vmul.f32 %v1424, %v272
  %v1433 = vadd.f32 %v1407, %v1425
  %v1434 = vadd.f32 %v1408, %v1426
  %v1435 = vadd.f32 %v1409, %v1427
  %v1436 = vadd.f32 %v1410, %v1428
  %v1437 = vadd.f32 %v1411, %v1429
  %v1438 = vadd.f32 %v1412, %v1430
  %v1439 = vadd.f32 %v1413, %v1431
  %v1440 = vadd.f32 %v1414, %v1432
  %1441 = vst [vmem:[#allocation2 + $0x100] sm:$0xff] %v1433
  %1442 = vst [vmem:[#allocation2 + $0x108] sm:$0xff] %v1434
  %1443 = vst [vmem:[#allocation2 + $0x110] sm:$0xff] %v1435
  %1444 = vst [vmem:[#allocation2 + $0x118] sm:$0xff] %v1436
  %1445 = vst [vmem:[#allocation2 + $0x120] sm:$0xff] %v1437
  %1446 = vst [vmem:[#allocation2 + $0x128] sm:$0xff] %v1438
  %1447 = vst [vmem:[#allocation2 + $0x130] sm:$0xff] %v1439
  %1448 = vst [vmem:[#allocation2 + $0x138] sm:$0xff] %v1440
  %v1449 = vmul.f32 %v1433, %v41
  %v1450 = vmul.f32 %v1434, %v41
  %v1451 = vmul.f32 %v1435, %v42
  %v1452 = vmul.f32 %v1436, %v42
  %v1453 = vmul.f32 %v1437, %v43
  %v1454 = vmul.f32 %v1438, %v43
  %v1455 = vmul.f32 %v1439, %v44
  %v1456 = vmul.f32 %v1440, %v44
  %v1457 = vadd.f32 %v1449, %v1451
  %v1458 = vadd.f32 %v1457, %v1453
  %v1459 = vadd.f32 %v1458, %v1455
  %v1460 = vrot.slane %v1459, 4
  %v1461 = vadd.f32 %v1459, %v1460
  %v1462 = vrot.slane %v1461, 2
  %v1463 = vadd.f32 %v1461, %v1462
  %v1464 = vrot.slane %v1463, 1
  %v1465 = vadd.f32 %v1463, %v1464
  %v1466 = vadd.f32 %v1450, %v1452
  %v1467 = vadd.f32 %v1466, %v1454
  %v1468 = vadd.f32 %v1467, %v1456
  %v1469 = vrot.slane %v1468, 4
  %v1470 = vadd.f32 %v1468, %v1469
  %v1471 = vrot.slane %v1470, 2
  %v1472 = vadd.f32 %v1470, %v1471
  %v1473 = vrot.slane %v1472, 1
  %v1474 = vadd.f32 %v1472, %v1473
  %v1475 = vadd.f32 %v1187, %v1465
  %v1476 = vadd.f32 %v1188, %v1474
  %v1477 = vmul.f32 %v1449, %v1449
  %v1478 = vmul.f32 %v1450, %v1450
  %v1479 = vmul.f32 %v1451, %v1451
  %v1480 = vmul.f32 %v1452, %v1452
  %v1481 = vmul.f32 %v1453, %v1453
  %v1482 = vmul.f32 %v1454, %v1454
  %v1483 = vmul.f32 %v1455, %v1455
  %v1484 = vmul.f32 %v1456, %v1456
  %v1485 = vadd.f32 %v1477, %v1479
  %v1486 = vadd.f32 %v1485, %v1481
  %v1487 = vadd.f32 %v1486, %v1483
  %v1488 = vrot.slane %v1487, 4
  %v1489 = vadd.f32 %v1487, %v1488
  %v1490 = vrot.slane %v1489, 2
  %v1491 = vadd.f32 %v1489, %v1490
  %v1492 = vrot.slane %v1491, 1
  %v1493 = vadd.f32 %v1491, %v1492
  %v1494 = vadd.f32 %v1478, %v1480
  %v1495 = vadd.f32 %v1494, %v1482
  %v1496 = vadd.f32 %v1495, %v1484
  %v1497 = vrot.slane %v1496, 4
  %v1498 = vadd.f32 %v1496, %v1497
  %v1499 = vrot.slane %v1498, 2
  %v1500 = vadd.f32 %v1498, %v1499
  %v1501 = vrot.slane %v1500, 1
  %v1502 = vadd.f32 %v1500, %v1501
  %v1503 = vadd.f32 %v1215, %v1493
  %v1504 = vadd.f32 %v1216, %v1502
  %v1505 = vld [vmem:[%s0 + $0x140] sm:$0xff]
  %v1506 = vld [vmem:[%s0 + $0x148] sm:$0xff]
  %v1507 = vld [vmem:[%s0 + $0x150] sm:$0xff]
  %v1508 = vld [vmem:[%s0 + $0x158] sm:$0xff]
  %v1509 = vld [vmem:[%s0 + $0x160] sm:$0xff]
  %v1510 = vld [vmem:[%s0 + $0x168] sm:$0xff]
  %v1511 = vld [vmem:[%s0 + $0x170] sm:$0xff]
  %v1512 = vld [vmem:[%s0 + $0x178] sm:$0xff]
  %v1513 = vmul.f32 %v1505, %v53
  %v1514 = vmul.f32 %v1506, %v54
  %v1515 = vmul.f32 %v1507, %v53
  %v1516 = vmul.f32 %v1508, %v54
  %v1517 = vmul.f32 %v1509, %v53
  %v1518 = vmul.f32 %v1510, %v54
  %v1519 = vmul.f32 %v1511, %v53
  %v1520 = vmul.f32 %v1512, %v54
  %v1521 = vrot.slane %v1505, 1
  %v1522 = vrot.slane %v1506, 1
  %v1523 = vrot.slane %v1507, 1
  %v1524 = vrot.slane %v1508, 1
  %v1525 = vrot.slane %v1509, 1
  %v1526 = vrot.slane %v1510, 1
  %v1527 = vrot.slane %v1511, 1
  %v1528 = vrot.slane %v1512, 1
  %v1529 = vsel %vm71, %v1525, %v1527
  %v1530 = vsel %vm71, %v1526, %v1528
  %v1531 = vsel %vm71, %v1523, %v1525
  %v1532 = vsel %vm71, %v1524, %v1526
  %v1533 = vsel %vm71, %v1521, %v1523
  %v1534 = vsel %vm71, %v1522, %v1524
  %v1535 = vsel %vm71, %v1527, %v1521
  %v1536 = vsel %vm71, %v1528, %v1522
  %v1537 = vmul.f32 %v1533, %v80
  %v1538 = vmul.f32 %v1534, %v81
  %v1539 = vmul.f32 %v1531, %v80
  %v1540 = vmul.f32 %v1532, %v81
  %v1541 = vmul.f32 %v1529, %v80
  %v1542 = vmul.f32 %v1530, %v81
  %v1543 = vmul.f32 %v1535, %v80
  %v1544 = vmul.f32 %v1536, %v81
  %v1545 = vadd.f32 %v1513, %v1537
  %v1546 = vadd.f32 %v1514, %v1538
  %v1547 = vadd.f32 %v1515, %v1539
  %v1548 = vadd.f32 %v1516, %v1540
  %v1549 = vadd.f32 %v1517, %v1541
  %v1550 = vadd.f32 %v1518, %v1542
  %v1551 = vadd.f32 %v1519, %v1543
  %v1552 = vadd.f32 %v1520, %v1544
  %v1553 = vrot.slane %v1505, 2
  %v1554 = vrot.slane %v1506, 2
  %v1555 = vrot.slane %v1507, 2
  %v1556 = vrot.slane %v1508, 2
  %v1557 = vrot.slane %v1509, 2
  %v1558 = vrot.slane %v1510, 2
  %v1559 = vrot.slane %v1511, 2
  %v1560 = vrot.slane %v1512, 2
  %v1561 = vsel %vm106, %v1557, %v1559
  %v1562 = vsel %vm106, %v1558, %v1560
  %v1563 = vsel %vm106, %v1555, %v1557
  %v1564 = vsel %vm106, %v1556, %v1558
  %v1565 = vsel %vm106, %v1553, %v1555
  %v1566 = vsel %vm106, %v1554, %v1556
  %v1567 = vsel %vm106, %v1559, %v1553
  %v1568 = vsel %vm106, %v1560, %v1554
  %v1569 = vmul.f32 %v1565, %v115
  %v1570 = vmul.f32 %v1566, %v116
  %v1571 = vmul.f32 %v1563, %v115
  %v1572 = vmul.f32 %v1564, %v116
  %v1573 = vmul.f32 %v1561, %v115
  %v1574 = vmul.f32 %v1562, %v116
  %v1575 = vmul.f32 %v1567, %v115
  %v1576 = vmul.f32 %v1568, %v116
  %v1577 = vadd.f32 %v1545, %v1569
  %v1578 = vadd.f32 %v1546, %v1570
  %v1579 = vadd.f32 %v1547, %v1571
  %v1580 = vadd.f32 %v1548, %v1572
  %v1581 = vadd.f32 %v1549, %v1573
  %v1582 = vadd.f32 %v1550, %v1574
  %v1583 = vadd.f32 %v1551, %v1575
  %v1584 = vadd.f32 %v1552, %v1576
  %v1585 = vld [vmem:[%s0 + $0x180] sm:$0xff]
  %v1586 = vld [vmem:[%s0 + $0x188] sm:$0xff]
  %v1587 = vld [vmem:[%s0 + $0x190] sm:$0xff]
  %v1588 = vld [vmem:[%s0 + $0x198] sm:$0xff]
  %v1589 = vmul.f32 %v1509, %v137
  %v1590 = vmul.f32 %v1510, %v138
  %v1591 = vmul.f32 %v1511, %v137
  %v1592 = vmul.f32 %v1512, %v138
  %v1593 = vmul.f32 %v1585, %v137
  %v1594 = vmul.f32 %v1586, %v138
  %v1595 = vmul.f32 %v1587, %v137
  %v1596 = vmul.f32 %v1588, %v138
  %v1597 = vadd.f32 %v1577, %v1589
  %v1598 = vadd.f32 %v1578, %v1590
  %v1599 = vadd.f32 %v1579, %v1591
  %v1600 = vadd.f32 %v1580, %v1592
  %v1601 = vadd.f32 %v1581, %v1593
  %v1602 = vadd.f32 %v1582, %v1594
  %v1603 = vadd.f32 %v1583, %v1595
  %v1604 = vadd.f32 %v1584, %v1596
  %v1605 = vrot.slane %v1585, 1
  %v1606 = vrot.slane %v1586, 1
  %v1607 = vrot.slane %v1587, 1
  %v1608 = vrot.slane %v1588, 1
  %v1609 = vsel %vm71, %v1605, %v1607
  %v1610 = vsel %vm71, %v1606, %v1608
  %v1611 = vsel %vm71, %v1527, %v1605
  %v1612 = vsel %vm71, %v1528, %v1606
  %v1613 = vsel %vm71, %v1607, %v1525
  %v1614 = vsel %vm71, %v1608, %v1526
  %v1615 = vmul.f32 %v1529, %v165
  %v1616 = vmul.f32 %v1530, %v166
  %v1617 = vmul.f32 %v1611, %v165
  %v1618 = vmul.f32 %v1612, %v166
  %v1619 = vmul.f32 %v1609, %v165
  %v1620 = vmul.f32 %v1610, %v166
  %v1621 = vmul.f32 %v1613, %v165
  %v1622 = vmul.f32 %v1614, %v166
  %v1623 = vadd.f32 %v1597, %v1615
  %v1624 = vadd.f32 %v1598, %v1616
  %v1625 = vadd.f32 %v1599, %v1617
  %v1626 = vadd.f32 %v1600, %v1618
  %v1627 = vadd.f32 %v1601, %v1619
  %v1628 = vadd.f32 %v1602, %v1620
  %v1629 = vadd.f32 %v1603, %v1621
  %v1630 = vadd.f32 %v1604, %v1622
  %v1631 = vrot.slane %v1585, 2
  %v1632 = vrot.slane %v1586, 2
  %v1633 = vrot.slane %v1587, 2
  %v1634 = vrot.slane %v1588, 2
  %v1635 = vsel %vm106, %v1631, %v1633
  %v1636 = vsel %vm106, %v1632, %v1634
  %v1637 = vsel %vm106, %v1559, %v1631
  %v1638 = vsel %vm106, %v1560, %v1632
  %v1639 = vsel %vm106, %v1633, %v1557
  %v1640 = vsel %vm106, %v1634, %v1558
  %v1641 = vmul.f32 %v1561, %v193
  %v1642 = vmul.f32 %v1562, %v194
  %v1643 = vmul.f32 %v1637, %v193
  %v1644 = vmul.f32 %v1638, %v194
  %v1645 = vmul.f32 %v1635, %v193
  %v1646 = vmul.f32 %v1636, %v194
  %v1647 = vmul.f32 %v1639, %v193
  %v1648 = vmul.f32 %v1640, %v194
  %v1649 = vadd.f32 %v1623, %v1641
  %v1650 = vadd.f32 %v1624, %v1642
  %v1651 = vadd.f32 %v1625, %v1643
  %v1652 = vadd.f32 %v1626, %v1644
  %v1653 = vadd.f32 %v1627, %v1645
  %v1654 = vadd.f32 %v1628, %v1646
  %v1655 = vadd.f32 %v1629, %v1647
  %v1656 = vadd.f32 %v1630, %v1648
  %v1657 = vld [vmem:[%s0 + $0x1a0] sm:$0xff]
  %v1658 = vld [vmem:[%s0 + $0x1a8] sm:$0xff]
  %v1659 = vld [vmem:[%s0 + $0x1b0] sm:$0xff]
  %v1660 = vld [vmem:[%s0 + $0x1b8] sm:$0xff]
  %v1661 = vmul.f32 %v1585, %v215
  %v1662 = vmul.f32 %v1586, %v216
  %v1663 = vmul.f32 %v1587, %v215
  %v1664 = vmul.f32 %v1588, %v216
  %v1665 = vmul.f32 %v1657, %v215
  %v1666 = vmul.f32 %v1658, %v216
  %v1667 = vmul.f32 %v1659, %v215
  %v1668 = vmul.f32 %v1660, %v216
  %v1669 = vadd.f32 %v1649, %v1661
  %v1670 = vadd.f32 %v1650, %v1662
  %v1671 = vadd.f32 %v1651, %v1663
  %v1672 = vadd.f32 %v1652, %v1664
  %v1673 = vadd.f32 %v1653, %v1665
  %v1674 = vadd.f32 %v1654, %v1666
  %v1675 = vadd.f32 %v1655, %v1667
  %v1676 = vadd.f32 %v1656, %v1668
  %v1677 = vrot.slane %v1657, 1
  %v1678 = vrot.slane %v1658, 1
  %v1679 = vrot.slane %v1659, 1
  %v1680 = vrot.slane %v1660, 1
  %v1681 = vsel %vm71, %v1677, %v1679
  %v1682 = vsel %vm71, %v1678, %v1680
  %v1683 = vsel %vm71, %v1607, %v1677
  %v1684 = vsel %vm71, %v1608, %v1678
  %v1685 = vsel %vm71, %v1679, %v1605
  %v1686 = vsel %vm71, %v1680, %v1606
  %v1687 = vmul.f32 %v1609, %v243
  %v1688 = vmul.f32 %v1610, %v244
  %v1689 = vmul.f32 %v1683, %v243
  %v1690 = vmul.f32 %v1684, %v244
  %v1691 = vmul.f32 %v1681, %v243
  %v1692 = vmul.f32 %v1682, %v244
  %v1693 = vmul.f32 %v1685, %v243
  %v1694 = vmul.f32 %v1686, %v244
  %v1695 = vadd.f32 %v1669, %v1687
  %v1696 = vadd.f32 %v1670, %v1688
  %v1697 = vadd.f32 %v1671, %v1689
  %v1698 = vadd.f32 %v1672, %v1690
  %v1699 = vadd.f32 %v1673, %v1691
  %v1700 = vadd.f32 %v1674, %v1692
  %v1701 = vadd.f32 %v1675, %v1693
  %v1702 = vadd.f32 %v1676, %v1694
  %v1703 = vrot.slane %v1657, 2
  %v1704 = vrot.slane %v1658, 2
  %v1705 = vrot.slane %v1659, 2
  %v1706 = vrot.slane %v1660, 2
  %v1707 = vsel %vm106, %v1703, %v1705
  %v1708 = vsel %vm106, %v1704, %v1706
  %v1709 = vsel %vm106, %v1633, %v1703
  %v1710 = vsel %vm106, %v1634, %v1704
  %v1711 = vsel %vm106, %v1705, %v1631
  %v1712 = vsel %vm106, %v1706, %v1632
  %v1713 = vmul.f32 %v1635, %v271
  %v1714 = vmul.f32 %v1636, %v272
  %v1715 = vmul.f32 %v1709, %v271
  %v1716 = vmul.f32 %v1710, %v272
  %v1717 = vmul.f32 %v1707, %v271
  %v1718 = vmul.f32 %v1708, %v272
  %v1719 = vmul.f32 %v1711, %v271
  %v1720 = vmul.f32 %v1712, %v272
  %v1721 = vadd.f32 %v1695, %v1713
  %v1722 = vadd.f32 %v1696, %v1714
  %v1723 = vadd.f32 %v1697, %v1715
  %v1724 = vadd.f32 %v1698, %v1716
  %v1725 = vadd.f32 %v1699, %v1717
  %v1726 = vadd.f32 %v1700, %v1718
  %v1727 = vadd.f32 %v1701, %v1719
  %v1728 = vadd.f32 %v1702, %v1720
  %1729 = vst [vmem:[#allocation2 + $0x140] sm:$0xff] %v1721
  %1730 = vst [vmem:[#allocation2 + $0x148] sm:$0xff] %v1722
  %1731 = vst [vmem:[#allocation2 + $0x150] sm:$0xff] %v1723
  %1732 = vst [vmem:[#allocation2 + $0x158] sm:$0xff] %v1724
  %1733 = vst [vmem:[#allocation2 + $0x160] sm:$0xff] %v1725
  %1734 = vst [vmem:[#allocation2 + $0x168] sm:$0xff] %v1726
  %1735 = vst [vmem:[#allocation2 + $0x170] sm:$0xff] %v1727
  %1736 = vst [vmem:[#allocation2 + $0x178] sm:$0xff] %v1728
  %v1737 = vmul.f32 %v1721, %v41
  %v1738 = vmul.f32 %v1722, %v41
  %v1739 = vmul.f32 %v1723, %v42
  %v1740 = vmul.f32 %v1724, %v42
  %v1741 = vmul.f32 %v1725, %v43
  %v1742 = vmul.f32 %v1726, %v43
  %v1743 = vmul.f32 %v1727, %v44
  %v1744 = vmul.f32 %v1728, %v44
  %v1745 = vadd.f32 %v1737, %v1739
  %v1746 = vadd.f32 %v1745, %v1741
  %v1747 = vadd.f32 %v1746, %v1743
  %v1748 = vrot.slane %v1747, 4
  %v1749 = vadd.f32 %v1747, %v1748
  %v1750 = vrot.slane %v1749, 2
  %v1751 = vadd.f32 %v1749, %v1750
  %v1752 = vrot.slane %v1751, 1
  %v1753 = vadd.f32 %v1751, %v1752
  %v1754 = vadd.f32 %v1738, %v1740
  %v1755 = vadd.f32 %v1754, %v1742
  %v1756 = vadd.f32 %v1755, %v1744
  %v1757 = vrot.slane %v1756, 4
  %v1758 = vadd.f32 %v1756, %v1757
  %v1759 = vrot.slane %v1758, 2
  %v1760 = vadd.f32 %v1758, %v1759
  %v1761 = vrot.slane %v1760, 1
  %v1762 = vadd.f32 %v1760, %v1761
  %v1763 = vadd.f32 %v1475, %v1753
  %v1764 = vadd.f32 %v1476, %v1762
  %v1765 = vmul.f32 %v1737, %v1737
  %v1766 = vmul.f32 %v1738, %v1738
  %v1767 = vmul.f32 %v1739, %v1739
  %v1768 = vmul.f32 %v1740, %v1740
  %v1769 = vmul.f32 %v1741, %v1741
  %v1770 = vmul.f32 %v1742, %v1742
  %v1771 = vmul.f32 %v1743, %v1743
  %v1772 = vmul.f32 %v1744, %v1744
  %v1773 = vadd.f32 %v1765, %v1767
  %v1774 = vadd.f32 %v1773, %v1769
  %v1775 = vadd.f32 %v1774, %v1771
  %v1776 = vrot.slane %v1775, 4
  %v1777 = vadd.f32 %v1775, %v1776
  %v1778 = vrot.slane %v1777, 2
  %v1779 = vadd.f32 %v1777, %v1778
  %v1780 = vrot.slane %v1779, 1
  %v1781 = vadd.f32 %v1779, %v1780
  %v1782 = vadd.f32 %v1766, %v1768
  %v1783 = vadd.f32 %v1782, %v1770
  %v1784 = vadd.f32 %v1783, %v1772
  %v1785 = vrot.slane %v1784, 4
  %v1786 = vadd.f32 %v1784, %v1785
  %v1787 = vrot.slane %v1786, 2
  %v1788 = vadd.f32 %v1786, %v1787
  %v1789 = vrot.slane %v1788, 1
  %v1790 = vadd.f32 %v1788, %v1789
  %v1791 = vadd.f32 %v1503, %v1781
  %v1792 = vadd.f32 %v1504, %v1790
  %v1793 = vld [vmem:[%s0 + $0x180] sm:$0xff]
  %v1794 = vld [vmem:[%s0 + $0x188] sm:$0xff]
  %v1795 = vld [vmem:[%s0 + $0x190] sm:$0xff]
  %v1796 = vld [vmem:[%s0 + $0x198] sm:$0xff]
  %v1797 = vld [vmem:[%s0 + $0x1a0] sm:$0xff]
  %v1798 = vld [vmem:[%s0 + $0x1a8] sm:$0xff]
  %v1799 = vld [vmem:[%s0 + $0x1b0] sm:$0xff]
  %v1800 = vld [vmem:[%s0 + $0x1b8] sm:$0xff]
  %v1801 = vmul.f32 %v1793, %v53
  %v1802 = vmul.f32 %v1794, %v54
  %v1803 = vmul.f32 %v1795, %v53
  %v1804 = vmul.f32 %v1796, %v54
  %v1805 = vmul.f32 %v1797, %v53
  %v1806 = vmul.f32 %v1798, %v54
  %v1807 = vmul.f32 %v1799, %v53
  %v1808 = vmul.f32 %v1800, %v54
  %v1809 = vrot.slane %v1793, 1
  %v1810 = vrot.slane %v1794, 1
  %v1811 = vrot.slane %v1795, 1
  %v1812 = vrot.slane %v1796, 1
  %v1813 = vrot.slane %v1797, 1
  %v1814 = vrot.slane %v1798, 1
  %v1815 = vrot.slane %v1799, 1
  %v1816 = vrot.slane %v1800, 1
  %v1817 = vsel %vm71, %v1813, %v1815
  %v1818 = vsel %vm71, %v1814, %v1816
  %v1819 = vsel %vm71, %v1811, %v1813
  %v1820 = vsel %vm71, %v1812, %v1814
  %v1821 = vsel %vm71, %v1809, %v1811
  %v1822 = vsel %vm71, %v1810, %v1812
  %v1823 = vsel %vm71, %v1815, %v1809
  %v1824 = vsel %vm71, %v1816, %v1810
  %v1825 = vmul.f32 %v1821, %v80
  %v1826 = vmul.f32 %v1822, %v81
  %v1827 = vmul.f32 %v1819, %v80
  %v1828 = vmul.f32 %v1820, %v81
  %v1829 = vmul.f32 %v1817, %v80
  %v1830 = vmul.f32 %v1818, %v81
  %v1831 = vmul.f32 %v1823, %v80
  %v1832 = vmul.f32 %v1824, %v81
  %v1833 = vadd.f32 %v1801, %v1825
  %v1834 = vadd.f32 %v1802, %v1826
  %v1835 = vadd.f32 %v1803, %v1827
  %v1836 = vadd.f32 %v1804, %v1828
  %v1837 = vadd.f32 %v1805, %v1829
  %v1838 = vadd.f32 %v1806, %v1830
  %v1839 = vadd.f32 %v1807, %v1831
  %v1840 = vadd.f32 %v1808, %v1832
  %v1841 = vrot.slane %v1793, 2
  %v1842 = vrot.slane %v1794, 2
  %v1843 = vrot.slane %v1795, 2
  %v1844 = vrot.slane %v1796, 2
  %v1845 = vrot.slane %v1797, 2
  %v1846 = vrot.slane %v1798, 2
  %v1847 = vrot.slane %v1799, 2
  %v1848 = vrot.slane %v1800, 2
  %v1849 = vsel %vm106, %v1845, %v1847
  %v1850 = vsel %vm106, %v1846, %v1848
  %v1851 = vsel %vm106, %v1843, %v1845
  %v1852 = vsel %vm106, %v1844, %v1846
  %v1853 = vsel %vm106, %v1841, %v1843
  %v1854 = vsel %vm106, %v1842, %v1844
  %v1855 = vsel %vm106, %v1847, %v1841
  %v1856 = vsel %vm106, %v1848, %v1842
  %v1857 = vmul.f32 %v1853, %v115
  %v1858 = vmul.f32 %v1854, %v116
  %v1859 = vmul.f32 %v1851, %v115
  %v1860 = vmul.f32 %v1852, %v116
  %v1861 = vmul.f32 %v1849, %v115
  %v1862 = vmul.f32 %v1850, %v116
  %v1863 = vmul.f32 %v1855, %v115
  %v1864 = vmul.f32 %v1856, %v116
  %v1865 = vadd.f32 %v1833, %v1857
  %v1866 = vadd.f32 %v1834, %v1858
  %v1867 = vadd.f32 %v1835, %v1859
  %v1868 = vadd.f32 %v1836, %v1860
  %v1869 = vadd.f32 %v1837, %v1861
  %v1870 = vadd.f32 %v1838, %v1862
  %v1871 = vadd.f32 %v1839, %v1863
  %v1872 = vadd.f32 %v1840, %v1864
  %v1873 = vld [vmem:[%s0 + $0x1c0] sm:$0xff]
  %v1874 = vld [vmem:[%s0 + $0x1c8] sm:$0xff]
  %v1875 = vld [vmem:[%s0 + $0x1d0] sm:$0xff]
  %v1876 = vld [vmem:[%s0 + $0x1d8] sm:$0xff]
  %v1877 = vmul.f32 %v1797, %v137
  %v1878 = vmul.f32 %v1798, %v138
  %v1879 = vmul.f32 %v1799, %v137
  %v1880 = vmul.f32 %v1800, %v138
  %v1881 = vmul.f32 %v1873, %v137
  %v1882 = vmul.f32 %v1874, %v138
  %v1883 = vmul.f32 %v1875, %v137
  %v1884 = vmul.f32 %v1876, %v138
  %v1885 = vadd.f32 %v1865, %v1877
  %v1886 = vadd.f32 %v1866, %v1878
  %v1887 = vadd.f32 %v1867, %v1879
  %v1888 = vadd.f32 %v1868, %v1880
  %v1889 = vadd.f32 %v1869, %v1881
  %v1890 = vadd.f32 %v1870, %v1882
  %v1891 = vadd.f32 %v1871, %v1883
  %v1892 = vadd.f32 %v1872, %v1884
  %v1893 = vrot.slane %v1873, 1
  %v1894 = vrot.slane %v1874, 1
  %v1895 = vrot.slane %v1875, 1
  %v1896 = vrot.slane %v1876, 1
  %v1897 = vsel %vm71, %v1893, %v1895
  %v1898 = vsel %vm71, %v1894, %v1896
  %v1899 = vsel %vm71, %v1815, %v1893
  %v1900 = vsel %vm71, %v1816, %v1894
  %v1901 = vsel %vm71, %v1895, %v1813
  %v1902 = vsel %vm71, %v1896, %v1814
  %v1903 = vmul.f32 %v1817, %v165
  %v1904 = vmul.f32 %v1818, %v166
  %v1905 = vmul.f32 %v1899, %v165
  %v1906 = vmul.f32 %v1900, %v166
  %v1907 = vmul.f32 %v1897, %v165
  %v1908 = vmul.f32 %v1898, %v166
  %v1909 = vmul.f32 %v1901, %v165
  %v1910 = vmul.f32 %v1902, %v166
  %v1911 = vadd.f32 %v1885, %v1903
  %v1912 = vadd.f32 %v1886, %v1904
  %v1913 = vadd.f32 %v1887, %v1905
  %v1914 = vadd.f32 %v1888, %v1906
  %v1915 = vadd.f32 %v1889, %v1907
  %v1916 = vadd.f32 %v1890, %v1908
  %v1917 = vadd.f32 %v1891, %v1909
  %v1918 = vadd.f32 %v1892, %v1910
  %v1919 = vrot.slane %v1873, 2
  %v1920 = vrot.slane %v1874, 2
  %v1921 = vrot.slane %v1875, 2
  %v1922 = vrot.slane %v1876, 2
  %v1923 = vsel %vm106, %v1919, %v1921
  %v1924 = vsel %vm106, %v1920, %v1922
  %v1925 = vsel %vm106, %v1847, %v1919
  %v1926 = vsel %vm106, %v1848, %v1920
  %v1927 = vsel %vm106, %v1921, %v1845
  %v1928 = vsel %vm106, %v1922, %v1846
  %v1929 = vmul.f32 %v1849, %v193
  %v1930 = vmul.f32 %v1850, %v194
  %v1931 = vmul.f32 %v1925, %v193
  %v1932 = vmul.f32 %v1926, %v194
  %v1933 = vmul.f32 %v1923, %v193
  %v1934 = vmul.f32 %v1924, %v194
  %v1935 = vmul.f32 %v1927, %v193
  %v1936 = vmul.f32 %v1928, %v194
  %v1937 = vadd.f32 %v1911, %v1929
  %v1938 = vadd.f32 %v1912, %v1930
  %v1939 = vadd.f32 %v1913, %v1931
  %v1940 = vadd.f32 %v1914, %v1932
  %v1941 = vadd.f32 %v1915, %v1933
  %v1942 = vadd.f32 %v1916, %v1934
  %v1943 = vadd.f32 %v1917, %v1935
  %v1944 = vadd.f32 %v1918, %v1936
  %v1945 = vld [vmem:[%s0 + $0x1c0] sm:$0xff]
  %v1946 = vld [vmem:[%s0 + $0x1c8] sm:$0xff]
  %v1947 = vld [vmem:[%s0 + $0x1d0] sm:$0xff]
  %v1948 = vld [vmem:[%s0 + $0x1d8] sm:$0xff]
  %v1949 = vld [vmem:[%s0 + $0x1e0] sm:$0xff]
  %v1950 = vld [vmem:[%s0 + $0x1e8] sm:$0xff]
  %v1951 = vld [vmem:[%s0 + $0x1f0] sm:$0xff]
  %v1952 = vld [vmem:[%s0 + $0x1f8] sm:$0xff]
  %v1953 = vmul.f32 %v1945, %v215
  %v1954 = vmul.f32 %v1946, %v216
  %v1955 = vmul.f32 %v1947, %v215
  %v1956 = vmul.f32 %v1948, %v216
  %v1957 = vmul.f32 %v1949, %v215
  %v1958 = vmul.f32 %v1950, %v216
  %v1959 = vmul.f32 %v1951, %v215
  %v1960 = vmul.f32 %v1952, %v216
  %v1961 = vadd.f32 %v1937, %v1953
  %v1962 = vadd.f32 %v1938, %v1954
  %v1963 = vadd.f32 %v1939, %v1955
  %v1964 = vadd.f32 %v1940, %v1956
  %v1965 = vadd.f32 %v1941, %v1957
  %v1966 = vadd.f32 %v1942, %v1958
  %v1967 = vadd.f32 %v1943, %v1959
  %v1968 = vadd.f32 %v1944, %v1960
  %v1969 = vrot.slane %v1945, 1
  %v1970 = vrot.slane %v1946, 1
  %v1971 = vrot.slane %v1947, 1
  %v1972 = vrot.slane %v1948, 1
  %v1973 = vrot.slane %v1949, 1
  %v1974 = vrot.slane %v1950, 1
  %v1975 = vrot.slane %v1951, 1
  %v1976 = vrot.slane %v1952, 1
  %v1977 = vsel %vm71, %v1973, %v1975
  %v1978 = vsel %vm71, %v1974, %v1976
  %v1979 = vsel %vm71, %v1971, %v1973
  %v1980 = vsel %vm71, %v1972, %v1974
  %v1981 = vsel %vm71, %v1969, %v1971
  %v1982 = vsel %vm71, %v1970, %v1972
  %v1983 = vsel %vm71, %v1975, %v1969
  %v1984 = vsel %vm71, %v1976, %v1970
  %v1985 = vmul.f32 %v1981, %v243
  %v1986 = vmul.f32 %v1982, %v244
  %v1987 = vmul.f32 %v1979, %v243
  %v1988 = vmul.f32 %v1980, %v244
  %v1989 = vmul.f32 %v1977, %v243
  %v1990 = vmul.f32 %v1978, %v244
  %v1991 = vmul.f32 %v1983, %v243
  %v1992 = vmul.f32 %v1984, %v244
  %v1993 = vadd.f32 %v1961, %v1985
  %v1994 = vadd.f32 %v1962, %v1986
  %v1995 = vadd.f32 %v1963, %v1987
  %v1996 = vadd.f32 %v1964, %v1988
  %v1997 = vadd.f32 %v1965, %v1989
  %v1998 = vadd.f32 %v1966, %v1990
  %v1999 = vadd.f32 %v1967, %v1991
  %v2000 = vadd.f32 %v1968, %v1992
  %v2001 = vrot.slane %v1945, 2
  %v2002 = vrot.slane %v1946, 2
  %v2003 = vrot.slane %v1947, 2
  %v2004 = vrot.slane %v1948, 2
  %v2005 = vrot.slane %v1949, 2
  %v2006 = vrot.slane %v1950, 2
  %v2007 = vrot.slane %v1951, 2
  %v2008 = vrot.slane %v1952, 2
  %v2009 = vsel %vm106, %v2005, %v2007
  %v2010 = vsel %vm106, %v2006, %v2008
  %v2011 = vsel %vm106, %v2003, %v2005
  %v2012 = vsel %vm106, %v2004, %v2006
  %v2013 = vsel %vm106, %v2001, %v2003
  %v2014 = vsel %vm106, %v2002, %v2004
  %v2015 = vsel %vm106, %v2007, %v2001
  %v2016 = vsel %vm106, %v2008, %v2002
  %v2017 = vmul.f32 %v2013, %v271
  %v2018 = vmul.f32 %v2014, %v272
  %v2019 = vmul.f32 %v2011, %v271
  %v2020 = vmul.f32 %v2012, %v272
  %v2021 = vmul.f32 %v2009, %v271
  %v2022 = vmul.f32 %v2010, %v272
  %v2023 = vmul.f32 %v2015, %v271
  %v2024 = vmul.f32 %v2016, %v272
  %v2025 = vadd.f32 %v1993, %v2017
  %v2026 = vadd.f32 %v1994, %v2018
  %v2027 = vadd.f32 %v1995, %v2019
  %v2028 = vadd.f32 %v1996, %v2020
  %v2029 = vadd.f32 %v1997, %v2021
  %v2030 = vadd.f32 %v1998, %v2022
  %v2031 = vadd.f32 %v1999, %v2023
  %v2032 = vadd.f32 %v2000, %v2024
  %2033 = vst [vmem:[#allocation2 + $0x180] sm:$0xff] %v2025
  %2034 = vst [vmem:[#allocation2 + $0x188] sm:$0xff] %v2026
  %2035 = vst [vmem:[#allocation2 + $0x190] sm:$0xff] %v2027
  %2036 = vst [vmem:[#allocation2 + $0x198] sm:$0xff] %v2028
  %2037 = vst [vmem:[#allocation2 + $0x1a0] sm:$0xff] %v2029
  %2038 = vst [vmem:[#allocation2 + $0x1a8] sm:$0xff] %v2030
  %2039 = vst [vmem:[#allocation2 + $0x1b0] sm:$0xff] %v2031
  %2040 = vst [vmem:[#allocation2 + $0x1b8] sm:$0xff] %v2032
  %v2041 = vmul.f32 %v2025, %v41
  %v2042 = vmul.f32 %v2026, %v41
  %v2043 = vmul.f32 %v2027, %v42
  %v2044 = vmul.f32 %v2028, %v42
  %v2045 = vmul.f32 %v2029, %v43
  %v2046 = vmul.f32 %v2030, %v43
  %v2047 = vmul.f32 %v2031, %v44
  %v2048 = vmul.f32 %v2032, %v44
  %v2049 = vadd.f32 %v2041, %v2043
  %v2050 = vadd.f32 %v2049, %v2045
  %v2051 = vadd.f32 %v2050, %v2047
  %v2052 = vrot.slane %v2051, 4
  %v2053 = vadd.f32 %v2051, %v2052
  %v2054 = vrot.slane %v2053, 2
  %v2055 = vadd.f32 %v2053, %v2054
  %v2056 = vrot.slane %v2055, 1
  %v2057 = vadd.f32 %v2055, %v2056
  %v2058 = vadd.f32 %v2042, %v2044
  %v2059 = vadd.f32 %v2058, %v2046
  %v2060 = vadd.f32 %v2059, %v2048
  %v2061 = vrot.slane %v2060, 4
  %v2062 = vadd.f32 %v2060, %v2061
  %v2063 = vrot.slane %v2062, 2
  %v2064 = vadd.f32 %v2062, %v2063
  %v2065 = vrot.slane %v2064, 1
  %v2066 = vadd.f32 %v2064, %v2065
  %v2067 = vadd.f32 %v1763, %v2057
  %v2068 = vadd.f32 %v1764, %v2066
  %v2069 = vmul.f32 %v2041, %v2041
  %v2070 = vmul.f32 %v2042, %v2042
  %v2071 = vmul.f32 %v2043, %v2043
  %v2072 = vmul.f32 %v2044, %v2044
  %v2073 = vmul.f32 %v2045, %v2045
  %v2074 = vmul.f32 %v2046, %v2046
  %v2075 = vmul.f32 %v2047, %v2047
  %v2076 = vmul.f32 %v2048, %v2048
  %v2077 = vadd.f32 %v2069, %v2071
  %v2078 = vadd.f32 %v2077, %v2073
  %v2079 = vadd.f32 %v2078, %v2075
  %v2080 = vrot.slane %v2079, 4
  %v2081 = vadd.f32 %v2079, %v2080
  %v2082 = vrot.slane %v2081, 2
  %v2083 = vadd.f32 %v2081, %v2082
  %v2084 = vrot.slane %v2083, 1
  %v2085 = vadd.f32 %v2083, %v2084
  %v2086 = vadd.f32 %v2070, %v2072
  %v2087 = vadd.f32 %v2086, %v2074
  %v2088 = vadd.f32 %v2087, %v2076
  %v2089 = vrot.slane %v2088, 4
  %v2090 = vadd.f32 %v2088, %v2089
  %v2091 = vrot.slane %v2090, 2
  %v2092 = vadd.f32 %v2090, %v2091
  %v2093 = vrot.slane %v2092, 1
  %v2094 = vadd.f32 %v2092, %v2093
  %v2095 = vadd.f32 %v1791, %v2085
  %v2096 = vadd.f32 %v1792, %v2094
  %v2097 = vrcp.pop 196.0
  %v2098 = vmul.f32 196.0, %v2097
  %v2099 = vsub.f32 1.0, %v2098
  %v2100 = vmul.f32 %v2097, %v2099
  %v2101 = vadd.f32 %v2097, %v2100
  %vm2102 = vweird.f32 %v2097
  %v2103 = vsel %vm2102, %v2097, %v2101
  %v2104 = vmul.f32 %v2067, %v2103
  %v2105 = vmul.f32 %v2068, %v2103
  %v2106 = vmul.f32 %v2095, %v2103
  %v2107 = vmul.f32 %v2096, %v2103
  %v2108 = vmul.f32 %v2104, %v2104
  %v2109 = vmul.f32 %v2105, %v2105
  %v2110 = vsub.f32 %v2106, %v2108
  %v2111 = vsub.f32 %v2107, %v2109
  %v2112 = vmax.f32 %v2110, 0.0
  %v2113 = vmax.f32 %v2111, 0.0
  %v2114 = vadd.f32 %v2112, 1e-05
  %v2115 = vadd.f32 %v2113, 1e-05
  %v2116 = vrsqrt.pop %v2114
  %v2117 = vmul.f32 %v2116, %v2114
  %v2118 = vmul.f32 %v2117, %v2116
  %v2119 = vmul.f32 0.5, %v2118
  %v2120 = vsub.f32 1.5, %v2119
  %v2121 = vmul.f32 %v2116, %v2120
  %vm2122 = vweird.f32 %v2114
  %vm2123 = vweird.f32 %v2116
  %vm2124 = vmor %vm2122, %vm2123
  %v2125 = vsel %vm2124, %v2116, %v2121
  %v2126 = vrsqrt.pop %v2115
  %v2127 = vmul.f32 %v2126, %v2115
  %v2128 = vmul.f32 %v2127, %v2126
  %v2129 = vmul.f32 0.5, %v2128
  %v2130 = vsub.f32 1.5, %v2129
  %v2131 = vmul.f32 %v2126, %v2130
  %vm2132 = vweird.f32 %v2115
  %vm2133 = vweird.f32 %v2126
  %vm2134 = vmor %vm2132, %vm2133
  %v2135 = vsel %vm2134, %v2126, %v2131
  %v2136 = vld [vmem:[%s2] sm:$0x3]
  %v2139 = vrot.slane %v2135, 7
  %vm2140 = vcmask 1040384
  %v2141 = vsel %vm2140, %v2125, %v2139
  %v2143 = vmul.f32 %v2136, %v2141
  %v2144 = vld [vmem:[%s3] sm:$0x3]
  %v2146 = vperm.slane %v2143, 0
  %v2147 = vperm.slane %v2143, 1
  %v2150 = vmul.f32 %v2104, %v2146
  %v2151 = vmul.f32 %v2105, %v2147
  %v2154 = vrot.slane %v2151, 7
  %v2155 = vsel %vm2140, %v2150, %v2154
  %v2157 = vsub.f32 %v2144, %v2155
  %v2158 = vld [vmem:[#allocation2] sm:$0xff]
  %v2159 = vld [vmem:[#allocation2 + $0x8] sm:$0xff]
  %v2160 = vld [vmem:[#allocation2 + $0x10] sm:$0xff]
  %v2161 = vld [vmem:[#allocation2 + $0x18] sm:$0xff]
  %v2162 = vld [vmem:[#allocation2 + $0x20] sm:$0xff]
  %v2163 = vld [vmem:[#allocation2 + $0x28] sm:$0xff]
  %v2164 = vld [vmem:[#allocation2 + $0x30] sm:$0xff]
  %v2165 = vld [vmem:[#allocation2 + $0x38] sm:$0xff]
  %v2166 = vmul.f32 %v2158, %v2146
  %v2167 = vmul.f32 %v2159, %v2147
  %v2168 = vmul.f32 %v2160, %v2146
  %v2169 = vmul.f32 %v2161, %v2147
  %v2170 = vmul.f32 %v2162, %v2146
  %v2171 = vmul.f32 %v2163, %v2147
  %v2172 = vmul.f32 %v2164, %v2146
  %v2173 = vmul.f32 %v2165, %v2147
  %v2175 = vperm.slane %v2157, 0
  %v2176 = vperm.slane %v2157, 1
  %v2179 = vadd.f32 %v2166, %v2175
  %v2180 = vadd.f32 %v2167, %v2176
  %v2181 = vadd.f32 %v2168, %v2175
  %v2182 = vadd.f32 %v2169, %v2176
  %v2183 = vadd.f32 %v2170, %v2175
  %v2184 = vadd.f32 %v2171, %v2176
  %v2185 = vadd.f32 %v2172, %v2175
  %v2186 = vadd.f32 %v2173, %v2176
  %v2187 = vpack.c.bf16 %v2180, %v2179
  %v2188 = vpack.c.bf16 %v2182, %v2181
  %v2189 = vpack.c.bf16 %v2184, %v2183
  %v2190 = vpack.c.bf16 %v2186, %v2185
  %2191 = vst [vmem:[#allocation3] sm:$0xff] %v2187
  %2192 = vst [vmem:[#allocation3 + $0x8] sm:$0xff] %v2188
  %2193 = vst [vmem:[#allocation3 + $0x10] sm:$0xff] %v2189
  %2194 = vst [vmem:[#allocation3 + $0x18] sm:$0xff] %v2190
  %v2195 = vld [vmem:[#allocation2 + $0x40] sm:$0xff]
  %v2196 = vld [vmem:[#allocation2 + $0x48] sm:$0xff]
  %v2197 = vld [vmem:[#allocation2 + $0x50] sm:$0xff]
  %v2198 = vld [vmem:[#allocation2 + $0x58] sm:$0xff]
  %v2199 = vld [vmem:[#allocation2 + $0x60] sm:$0xff]
  %v2200 = vld [vmem:[#allocation2 + $0x68] sm:$0xff]
  %v2201 = vld [vmem:[#allocation2 + $0x70] sm:$0xff]
  %v2202 = vld [vmem:[#allocation2 + $0x78] sm:$0xff]
  %v2203 = vmul.f32 %v2195, %v2146
  %v2204 = vmul.f32 %v2196, %v2147
  %v2205 = vmul.f32 %v2197, %v2146
  %v2206 = vmul.f32 %v2198, %v2147
  %v2207 = vmul.f32 %v2199, %v2146
  %v2208 = vmul.f32 %v2200, %v2147
  %v2209 = vmul.f32 %v2201, %v2146
  %v2210 = vmul.f32 %v2202, %v2147
  %v2211 = vadd.f32 %v2203, %v2175
  %v2212 = vadd.f32 %v2204, %v2176
  %v2213 = vadd.f32 %v2205, %v2175
  %v2214 = vadd.f32 %v2206, %v2176
  %v2215 = vadd.f32 %v2207, %v2175
  %v2216 = vadd.f32 %v2208, %v2176
  %v2217 = vadd.f32 %v2209, %v2175
  %v2218 = vadd.f32 %v2210, %v2176
  %v2219 = vpack.c.bf16 %v2212, %v2211
  %v2220 = vpack.c.bf16 %v2214, %v2213
  %v2221 = vpack.c.bf16 %v2216, %v2215
  %v2222 = vpack.c.bf16 %v2218, %v2217
  %2223 = vst [vmem:[#allocation3 + $0x20] sm:$0xff] %v2219
  %2224 = vst [vmem:[#allocation3 + $0x28] sm:$0xff] %v2220
  %2225 = vst [vmem:[#allocation3 + $0x30] sm:$0xff] %v2221
  %2226 = vst [vmem:[#allocation3 + $0x38] sm:$0xff] %v2222
  %v2227 = vld [vmem:[#allocation2 + $0x80] sm:$0xff]
  %v2228 = vld [vmem:[#allocation2 + $0x88] sm:$0xff]
  %v2229 = vld [vmem:[#allocation2 + $0x90] sm:$0xff]
  %v2230 = vld [vmem:[#allocation2 + $0x98] sm:$0xff]
  %v2231 = vld [vmem:[#allocation2 + $0xa0] sm:$0xff]
  %v2232 = vld [vmem:[#allocation2 + $0xa8] sm:$0xff]
  %v2233 = vld [vmem:[#allocation2 + $0xb0] sm:$0xff]
  %v2234 = vld [vmem:[#allocation2 + $0xb8] sm:$0xff]
  %v2235 = vmul.f32 %v2227, %v2146
  %v2236 = vmul.f32 %v2228, %v2147
  %v2237 = vmul.f32 %v2229, %v2146
  %v2238 = vmul.f32 %v2230, %v2147
  %v2239 = vmul.f32 %v2231, %v2146
  %v2240 = vmul.f32 %v2232, %v2147
  %v2241 = vmul.f32 %v2233, %v2146
  %v2242 = vmul.f32 %v2234, %v2147
  %v2243 = vadd.f32 %v2235, %v2175
  %v2244 = vadd.f32 %v2236, %v2176
  %v2245 = vadd.f32 %v2237, %v2175
  %v2246 = vadd.f32 %v2238, %v2176
  %v2247 = vadd.f32 %v2239, %v2175
  %v2248 = vadd.f32 %v2240, %v2176
  %v2249 = vadd.f32 %v2241, %v2175
  %v2250 = vadd.f32 %v2242, %v2176
  %v2251 = vpack.c.bf16 %v2244, %v2243
  %v2252 = vpack.c.bf16 %v2246, %v2245
  %v2253 = vpack.c.bf16 %v2248, %v2247
  %v2254 = vpack.c.bf16 %v2250, %v2249
  %2255 = vst [vmem:[#allocation3 + $0x40] sm:$0xff] %v2251
  %2256 = vst [vmem:[#allocation3 + $0x48] sm:$0xff] %v2252
  %2257 = vst [vmem:[#allocation3 + $0x50] sm:$0xff] %v2253
  %2258 = vst [vmem:[#allocation3 + $0x58] sm:$0xff] %v2254
  %v2259 = vld [vmem:[#allocation2 + $0xc0] sm:$0xff]
  %v2260 = vld [vmem:[#allocation2 + $0xc8] sm:$0xff]
  %v2261 = vld [vmem:[#allocation2 + $0xd0] sm:$0xff]
  %v2262 = vld [vmem:[#allocation2 + $0xd8] sm:$0xff]
  %v2263 = vld [vmem:[#allocation2 + $0xe0] sm:$0xff]
  %v2264 = vld [vmem:[#allocation2 + $0xe8] sm:$0xff]
  %v2265 = vld [vmem:[#allocation2 + $0xf0] sm:$0xff]
  %v2266 = vld [vmem:[#allocation2 + $0xf8] sm:$0xff]
  %v2267 = vmul.f32 %v2259, %v2146
  %v2268 = vmul.f32 %v2260, %v2147
  %v2269 = vmul.f32 %v2261, %v2146
  %v2270 = vmul.f32 %v2262, %v2147
  %v2271 = vmul.f32 %v2263, %v2146
  %v2272 = vmul.f32 %v2264, %v2147
  %v2273 = vmul.f32 %v2265, %v2146
  %v2274 = vmul.f32 %v2266, %v2147
  %v2275 = vadd.f32 %v2267, %v2175
  %v2276 = vadd.f32 %v2268, %v2176
  %v2277 = vadd.f32 %v2269, %v2175
  %v2278 = vadd.f32 %v2270, %v2176
  %v2279 = vadd.f32 %v2271, %v2175
  %v2280 = vadd.f32 %v2272, %v2176
  %v2281 = vadd.f32 %v2273, %v2175
  %v2282 = vadd.f32 %v2274, %v2176
  %v2283 = vpack.c.bf16 %v2276, %v2275
  %v2284 = vpack.c.bf16 %v2278, %v2277
  %v2285 = vpack.c.bf16 %v2280, %v2279
  %v2286 = vpack.c.bf16 %v2282, %v2281
  %2287 = vst [vmem:[#allocation3 + $0x60] sm:$0xff] %v2283
  %2288 = vst [vmem:[#allocation3 + $0x68] sm:$0xff] %v2284
  %2289 = vst [vmem:[#allocation3 + $0x70] sm:$0xff] %v2285
  %2290 = vst [vmem:[#allocation3 + $0x78] sm:$0xff] %v2286
  %v2291 = vld [vmem:[#allocation2 + $0x100] sm:$0xff]
  %v2292 = vld [vmem:[#allocation2 + $0x108] sm:$0xff]
  %v2293 = vld [vmem:[#allocation2 + $0x110] sm:$0xff]
  %v2294 = vld [vmem:[#allocation2 + $0x118] sm:$0xff]
  %v2295 = vld [vmem:[#allocation2 + $0x120] sm:$0xff]
  %v2296 = vld [vmem:[#allocation2 + $0x128] sm:$0xff]
  %v2297 = vld [vmem:[#allocation2 + $0x130] sm:$0xff]
  %v2298 = vld [vmem:[#allocation2 + $0x138] sm:$0xff]
  %v2299 = vmul.f32 %v2291, %v2146
  %v2300 = vmul.f32 %v2292, %v2147
  %v2301 = vmul.f32 %v2293, %v2146
  %v2302 = vmul.f32 %v2294, %v2147
  %v2303 = vmul.f32 %v2295, %v2146
  %v2304 = vmul.f32 %v2296, %v2147
  %v2305 = vmul.f32 %v2297, %v2146
  %v2306 = vmul.f32 %v2298, %v2147
  %v2307 = vadd.f32 %v2299, %v2175
  %v2308 = vadd.f32 %v2300, %v2176
  %v2309 = vadd.f32 %v2301, %v2175
  %v2310 = vadd.f32 %v2302, %v2176
  %v2311 = vadd.f32 %v2303, %v2175
  %v2312 = vadd.f32 %v2304, %v2176
  %v2313 = vadd.f32 %v2305, %v2175
  %v2314 = vadd.f32 %v2306, %v2176
  %v2315 = vpack.c.bf16 %v2308, %v2307
  %v2316 = vpack.c.bf16 %v2310, %v2309
  %v2317 = vpack.c.bf16 %v2312, %v2311
  %v2318 = vpack.c.bf16 %v2314, %v2313
  %2319 = vst [vmem:[#allocation3 + $0x80] sm:$0xff] %v2315
  %2320 = vst [vmem:[#allocation3 + $0x88] sm:$0xff] %v2316
  %2321 = vst [vmem:[#allocation3 + $0x90] sm:$0xff] %v2317
  %2322 = vst [vmem:[#allocation3 + $0x98] sm:$0xff] %v2318
  %v2323 = vld [vmem:[#allocation2 + $0x140] sm:$0xff]
  %v2324 = vld [vmem:[#allocation2 + $0x148] sm:$0xff]
  %v2325 = vld [vmem:[#allocation2 + $0x150] sm:$0xff]
  %v2326 = vld [vmem:[#allocation2 + $0x158] sm:$0xff]
  %v2327 = vld [vmem:[#allocation2 + $0x160] sm:$0xff]
  %v2328 = vld [vmem:[#allocation2 + $0x168] sm:$0xff]
  %v2329 = vld [vmem:[#allocation2 + $0x170] sm:$0xff]
  %v2330 = vld [vmem:[#allocation2 + $0x178] sm:$0xff]
  %v2331 = vmul.f32 %v2323, %v2146
  %v2332 = vmul.f32 %v2324, %v2147
  %v2333 = vmul.f32 %v2325, %v2146
  %v2334 = vmul.f32 %v2326, %v2147
  %v2335 = vmul.f32 %v2327, %v2146
  %v2336 = vmul.f32 %v2328, %v2147
  %v2337 = vmul.f32 %v2329, %v2146
  %v2338 = vmul.f32 %v2330, %v2147
  %v2339 = vadd.f32 %v2331, %v2175
  %v2340 = vadd.f32 %v2332, %v2176
  %v2341 = vadd.f32 %v2333, %v2175
  %v2342 = vadd.f32 %v2334, %v2176
  %v2343 = vadd.f32 %v2335, %v2175
  %v2344 = vadd.f32 %v2336, %v2176
  %v2345 = vadd.f32 %v2337, %v2175
  %v2346 = vadd.f32 %v2338, %v2176
  %v2347 = vpack.c.bf16 %v2340, %v2339
  %v2348 = vpack.c.bf16 %v2342, %v2341
  %v2349 = vpack.c.bf16 %v2344, %v2343
  %v2350 = vpack.c.bf16 %v2346, %v2345
  %2351 = vst [vmem:[#allocation3 + $0xa0] sm:$0xff] %v2347
  %2352 = vst [vmem:[#allocation3 + $0xa8] sm:$0xff] %v2348
  %2353 = vst [vmem:[#allocation3 + $0xb0] sm:$0xff] %v2349
  %2354 = vst [vmem:[#allocation3 + $0xb8] sm:$0xff] %v2350
  %v2355 = vld [vmem:[#allocation2 + $0x180] sm:$0xff]
  %v2356 = vld [vmem:[#allocation2 + $0x188] sm:$0xff]
  %v2357 = vld [vmem:[#allocation2 + $0x190] sm:$0xff]
  %v2358 = vld [vmem:[#allocation2 + $0x198] sm:$0xff]
  %v2359 = vld [vmem:[#allocation2 + $0x1a0] sm:$0xff]
  %v2360 = vld [vmem:[#allocation2 + $0x1a8] sm:$0xff]
  %v2361 = vld [vmem:[#allocation2 + $0x1b0] sm:$0xff]
  %v2362 = vld [vmem:[#allocation2 + $0x1b8] sm:$0xff]
  %v2363 = vmul.f32 %v2355, %v2146
  %v2364 = vmul.f32 %v2356, %v2147
  %v2365 = vmul.f32 %v2357, %v2146
  %v2366 = vmul.f32 %v2358, %v2147
  %v2367 = vmul.f32 %v2359, %v2146
  %v2368 = vmul.f32 %v2360, %v2147
  %v2369 = vmul.f32 %v2361, %v2146
  %v2370 = vmul.f32 %v2362, %v2147
  %v2371 = vadd.f32 %v2363, %v2175
  %v2372 = vadd.f32 %v2364, %v2176
  %v2373 = vadd.f32 %v2365, %v2175
  %v2374 = vadd.f32 %v2366, %v2176
  %v2375 = vadd.f32 %v2367, %v2175
  %v2376 = vadd.f32 %v2368, %v2176
  %v2377 = vadd.f32 %v2369, %v2175
  %v2378 = vadd.f32 %v2370, %v2176
  %v2379 = vpack.c.bf16 %v2372, %v2371
  %v2380 = vpack.c.bf16 %v2374, %v2373
  %v2381 = vpack.c.bf16 %v2376, %v2375
  %v2382 = vpack.c.bf16 %v2378, %v2377
  %2383 = vst [vmem:[#allocation3 + $0xc0] sm:$0xff] %v2379
  %2384 = vst [vmem:[#allocation3 + $0xc8] sm:$0xff] %v2380
  %2385 = vst [vmem:[#allocation3 + $0xd0] sm:$0xff] %v2381
  %2386 = vst [vmem:[#allocation3 + $0xd8] sm:$0xff] %v2382
  %v2387 = vld [vmem:[#allocation3] sm:$0xff]
  %v2388 = vld [vmem:[#allocation3 + $0x8] sm:$0xff]
  %v2389 = vld [vmem:[#allocation3 + $0x10] sm:$0xff]
  %v2390 = vld [vmem:[#allocation3 + $0x18] sm:$0xff]
  %v2391 = vld [vmem:[#allocation3 + $0x20] sm:$0xff]
  %v2392 = vld [vmem:[#allocation3 + $0x28] sm:$0xff]
  %v2393 = vld [vmem:[#allocation3 + $0x30] sm:$0xff]
  %v2394 = vld [vmem:[#allocation3 + $0x38] sm:$0xff]
  %v2395 = vld [vmem:[#allocation3 + $0x40] sm:$0xff]
  %v2396 = vld [vmem:[#allocation3 + $0x48] sm:$0xff]
  %v2397 = vld [vmem:[#allocation3 + $0x50] sm:$0xff]
  %v2398 = vld [vmem:[#allocation3 + $0x58] sm:$0xff]
  %v2399 = vld [vmem:[#allocation3 + $0x60] sm:$0xff]
  %v2400 = vld [vmem:[#allocation3 + $0x68] sm:$0xff]
  %v2401 = vld [vmem:[#allocation3 + $0x70] sm:$0xff]
  %v2402 = vld [vmem:[#allocation3 + $0x78] sm:$0xff]
  %v2403 = vld [vmem:[#allocation3 + $0x80] sm:$0xff]
  %v2404 = vld [vmem:[#allocation3 + $0x88] sm:$0xff]
  %v2405 = vld [vmem:[#allocation3 + $0x90] sm:$0xff]
  %v2406 = vld [vmem:[#allocation3 + $0x98] sm:$0xff]
  %v2407 = vld [vmem:[#allocation3 + $0xa0] sm:$0xff]
  %v2408 = vld [vmem:[#allocation3 + $0xa8] sm:$0xff]
  %v2409 = vld [vmem:[#allocation3 + $0xb0] sm:$0xff]
  %v2410 = vld [vmem:[#allocation3 + $0xb8] sm:$0xff]
  %v2411 = vld [vmem:[#allocation3 + $0xc0] sm:$0xff]
  %v2412 = vld [vmem:[#allocation3 + $0xc8] sm:$0xff]
  %v2413 = vld [vmem:[#allocation3 + $0xd0] sm:$0xff]
  %v2414 = vld [vmem:[#allocation3 + $0xd8] sm:$0xff]
  %v2415 = vld [vmem:[%s4] sm:$0xff]
  %v2416 = vld [vmem:[%s4 + $0x8] sm:$0xff]
  %v2417 = vld [vmem:[%s4 + $0x10] sm:$0xff]
  %v2418 = vld [vmem:[%s4 + $0x18] sm:$0xff]
  %v2419 = vld [vmem:[%s4 + $0x20] sm:$0xff]
  %v2420 = vld [vmem:[%s4 + $0x28] sm:$0xff]
  %v2421 = vld [vmem:[%s4 + $0x30] sm:$0xff]
  %v2422 = vld [vmem:[%s4 + $0x38] sm:$0xff]
  %v2423 = vld [vmem:[%s4 + $0x40] sm:$0xff]
  %v2424 = vld [vmem:[%s4 + $0x48] sm:$0xff]
  %v2425 = vld [vmem:[%s4 + $0x50] sm:$0xff]
  %v2426 = vld [vmem:[%s4 + $0x58] sm:$0xff]
  %v2427 = vld [vmem:[%s4 + $0x60] sm:$0xff]
  %v2428 = vld [vmem:[%s4 + $0x68] sm:$0xff]
  %v2429 = vld [vmem:[%s4 + $0x70] sm:$0xff]
  %v2430 = vld [vmem:[%s4 + $0x78] sm:$0xff]
  %v2431 = vld [vmem:[%s4 + $0x80] sm:$0xff]
  %v2432 = vld [vmem:[%s4 + $0x88] sm:$0xff]
  %v2433 = vld [vmem:[%s4 + $0x90] sm:$0xff]
  %v2434 = vld [vmem:[%s4 + $0x98] sm:$0xff]
  %v2435 = vld [vmem:[%s4 + $0xa0] sm:$0xff]
  %v2436 = vld [vmem:[%s4 + $0xa8] sm:$0xff]
  %v2437 = vld [vmem:[%s4 + $0xb0] sm:$0xff]
  %v2438 = vld [vmem:[%s4 + $0xb8] sm:$0xff]
  %v2439 = vld [vmem:[%s4 + $0xc0] sm:$0xff]
  %v2440 = vld [vmem:[%s4 + $0xc8] sm:$0xff]
  %v2441 = vld [vmem:[%s4 + $0xd0] sm:$0xff]
  %v2442 = vld [vmem:[%s4 + $0xd8] sm:$0xff]
  %v2443 = vld [vmem:[%s4 + $0xe0] sm:$0xff]
  %v2444 = vld [vmem:[%s4 + $0xe8] sm:$0xff]
  %v2445 = vld [vmem:[%s4 + $0xf0] sm:$0xff]
  %v2446 = vld [vmem:[%s4 + $0xf8] sm:$0xff]
  %v2475 = vunpack.c.l.b16 %v2387
  %v2476 = vunpack.c.h.b16 %v2387
  %v2477 = vunpack.c.l.b16 %v2388
  %v2478 = vunpack.c.h.b16 %v2388
  %v2479 = vunpack.c.l.b16 %v2389
  %v2480 = vunpack.c.h.b16 %v2389
  %v2481 = vunpack.c.l.b16 %v2390
  %v2482 = vunpack.c.h.b16 %v2390
  %v2483 = vunpack.c.l.b16 %v2391
  %v2484 = vunpack.c.h.b16 %v2391
  %v2485 = vunpack.c.l.b16 %v2392
  %v2486 = vunpack.c.h.b16 %v2392
  %v2487 = vunpack.c.l.b16 %v2393
  %v2488 = vunpack.c.h.b16 %v2393
  %v2489 = vunpack.c.l.b16 %v2394
  %v2490 = vunpack.c.h.b16 %v2394
  %v2491 = vunpack.c.l.b16 %v2395
  %v2492 = vunpack.c.h.b16 %v2395
  %v2493 = vunpack.c.l.b16 %v2396
  %v2494 = vunpack.c.h.b16 %v2396
  %v2495 = vunpack.c.l.b16 %v2397
  %v2496 = vunpack.c.h.b16 %v2397
  %v2497 = vunpack.c.l.b16 %v2398
  %v2498 = vunpack.c.h.b16 %v2398
  %v2499 = vunpack.c.l.b16 %v2399
  %v2500 = vunpack.c.h.b16 %v2399
  %v2501 = vunpack.c.l.b16 %v2400
  %v2502 = vunpack.c.h.b16 %v2400
  %v2503 = vunpack.c.l.b16 %v2401
  %v2504 = vunpack.c.h.b16 %v2401
  %v2505 = vunpack.c.l.b16 %v2402
  %v2506 = vunpack.c.h.b16 %v2402
  %v2507 = vunpack.c.l.b16 %v2403
  %v2508 = vunpack.c.h.b16 %v2403
  %v2509 = vunpack.c.l.b16 %v2404
  %v2510 = vunpack.c.h.b16 %v2404
  %v2511 = vunpack.c.l.b16 %v2405
  %v2512 = vunpack.c.h.b16 %v2405
  %v2513 = vunpack.c.l.b16 %v2406
  %v2514 = vunpack.c.h.b16 %v2406
  %v2515 = vunpack.c.l.b16 %v2407
  %v2516 = vunpack.c.h.b16 %v2407
  %v2517 = vunpack.c.l.b16 %v2408
  %v2518 = vunpack.c.h.b16 %v2408
  %v2519 = vunpack.c.l.b16 %v2409
  %v2520 = vunpack.c.h.b16 %v2409
  %v2521 = vunpack.c.l.b16 %v2410
  %v2522 = vunpack.c.h.b16 %v2410
  %v2523 = vunpack.c.l.b16 %v2411
  %v2524 = vunpack.c.h.b16 %v2411
  %v2525 = vunpack.c.l.b16 %v2412
  %v2526 = vunpack.c.h.b16 %v2412
  %v2527 = vunpack.c.l.b16 %v2413
  %v2528 = vunpack.c.h.b16 %v2413
  %v2529 = vunpack.c.l.b16 %v2414
  %v2530 = vunpack.c.h.b16 %v2414
  %v2531 = vpack.c.b16 %v2477, %v2475
  %v2532 = vpack.c.b16 %v2478, %v2476
  %v2533 = vpack.c.b16 %v2481, %v2479
  %v2534 = vpack.c.b16 %v2482, %v2480
  %v2535 = vpack.c.b16 %v2485, %v2483
  %v2536 = vpack.c.b16 %v2486, %v2484
  %v2537 = vpack.c.b16 %v2489, %v2487
  %v2538 = vpack.c.b16 %v2490, %v2488
  %v2539 = vpack.c.b16 %v2493, %v2491
  %v2540 = vpack.c.b16 %v2494, %v2492
  %v2541 = vpack.c.b16 %v2497, %v2495
  %v2542 = vpack.c.b16 %v2498, %v2496
  %v2543 = vpack.c.b16 %v2501, %v2499
  %v2544 = vpack.c.b16 %v2502, %v2500
  %v2545 = vpack.c.b16 %v2505, %v2503
  %v2546 = vpack.c.b16 %v2506, %v2504
  %v2547 = vpack.c.b16 %v2509, %v2507
  %v2548 = vpack.c.b16 %v2510, %v2508
  %v2549 = vpack.c.b16 %v2513, %v2511
  %v2550 = vpack.c.b16 %v2514, %v2512
  %v2551 = vpack.c.b16 %v2517, %v2515
  %v2552 = vpack.c.b16 %v2518, %v2516
  %v2553 = vpack.c.b16 %v2521, %v2519
  %v2554 = vpack.c.b16 %v2522, %v2520
  %v2555 = vpack.c.b16 %v2525, %v2523
  %v2556 = vpack.c.b16 %v2526, %v2524
  %v2557 = vpack.c.b16 %v2529, %v2527
  %v2558 = vpack.c.b16 %v2530, %v2528
  %v2619 = vunpack.c.l.b16 %v2415
  %v2620 = vunpack.c.h.b16 %v2415
  %v2621 = vunpack.c.l.b16 %v2416
  %v2622 = vunpack.c.h.b16 %v2416
  %v2623 = vunpack.c.l.b16 %v2417
  %v2624 = vunpack.c.h.b16 %v2417
  %v2625 = vunpack.c.l.b16 %v2418
  %v2626 = vunpack.c.h.b16 %v2418
  %v2627 = vunpack.c.l.b16 %v2419
  %v2628 = vunpack.c.h.b16 %v2419
  %v2629 = vunpack.c.l.b16 %v2420
  %v2630 = vunpack.c.h.b16 %v2420
  %v2631 = vunpack.c.l.b16 %v2421
  %v2632 = vunpack.c.h.b16 %v2421
  %v2633 = vunpack.c.l.b16 %v2422
  %v2634 = vunpack.c.h.b16 %v2422
  %v2635 = vunpack.c.l.b16 %v2423
  %v2636 = vunpack.c.h.b16 %v2423
  %v2637 = vunpack.c.l.b16 %v2424
  %v2638 = vunpack.c.h.b16 %v2424
  %v2639 = vunpack.c.l.b16 %v2425
  %v2640 = vunpack.c.h.b16 %v2425
  %v2641 = vunpack.c.l.b16 %v2426
  %v2642 = vunpack.c.h.b16 %v2426
  %v2643 = vunpack.c.l.b16 %v2427
  %v2644 = vunpack.c.h.b16 %v2427
  %v2645 = vunpack.c.l.b16 %v2428
  %v2646 = vunpack.c.h.b16 %v2428
  %v2647 = vunpack.c.l.b16 %v2429
  %v2648 = vunpack.c.h.b16 %v2429
  %v2649 = vunpack.c.l.b16 %v2430
  %v2650 = vunpack.c.h.b16 %v2430
  %v2651 = vunpack.c.l.b16 %v2431
  %v2652 = vunpack.c.h.b16 %v2431
  %v2653 = vunpack.c.l.b16 %v2432
  %v2654 = vunpack.c.h.b16 %v2432
  %v2655 = vunpack.c.l.b16 %v2433
  %v2656 = vunpack.c.h.b16 %v2433
  %v2657 = vunpack.c.l.b16 %v2434
  %v2658 = vunpack.c.h.b16 %v2434
  %v2659 = vunpack.c.l.b16 %v2435
  %v2660 = vunpack.c.h.b16 %v2435
  %v2661 = vunpack.c.l.b16 %v2436
  %v2662 = vunpack.c.h.b16 %v2436
  %v2663 = vunpack.c.l.b16 %v2437
  %v2664 = vunpack.c.h.b16 %v2437
  %v2665 = vunpack.c.l.b16 %v2438
  %v2666 = vunpack.c.h.b16 %v2438
  %v2667 = vunpack.c.l.b16 %v2439
  %v2668 = vunpack.c.h.b16 %v2439
  %v2669 = vunpack.c.l.b16 %v2440
  %v2670 = vunpack.c.h.b16 %v2440
  %v2671 = vunpack.c.l.b16 %v2441
  %v2672 = vunpack.c.h.b16 %v2441
  %v2673 = vunpack.c.l.b16 %v2442
  %v2674 = vunpack.c.h.b16 %v2442
  %v2675 = vunpack.c.l.b16 %v2443
  %v2676 = vunpack.c.h.b16 %v2443
  %v2677 = vunpack.c.l.b16 %v2444
  %v2678 = vunpack.c.h.b16 %v2444
  %v2679 = vunpack.c.l.b16 %v2445
  %v2680 = vunpack.c.h.b16 %v2445
  %v2681 = vunpack.c.l.b16 %v2446
  %v2682 = vunpack.c.h.b16 %v2446
  %v2683 = vpack.c.b16 %v2621, %v2619
  %v2684 = vpack.c.b16 %v2622, %v2620
  %v2685 = vpack.c.b16 %v2625, %v2623
  %v2686 = vpack.c.b16 %v2626, %v2624
  %v2687 = vpack.c.b16 %v2629, %v2627
  %v2688 = vpack.c.b16 %v2630, %v2628
  %v2689 = vpack.c.b16 %v2633, %v2631
  %v2690 = vpack.c.b16 %v2634, %v2632
  %v2691 = vpack.c.b16 %v2637, %v2635
  %v2692 = vpack.c.b16 %v2638, %v2636
  %v2693 = vpack.c.b16 %v2641, %v2639
  %v2694 = vpack.c.b16 %v2642, %v2640
  %v2695 = vpack.c.b16 %v2645, %v2643
  %v2696 = vpack.c.b16 %v2646, %v2644
  %v2697 = vpack.c.b16 %v2649, %v2647
  %v2698 = vpack.c.b16 %v2650, %v2648
  %v2699 = vpack.c.b16 %v2653, %v2651
  %v2700 = vpack.c.b16 %v2654, %v2652
  %v2701 = vpack.c.b16 %v2657, %v2655
  %v2702 = vpack.c.b16 %v2658, %v2656
  %v2703 = vpack.c.b16 %v2661, %v2659
  %v2704 = vpack.c.b16 %v2662, %v2660
  %v2705 = vpack.c.b16 %v2665, %v2663
  %v2706 = vpack.c.b16 %v2666, %v2664
  %v2707 = vpack.c.b16 %v2669, %v2667
  %v2708 = vpack.c.b16 %v2670, %v2668
  %v2709 = vpack.c.b16 %v2673, %v2671
  %v2710 = vpack.c.b16 %v2674, %v2672
  %v2711 = vpack.c.b16 %v2677, %v2675
  %v2712 = vpack.c.b16 %v2678, %v2676
  %v2713 = vpack.c.b16 %v2681, %v2679
  %v2714 = vpack.c.b16 %v2682, %v2680
  %2747 = vmatpush.bf16.msra.mxu0 %v2697
  %2748 = vmatpush.bf16.msra.mxu0 %v2695
  %2749 = vmatpush.bf16.msra.mxu0 %v2693
  %2750 = vmatpush.bf16.msra.mxu0 %v2691
  %2751 = vmatpush.bf16.msra.mxu0 %v2689
  %2752 = vmatpush.bf16.msra.mxu0 %v2687
  %2753 = vmatpush.bf16.msra.mxu0 %v2685
  %2754 = vmatpush.bf16.msra.mxu0 %v2683
  %2755 = vmatmul.bf16.gmra.mxu0 %v2531
  %v2756 = vpop.f32.mrf.mxu0
  %v2757 = vadd.f32 0.0, %v2756
  %v2758 = vpop.f32.mrf.mxu0
  %v2759 = vadd.f32 0.0, %v2758
  %2760 = vmatmul.bf16.gmra.mxu0 %v2533
  %v2761 = vpop.f32.mrf.mxu0
  %v2762 = vadd.f32 0.0, %v2761
  %v2763 = vpop.f32.mrf.mxu0
  %v2764 = vadd.f32 0.0, %v2763
  %2765 = vmatmul.bf16.gmra.mxu0 %v2535
  %v2766 = vpop.f32.mrf.mxu0
  %v2767 = vadd.f32 0.0, %v2766
  %v2768 = vpop.f32.mrf.mxu0
  %v2769 = vadd.f32 0.0, %v2768
  %2770 = vmatmul.bf16.gmra.mxu0 %v2537
  %v2771 = vpop.f32.mrf.mxu0
  %v2772 = vadd.f32 0.0, %v2771
  %v2773 = vpop.f32.mrf.mxu0
  %v2774 = vadd.f32 0.0, %v2773
  %2775 = vmatmul.bf16.gmra.mxu0 %v2539
  %v2776 = vpop.f32.mrf.mxu0
  %v2777 = vadd.f32 0.0, %v2776
  %v2778 = vpop.f32.mrf.mxu0
  %v2779 = vadd.f32 0.0, %v2778
  %2780 = vmatmul.bf16.gmra.mxu0 %v2541
  %v2781 = vpop.f32.mrf.mxu0
  %v2782 = vadd.f32 0.0, %v2781
  %v2783 = vpop.f32.mrf.mxu0
  %v2784 = vadd.f32 0.0, %v2783
  %2785 = vmatmul.bf16.gmra.mxu0 %v2543
  %v2786 = vpop.f32.mrf.mxu0
  %v2787 = vadd.f32 0.0, %v2786
  %v2788 = vpop.f32.mrf.mxu0
  %v2789 = vadd.f32 0.0, %v2788
  %2790 = vmatmul.bf16.gmra.mxu0 %v2545
  %v2791 = vpop.f32.mrf.mxu0
  %v2792 = vadd.f32 0.0, %v2791
  %v2793 = vpop.f32.mrf.mxu0
  %v2794 = vadd.f32 0.0, %v2793
  %2795 = vmatmul.bf16.gmra.mxu0 %v2547
  %v2796 = vpop.f32.mrf.mxu0
  %v2797 = vadd.f32 0.0, %v2796
  %v2798 = vpop.f32.mrf.mxu0
  %v2799 = vadd.f32 0.0, %v2798
  %2800 = vmatmul.bf16.gmra.mxu0 %v2549
  %v2801 = vpop.f32.mrf.mxu0
  %v2802 = vadd.f32 0.0, %v2801
  %v2803 = vpop.f32.mrf.mxu0
  %v2804 = vadd.f32 0.0, %v2803
  %2805 = vmatmul.bf16.gmra.mxu0 %v2551
  %v2806 = vpop.f32.mrf.mxu0
  %v2807 = vadd.f32 0.0, %v2806
  %v2808 = vpop.f32.mrf.mxu0
  %v2809 = vadd.f32 0.0, %v2808
  %2810 = vmatmul.bf16.gmra.mxu0 %v2553
  %v2811 = vpop.f32.mrf.mxu0
  %v2812 = vadd.f32 0.0, %v2811
  %v2813 = vpop.f32.mrf.mxu0
  %v2814 = vadd.f32 0.0, %v2813
  %2815 = vmatmul.bf16.gmra.mxu0 %v2555
  %v2816 = vpop.f32.mrf.mxu0
  %v2817 = vadd.f32 0.0, %v2816
  %v2818 = vpop.f32.mrf.mxu0
  %v2819 = vadd.f32 0.0, %v2818
  %2820 = vmatmul.bf16.gmra.mxu0 %v2557
  %v2821 = vpop.f32.mrf.mxu0
  %v2822 = vadd.f32 0.0, %v2821
  %v2823 = vpop.f32.mrf.mxu0
  %v2824 = vadd.f32 0.0, %v2823
  %2825 = vdwg.mxu0
  %2826 = vmatpush.bf16.msra.mxu0 %v2713
  %2827 = vmatpush.bf16.msra.mxu0 %v2711
  %2828 = vmatpush.bf16.msra.mxu0 %v2709
  %2829 = vmatpush.bf16.msra.mxu0 %v2707
  %2830 = vmatpush.bf16.msra.mxu0 %v2705
  %2831 = vmatpush.bf16.msra.mxu0 %v2703
  %2832 = vmatpush.bf16.msra.mxu0 %v2701
  %2833 = vmatpush.bf16.msra.mxu0 %v2699
  %2834 = vmatmul.bf16.gmra.mxu0 %v2532
  %v2835 = vpop.f32.mrf.mxu0
  %v2836 = vadd.f32 %v2757, %v2835
  %v2837 = vpop.f32.mrf.mxu0
  %v2838 = vadd.f32 %v2759, %v2837
  %2839 = vmatmul.bf16.gmra.mxu0 %v2534
  %v2840 = vpop.f32.mrf.mxu0
  %v2841 = vadd.f32 %v2762, %v2840
  %v2842 = vpop.f32.mrf.mxu0
  %v2843 = vadd.f32 %v2764, %v2842
  %2844 = vmatmul.bf16.gmra.mxu0 %v2536
  %v2845 = vpop.f32.mrf.mxu0
  %v2846 = vadd.f32 %v2767, %v2845
  %v2847 = vpop.f32.mrf.mxu0
  %v2848 = vadd.f32 %v2769, %v2847
  %2849 = vmatmul.bf16.gmra.mxu0 %v2538
  %v2850 = vpop.f32.mrf.mxu0
  %v2851 = vadd.f32 %v2772, %v2850
  %v2852 = vpop.f32.mrf.mxu0
  %v2853 = vadd.f32 %v2774, %v2852
  %2854 = vmatmul.bf16.gmra.mxu0 %v2540
  %v2855 = vpop.f32.mrf.mxu0
  %v2856 = vadd.f32 %v2777, %v2855
  %v2857 = vpop.f32.mrf.mxu0
  %v2858 = vadd.f32 %v2779, %v2857
  %2859 = vmatmul.bf16.gmra.mxu0 %v2542
  %v2860 = vpop.f32.mrf.mxu0
  %v2861 = vadd.f32 %v2782, %v2860
  %v2862 = vpop.f32.mrf.mxu0
  %v2863 = vadd.f32 %v2784, %v2862
  %2864 = vmatmul.bf16.gmra.mxu0 %v2544
  %v2865 = vpop.f32.mrf.mxu0
  %v2866 = vadd.f32 %v2787, %v2865
  %v2867 = vpop.f32.mrf.mxu0
  %v2868 = vadd.f32 %v2789, %v2867
  %2869 = vmatmul.bf16.gmra.mxu0 %v2546
  %v2870 = vpop.f32.mrf.mxu0
  %v2871 = vadd.f32 %v2792, %v2870
  %v2872 = vpop.f32.mrf.mxu0
  %v2873 = vadd.f32 %v2794, %v2872
  %2874 = vmatmul.bf16.gmra.mxu0 %v2548
  %v2875 = vpop.f32.mrf.mxu0
  %v2876 = vadd.f32 %v2797, %v2875
  %v2877 = vpop.f32.mrf.mxu0
  %v2878 = vadd.f32 %v2799, %v2877
  %2879 = vmatmul.bf16.gmra.mxu0 %v2550
  %v2880 = vpop.f32.mrf.mxu0
  %v2881 = vadd.f32 %v2802, %v2880
  %v2882 = vpop.f32.mrf.mxu0
  %v2883 = vadd.f32 %v2804, %v2882
  %2884 = vmatmul.bf16.gmra.mxu0 %v2552
  %v2885 = vpop.f32.mrf.mxu0
  %v2886 = vadd.f32 %v2807, %v2885
  %v2887 = vpop.f32.mrf.mxu0
  %v2888 = vadd.f32 %v2809, %v2887
  %2889 = vmatmul.bf16.gmra.mxu0 %v2554
  %v2890 = vpop.f32.mrf.mxu0
  %v2891 = vadd.f32 %v2812, %v2890
  %v2892 = vpop.f32.mrf.mxu0
  %v2893 = vadd.f32 %v2814, %v2892
  %2894 = vmatmul.bf16.gmra.mxu0 %v2556
  %v2895 = vpop.f32.mrf.mxu0
  %v2896 = vadd.f32 %v2817, %v2895
  %v2897 = vpop.f32.mrf.mxu0
  %v2898 = vadd.f32 %v2819, %v2897
  %2899 = vmatmul.bf16.gmra.mxu0 %v2558
  %v2900 = vpop.f32.mrf.mxu0
  %v2901 = vadd.f32 %v2822, %v2900
  %v2902 = vpop.f32.mrf.mxu0
  %v2903 = vadd.f32 %v2824, %v2902
  %2904 = vdwg.mxu0
  %2905 = vmatpush.bf16.msra.mxu0 %v2698
  %2906 = vmatpush.bf16.msra.mxu0 %v2696
  %2907 = vmatpush.bf16.msra.mxu0 %v2694
  %2908 = vmatpush.bf16.msra.mxu0 %v2692
  %2909 = vmatpush.bf16.msra.mxu0 %v2690
  %2910 = vmatpush.bf16.msra.mxu0 %v2688
  %2911 = vmatpush.bf16.msra.mxu0 %v2686
  %2912 = vmatpush.bf16.msra.mxu0 %v2684
  %2913 = vmatmul.bf16.gmra.mxu0 %v2531
  %v2914 = vpop.f32.mrf.mxu0
  %v2915 = vadd.f32 0.0, %v2914
  %v2916 = vpop.f32.mrf.mxu0
  %v2917 = vadd.f32 0.0, %v2916
  %2918 = vmatmul.bf16.gmra.mxu0 %v2533
  %v2919 = vpop.f32.mrf.mxu0
  %v2920 = vadd.f32 0.0, %v2919
  %v2921 = vpop.f32.mrf.mxu0
  %v2922 = vadd.f32 0.0, %v2921
  %2923 = vmatmul.bf16.gmra.mxu0 %v2535
  %v2924 = vpop.f32.mrf.mxu0
  %v2925 = vadd.f32 0.0, %v2924
  %v2926 = vpop.f32.mrf.mxu0
  %v2927 = vadd.f32 0.0, %v2926
  %2928 = vmatmul.bf16.gmra.mxu0 %v2537
  %v2929 = vpop.f32.mrf.mxu0
  %v2930 = vadd.f32 0.0, %v2929
  %v2931 = vpop.f32.mrf.mxu0
  %v2932 = vadd.f32 0.0, %v2931
  %2933 = vmatmul.bf16.gmra.mxu0 %v2539
  %v2934 = vpop.f32.mrf.mxu0
  %v2935 = vadd.f32 0.0, %v2934
  %v2936 = vpop.f32.mrf.mxu0
  %v2937 = vadd.f32 0.0, %v2936
  %2938 = vmatmul.bf16.gmra.mxu0 %v2541
  %v2939 = vpop.f32.mrf.mxu0
  %v2940 = vadd.f32 0.0, %v2939
  %v2941 = vpop.f32.mrf.mxu0
  %v2942 = vadd.f32 0.0, %v2941
  %2943 = vmatmul.bf16.gmra.mxu0 %v2543
  %v2944 = vpop.f32.mrf.mxu0
  %v2945 = vadd.f32 0.0, %v2944
  %v2946 = vpop.f32.mrf.mxu0
  %v2947 = vadd.f32 0.0, %v2946
  %2948 = vmatmul.bf16.gmra.mxu0 %v2545
  %v2949 = vpop.f32.mrf.mxu0
  %v2950 = vadd.f32 0.0, %v2949
  %v2951 = vpop.f32.mrf.mxu0
  %v2952 = vadd.f32 0.0, %v2951
  %2953 = vmatmul.bf16.gmra.mxu0 %v2547
  %v2954 = vpop.f32.mrf.mxu0
  %v2955 = vadd.f32 0.0, %v2954
  %v2956 = vpop.f32.mrf.mxu0
  %v2957 = vadd.f32 0.0, %v2956
  %2958 = vmatmul.bf16.gmra.mxu0 %v2549
  %v2959 = vpop.f32.mrf.mxu0
  %v2960 = vadd.f32 0.0, %v2959
  %v2961 = vpop.f32.mrf.mxu0
  %v2962 = vadd.f32 0.0, %v2961
  %2963 = vmatmul.bf16.gmra.mxu0 %v2551
  %v2964 = vpop.f32.mrf.mxu0
  %v2965 = vadd.f32 0.0, %v2964
  %v2966 = vpop.f32.mrf.mxu0
  %v2967 = vadd.f32 0.0, %v2966
  %2968 = vmatmul.bf16.gmra.mxu0 %v2553
  %v2969 = vpop.f32.mrf.mxu0
  %v2970 = vadd.f32 0.0, %v2969
  %v2971 = vpop.f32.mrf.mxu0
  %v2972 = vadd.f32 0.0, %v2971
  %2973 = vmatmul.bf16.gmra.mxu0 %v2555
  %v2974 = vpop.f32.mrf.mxu0
  %v2975 = vadd.f32 0.0, %v2974
  %v2976 = vpop.f32.mrf.mxu0
  %v2977 = vadd.f32 0.0, %v2976
  %2978 = vmatmul.bf16.gmra.mxu0 %v2557
  %v2979 = vpop.f32.mrf.mxu0
  %v2980 = vadd.f32 0.0, %v2979
  %v2981 = vpop.f32.mrf.mxu0
  %v2982 = vadd.f32 0.0, %v2981
  %2983 = vdwg.mxu0
  %2984 = vmatpush.bf16.msra.mxu0 %v2714
  %2985 = vmatpush.bf16.msra.mxu0 %v2712
  %2986 = vmatpush.bf16.msra.mxu0 %v2710
  %2987 = vmatpush.bf16.msra.mxu0 %v2708
  %2988 = vmatpush.bf16.msra.mxu0 %v2706
  %2989 = vmatpush.bf16.msra.mxu0 %v2704
  %2990 = vmatpush.bf16.msra.mxu0 %v2702
  %2991 = vmatpush.bf16.msra.mxu0 %v2700
  %2992 = vmatmul.bf16.gmra.mxu0 %v2532
  %v2993 = vpop.f32.mrf.mxu0
  %v2994 = vadd.f32 %v2915, %v2993
  %v2995 = vpop.f32.mrf.mxu0
  %v2996 = vadd.f32 %v2917, %v2995
  %2997 = vmatmul.bf16.gmra.mxu0 %v2534
  %v2998 = vpop.f32.mrf.mxu0
  %v2999 = vadd.f32 %v2920, %v2998
  %v3000 = vpop.f32.mrf.mxu0
  %v3001 = vadd.f32 %v2922, %v3000
  %3002 = vmatmul.bf16.gmra.mxu0 %v2536
  %v3003 = vpop.f32.mrf.mxu0
  %v3004 = vadd.f32 %v2925, %v3003
  %v3005 = vpop.f32.mrf.mxu0
  %v3006 = vadd.f32 %v2927, %v3005
  %3007 = vmatmul.bf16.gmra.mxu0 %v2538
  %v3008 = vpop.f32.mrf.mxu0
  %v3009 = vadd.f32 %v2930, %v3008
  %v3010 = vpop.f32.mrf.mxu0
  %v3011 = vadd.f32 %v2932, %v3010
  %3012 = vmatmul.bf16.gmra.mxu0 %v2540
  %v3013 = vpop.f32.mrf.mxu0
  %v3014 = vadd.f32 %v2935, %v3013
  %v3015 = vpop.f32.mrf.mxu0
  %v3016 = vadd.f32 %v2937, %v3015
  %3017 = vmatmul.bf16.gmra.mxu0 %v2542
  %v3018 = vpop.f32.mrf.mxu0
  %v3019 = vadd.f32 %v2940, %v3018
  %v3020 = vpop.f32.mrf.mxu0
  %v3021 = vadd.f32 %v2942, %v3020
  %3022 = vmatmul.bf16.gmra.mxu0 %v2544
  %v3023 = vpop.f32.mrf.mxu0
  %v3024 = vadd.f32 %v2945, %v3023
  %v3025 = vpop.f32.mrf.mxu0
  %v3026 = vadd.f32 %v2947, %v3025
  %3027 = vmatmul.bf16.gmra.mxu0 %v2546
  %v3028 = vpop.f32.mrf.mxu0
  %v3029 = vadd.f32 %v2950, %v3028
  %v3030 = vpop.f32.mrf.mxu0
  %v3031 = vadd.f32 %v2952, %v3030
  %3032 = vmatmul.bf16.gmra.mxu0 %v2548
  %v3033 = vpop.f32.mrf.mxu0
  %v3034 = vadd.f32 %v2955, %v3033
  %v3035 = vpop.f32.mrf.mxu0
  %v3036 = vadd.f32 %v2957, %v3035
  %3037 = vmatmul.bf16.gmra.mxu0 %v2550
  %v3038 = vpop.f32.mrf.mxu0
  %v3039 = vadd.f32 %v2960, %v3038
  %v3040 = vpop.f32.mrf.mxu0
  %v3041 = vadd.f32 %v2962, %v3040
  %3042 = vmatmul.bf16.gmra.mxu0 %v2552
  %v3043 = vpop.f32.mrf.mxu0
  %v3044 = vadd.f32 %v2965, %v3043
  %v3045 = vpop.f32.mrf.mxu0
  %v3046 = vadd.f32 %v2967, %v3045
  %3047 = vmatmul.bf16.gmra.mxu0 %v2554
  %v3048 = vpop.f32.mrf.mxu0
  %v3049 = vadd.f32 %v2970, %v3048
  %v3050 = vpop.f32.mrf.mxu0
  %v3051 = vadd.f32 %v2972, %v3050
  %3052 = vmatmul.bf16.gmra.mxu0 %v2556
  %v3053 = vpop.f32.mrf.mxu0
  %v3054 = vadd.f32 %v2975, %v3053
  %v3055 = vpop.f32.mrf.mxu0
  %v3056 = vadd.f32 %v2977, %v3055
  %3057 = vmatmul.bf16.gmra.mxu0 %v2558
  %v3058 = vpop.f32.mrf.mxu0
  %v3059 = vadd.f32 %v2980, %v3058
  %v3060 = vpop.f32.mrf.mxu0
  %v3061 = vadd.f32 %v2982, %v3060
  %3062 = vdwg.mxu0
  %3063 = vst [vmem:[%s5] sm:$0xff] %v2836
  %3064 = vst [vmem:[%s5 + $0x8] sm:$0xff] %v2994
  %3065 = vst [vmem:[%s5 + $0x10] sm:$0xff] %v2838
  %3066 = vst [vmem:[%s5 + $0x18] sm:$0xff] %v2996
  %3067 = vst [vmem:[%s5 + $0x20] sm:$0xff] %v2841
  %3068 = vst [vmem:[%s5 + $0x28] sm:$0xff] %v2999
  %3069 = vst [vmem:[%s5 + $0x30] sm:$0xff] %v2843
  %3070 = vst [vmem:[%s5 + $0x38] sm:$0xff] %v3001
  %3071 = vst [vmem:[%s5 + $0x40] sm:$0xff] %v2846
  %3072 = vst [vmem:[%s5 + $0x48] sm:$0xff] %v3004
  %3073 = vst [vmem:[%s5 + $0x50] sm:$0xff] %v2848
  %3074 = vst [vmem:[%s5 + $0x58] sm:$0xff] %v3006
  %3075 = vst [vmem:[%s5 + $0x60] sm:$0xff] %v2851
  %3076 = vst [vmem:[%s5 + $0x68] sm:$0xff] %v3009
  %3077 = vst [vmem:[%s5 + $0x70] sm:$0xff] %v2853
  %3078 = vst [vmem:[%s5 + $0x78] sm:$0xff] %v3011
  %3079 = vst [vmem:[%s5 + $0x80] sm:$0xff] %v2856
  %3080 = vst [vmem:[%s5 + $0x88] sm:$0xff] %v3014
  %3081 = vst [vmem:[%s5 + $0x90] sm:$0xff] %v2858
  %3082 = vst [vmem:[%s5 + $0x98] sm:$0xff] %v3016
  %3083 = vst [vmem:[%s5 + $0xa0] sm:$0xff] %v2861
  %3084 = vst [vmem:[%s5 + $0xa8] sm:$0xff] %v3019
  %3085 = vst [vmem:[%s5 + $0xb0] sm:$0xff] %v2863
  %3086 = vst [vmem:[%s5 + $0xb8] sm:$0xff] %v3021
  %3087 = vst [vmem:[%s5 + $0xc0] sm:$0xff] %v2866
  %3088 = vst [vmem:[%s5 + $0xc8] sm:$0xff] %v3024
  %3089 = vst [vmem:[%s5 + $0xd0] sm:$0xff] %v2868
  %3090 = vst [vmem:[%s5 + $0xd8] sm:$0xff] %v3026
  %3091 = vst [vmem:[%s5 + $0xe0] sm:$0xff] %v2871
  %3092 = vst [vmem:[%s5 + $0xe8] sm:$0xff] %v3029
  %3093 = vst [vmem:[%s5 + $0xf0] sm:$0xff] %v2873
  %3094 = vst [vmem:[%s5 + $0xf8] sm:$0xff] %v3031
  %3095 = vst [vmem:[%s5 + $0x100] sm:$0xff] %v2876
  %3096 = vst [vmem:[%s5 + $0x108] sm:$0xff] %v3034
  %3097 = vst [vmem:[%s5 + $0x110] sm:$0xff] %v2878
  %3098 = vst [vmem:[%s5 + $0x118] sm:$0xff] %v3036
  %3099 = vst [vmem:[%s5 + $0x120] sm:$0xff] %v2881
  %3100 = vst [vmem:[%s5 + $0x128] sm:$0xff] %v3039
  %3101 = vst [vmem:[%s5 + $0x130] sm:$0xff] %v2883
  %3102 = vst [vmem:[%s5 + $0x138] sm:$0xff] %v3041
  %3103 = vst [vmem:[%s5 + $0x140] sm:$0xff] %v2886
  %3104 = vst [vmem:[%s5 + $0x148] sm:$0xff] %v3044
  %3105 = vst [vmem:[%s5 + $0x150] sm:$0xff] %v2888
  %3106 = vst [vmem:[%s5 + $0x158] sm:$0xff] %v3046
  %3107 = vst [vmem:[%s5 + $0x160] sm:$0xff] %v2891
  %3108 = vst [vmem:[%s5 + $0x168] sm:$0xff] %v3049
  %3109 = vst [vmem:[%s5 + $0x170] sm:$0xff] %v2893
  %3110 = vst [vmem:[%s5 + $0x178] sm:$0xff] %v3051
  %3111 = vst [vmem:[%s5 + $0x180] sm:$0xff] %v2896
  %3112 = vst [vmem:[%s5 + $0x188] sm:$0xff] %v3054
  %3113 = vst [vmem:[%s5 + $0x190] sm:$0xff] %v2898
  %3114 = vst [vmem:[%s5 + $0x198] sm:$0xff] %v3056
  %3115 = vst [vmem:[%s5 + $0x1a0] sm:$0xff] %v2901
  %3116 = vst [vmem:[%s5 + $0x1a8] sm:$0xff] %v3059
  %3117 = vst [vmem:[%s5 + $0x1b0] sm:$0xff] %v2903
  %3118 = vst [vmem:[%s5 + $0x1b8] sm:$0xff] %v3061
  // Predicated region
  $region22: #{module_forward.1} parent=0 // pred_check
    _
  $region23: #{module_forward.1} parent=0 // pred_check_branch
    %3120 = sbr.rel (0) target = $region25
  $region24: #{module_forward.1} parent=0 // pred_region
    _
  $region25: #{module_forward.1} parent=0 // pred_fallthru
    _
  // Predicated region
  $region26: #{module_forward.1} parent=0 // pred_check
    _
  $region27: #{module_forward.1} parent=0 // pred_check_branch
    %3122 = sbr.rel (0) target = $region29
  $region28: #{module_forward.1} parent=0 // pred_region
    _
  $region29: #{module_forward.1} parent=0 // pred_fallthru
    _

</llo_original>
